<compile_context>
chip_gen: v7x
topology: tpu7x:2x2x1
jax: 0.10.0
libtpu: 0.0.40
codegen_flags: <defaults>
</compile_context>

<pallas_src>
import functools

import jax
import jax.numpy as jnp
from jax.experimental import pallas as pl
from jax.experimental.pallas import tpu as pltpu


def mha_kernel(x_ref, w_qkv_ref, w_res_ref, w_fc_ref, gamma_ref, beta_ref, o_ref, *,
               B, L, n_head, d_k, d_v, eps, compute_dtype):
    hdk = n_head * d_k
    hdv = n_head * d_v

    # f32 operands get exact (HIGHEST) MXU passes so the kernel matches the f32
    # reference to 1e-4; bf16 operands use the plain native bf16 MXU pass.
    matmul_precision = (jax.lax.Precision.HIGHEST
                        if compute_dtype == jnp.float32 else jax.lax.Precision.DEFAULT)

    def mm(a, b):
        # 2D MXU matmul: operands in compute_dtype, accumulate / result in f32.
        return jnp.dot(a.astype(compute_dtype), b.astype(compute_dtype),
                       preferred_element_type=jnp.float32,
                       precision=matmul_precision)

    def bmm(eq, a, b):
        # Rank-3 batched matmul (single leading batch dim).
        return jnp.einsum(eq, a.astype(compute_dtype), b.astype(compute_dtype),
                          preferred_element_type=jnp.float32,
                          precision=matmul_precision)

    x = x_ref[...]                                        # (B*L, d_model)

    # Fused q|k|v projection: w_reduce and 1/sqrt(d_k) are pre-folded host-side.
    qkv = mm(x, w_qkv_ref[...])                           # (B*L, 2*hdk + hdv), f32

    # Residual path (w_reduce pre-folded); doubles as the output accumulator.
    out = mm(x, w_res_ref[...])                           # (B*L, d_out), f32

    q = qkv[:, 0:hdk].reshape(B, L, hdk)                  # already scaled by 1/sqrt(d_k)
    k = qkv[:, hdk:2 * hdk].reshape(B, L, hdk)
    v = qkv[:, 2 * hdk:].reshape(B, L, hdv)

    # Static unrolled loop over heads (tiny n_head); each step is a rank-3 einsum pair.
    for h in range(n_head):
        qh = q[:, :, h * d_k:(h + 1) * d_k]               # (B, L, d_k)
        kh = k[:, :, h * d_k:(h + 1) * d_k]
        vh = v[:, :, h * d_v:(h + 1) * d_v]

        s = bmm('bqd,bkd->bqk', qh, kh)                   # (B, L, L) f32 scores
        s = s - jnp.max(s, axis=-1, keepdims=True)        # stable softmax, f32 stats
        p = jnp.exp(s)
        inv = pl.reciprocal(jnp.sum(p, axis=-1, keepdims=True), approx=False)  # exact
        p = p * inv

        ctx = bmm('bqk,bkd->bqd', p, vh)                  # (B, L, d_v) f32
        # concat_h(ctx_h) @ w_fc  ==  sum_h ctx_h @ w_fc[h]  -> accumulate, no concat.
        out = out + mm(ctx.reshape(B * L, d_v), w_fc_ref[h])

    # LayerNorm over the last dim (f32 statistics, biased variance, eps=1e-6).
    mean = jnp.mean(out, axis=-1, keepdims=True)
    var = jnp.mean((out - mean) ** 2, axis=-1, keepdims=True)
    normed = (out - mean) * jax.lax.rsqrt(var + eps)
    o_ref[...] = (normed * gamma_ref[...] + beta_ref[...]).astype(o_ref.dtype)


def multi_head_attention(x, params, *, n_head, d_k, d_v, compute_dtype=jnp.float32):
    B, L, d_model = x.shape
    d_output = params["w_res"].shape[1]
    hp = jax.lax.Precision.HIGHEST

    # ---- host-side parameter folding (exact f32) ----
    temperature = d_k ** 0.5
    w_proj = jnp.concatenate(
        [params["w_qs"] / temperature, params["w_ks"], params["w_vs"]], axis=1)
    w_qkv = jnp.dot(params["w_reduce"], w_proj, precision=hp)            # (d_model, 2Hdk+Hdv)
    w_res = jnp.dot(params["w_reduce"], params["w_res"], precision=hp)   # (d_model, d_out)
    w_fc = params["w_fc"].reshape(n_head, d_v, d_output)                 # per-head fc slabs

    kernel = functools.partial(mha_kernel, B=B, L=L, n_head=n_head, d_k=d_k,
                               d_v=d_v, eps=1e-6, compute_dtype=compute_dtype)

    # Single grid step: every operand is one whole block pinned in VMEM; weights
    # are DMA'd exactly once.  (Grid over B / flash-style tiling is a TODO at scale.)
    vmem = pltpu.MemorySpace.VMEM
    out2d = pl.pallas_call(
        kernel,
        out_shape=jax.ShapeDtypeStruct((B * L, d_output), jnp.float32),
        in_specs=[pl.BlockSpec(memory_space=vmem)] * 6,
        out_specs=pl.BlockSpec(memory_space=vmem),
    )(x.reshape(B * L, d_model).astype(compute_dtype),
      w_qkv.astype(compute_dtype),
      w_res.astype(compute_dtype),
      w_fc.astype(compute_dtype),
      params["ln_gamma"], params["ln_beta"])

    return out2d.reshape(B, L, d_output)


def reference_forward(x, params, *, n_head, d_k, d_v):
    """Pure-JAX reference mirroring the PyTorch forward (dropout = identity)."""
    B, L, _ = x.shape
    q0 = x @ params["w_reduce"]
    residual = q0 @ params["w_res"]
    q = (q0 @ params["w_qs"]).reshape(B, L, n_head, d_k).transpose(0, 2, 1, 3)
    k = (q0 @ params["w_ks"]).reshape(B, L, n_head, d_k).transpose(0, 2, 1, 3)
    v = (q0 @ params["w_vs"]).reshape(B, L, n_head, d_v).transpose(0, 2, 1, 3)
    attn = jnp.einsum("bhqd,bhkd->bhqk", q / (d_k ** 0.5), k)
    attn = jax.nn.softmax(attn, axis=-1)
    out = jnp.einsum("bhqk,bhkd->bhqd", attn, v)
    out = out.transpose(0, 2, 1, 3).reshape(B, L, n_head * d_v)
    out = out @ params["w_fc"] + residual
    mean = jnp.mean(out, axis=-1, keepdims=True)
    var = jnp.mean((out - mean) ** 2, axis=-1, keepdims=True)
    out = (out - mean) * jax.lax.rsqrt(var + 1e-6)
    return out * params["ln_gamma"] + params["ln_beta"]


if __name__ == "__main__":
    # Keep host-side/reference matmuls in exact f32 so the tight tolerance is
    # meaningful (default TPU matmul precision could otherwise be bf16-ish).
    jax.config.update("jax_default_matmul_precision", "highest")

    # Module hyperparameters (n_head*d_k must equal d_model for the original forward
    # to be well-formed, since residual_transform(q0) expects d_model features).
    n_head, d_k, d_v = 2, 16, 16
    d_model = n_head * d_k          # 32
    d_output = 32
    B, L = 2, 8

    key = jax.random.PRNGKey(0)
    ks = jax.random.split(key, 8)

    def init_w(k, fan_in, fan_out):
        # Deterministic small init, stored as (in, out) for x @ W.
        return (jax.random.normal(k, (fan_in, fan_out), jnp.float32)
                / jnp.sqrt(fan_in))

    params = {
        "w_reduce": init_w(ks[0], d_model, n_head * d_k),
        "w_qs":     init_w(ks[1], n_head * d_k, n_head * d_k),
        "w_ks":     init_w(ks[2], n_head * d_k, n_head * d_k),
        "w_vs":     init_w(ks[3], n_head * d_k, n_head * d_v),
        "w_fc":     init_w(ks[4], n_head * d_v, d_output),
        "w_res":    init_w(ks[5], d_model, d_output),
        "ln_gamma": jnp.ones((1, d_output), jnp.float32),
        "ln_beta":  jnp.zeros((1, d_output), jnp.float32),
    }

    x = jax.random.normal(ks[6], (B, L, d_model), jnp.float32)

    ref = reference_forward(x, params, n_head=n_head, d_k=d_k, d_v=d_v)

    # f32 path: exact softmax reciprocal restored -> tight f32 tolerance (was 2e-3).
    out = multi_head_attention(x, params, n_head=n_head, d_k=d_k, d_v=d_v)
    out = jax.block_until_ready(out)
    assert out.shape == (B, L, d_output)
    assert jnp.allclose(out, ref, atol=1e-4, rtol=1e-4), "f32 kernel mismatch vs reference"

    # bf16 MXU-operand path (native MXU format on v5e/v6e/v7x); softmax/LayerNorm
    # statistics stay f32, so only bf16 operand rounding separates it from the ref.
    out_bf16 = multi_head_attention(x, params, n_head=n_head, d_k=d_k, d_v=d_v,
                                    compute_dtype=jnp.bfloat16)
    out_bf16 = jax.block_until_ready(out_bf16)
    assert jnp.allclose(out_bf16, ref, atol=1e-1, rtol=1e-1), "bf16 kernel outside sanity band"

    print("KERNEL_OK")
</pallas_src>

<mosaic_0001>
module attributes {stable_mosaic.version = 11 : i64} {
  func.func @mha_kernel(%arg0: memref<16x32xf32, #tpu.memory_space<vmem>>, %arg1: memref<32x96xf32, #tpu.memory_space<vmem>>, %arg2: memref<32x32xf32, #tpu.memory_space<vmem>>, %arg3: memref<2x16x32xf32, #tpu.memory_space<vmem>>, %arg4: memref<1x32xf32, #tpu.memory_space<vmem>>, %arg5: memref<1x32xf32, #tpu.memory_space<vmem>>, %arg6: memref<16x32xf32, #tpu.memory_space<vmem>>) attributes {dimension_semantics = [], scalar_prefetch = 0 : i64, scratch_operands = 0 : i64, tpu.core_type = #tpu.core_type<tc>} {
    %c0 = arith.constant 0 : index
    %c0_0 = arith.constant 0 : index
    %0 = vector.load %arg0[%c0, %c0_0] : memref<16x32xf32, #tpu.memory_space<vmem>>, vector<16x32xf32>
    %c0_1 = arith.constant 0 : index
    %c0_2 = arith.constant 0 : index
    %1 = vector.load %arg1[%c0_1, %c0_2] : memref<32x96xf32, #tpu.memory_space<vmem>>, vector<32x96xf32>
    %cst = arith.constant dense<0.000000e+00> : vector<16x96xf32>
    %2 = tpu.matmul %0, %1, %cst {dimension_numbers = #tpu.dot_dimension_numbers<[1], [0], [0], [1], [0, 0, 1, 1], [], []>, precision = #tpu.contract_precision<fp32>} : vector<16x32xf32>, vector<32x96xf32>, vector<16x96xf32> -> vector<16x96xf32>
    %c0_3 = arith.constant 0 : index
    %c0_4 = arith.constant 0 : index
    %3 = vector.load %arg2[%c0_3, %c0_4] : memref<32x32xf32, #tpu.memory_space<vmem>>, vector<32x32xf32>
    %cst_5 = arith.constant dense<0.000000e+00> : vector<16x32xf32>
    %4 = tpu.matmul %0, %3, %cst_5 {dimension_numbers = #tpu.dot_dimension_numbers<[1], [0], [0], [1], [0, 0, 1, 1], [], []>, precision = #tpu.contract_precision<fp32>} : vector<16x32xf32>, vector<32x32xf32>, vector<16x32xf32> -> vector<16x32xf32>
    %5 = vector.extract_strided_slice %2 {offsets = [0, 0], sizes = [16, 32], strides = [1, 1]} : vector<16x96xf32> to vector<16x32xf32>
    %6 = vector.shape_cast %5 : vector<16x32xf32> to vector<2x8x32xf32>
    %7 = vector.extract_strided_slice %2 {offsets = [0, 32], sizes = [16, 32], strides = [1, 1]} : vector<16x96xf32> to vector<16x32xf32>
    %8 = vector.shape_cast %7 : vector<16x32xf32> to vector<2x8x32xf32>
    %9 = vector.extract_strided_slice %2 {offsets = [0, 64], sizes = [16, 32], strides = [1, 1]} : vector<16x96xf32> to vector<16x32xf32>
    %10 = vector.shape_cast %9 : vector<16x32xf32> to vector<2x8x32xf32>
    %11 = vector.extract_strided_slice %6 {offsets = [0, 0, 0], sizes = [2, 8, 16], strides = [1, 1, 1]} : vector<2x8x32xf32> to vector<2x8x16xf32>
    %12 = vector.extract_strided_slice %8 {offsets = [0, 0, 0], sizes = [2, 8, 16], strides = [1, 1, 1]} : vector<2x8x32xf32> to vector<2x8x16xf32>
    %13 = vector.extract_strided_slice %10 {offsets = [0, 0, 0], sizes = [2, 8, 16], strides = [1, 1, 1]} : vector<2x8x32xf32> to vector<2x8x16xf32>
    "tpu.trace_start"() <{level = 10 : i32, message = "bqd,bkd->bqk"}> : () -> ()
    %cst_6 = arith.constant dense<0.000000e+00> : vector<2x8x8xf32>
    %14 = tpu.matmul %11, %12, %cst_6 {dimension_numbers = #tpu.dot_dimension_numbers<[2], [2], [1], [1], [0, 0, 0, 1, 1, 1], [0], [0]>, precision = #tpu.contract_precision<fp32>} : vector<2x8x16xf32>, vector<2x8x16xf32>, vector<2x8x8xf32> -> vector<2x8x8xf32>
    "tpu.trace_stop"() : () -> ()
    %cst_7 = arith.constant dense<0xFF800000> : vector<2x8xf32>
    %15 = vector.multi_reduction <maximumf>, %14, %cst_7 [2] : vector<2x8x8xf32> to vector<2x8xf32>
    %16 = vector.shape_cast %15 : vector<2x8xf32> to vector<2x8x1xf32>
    %17 = vector.broadcast %16 : vector<2x8x1xf32> to vector<2x8x8xf32>
    %18 = arith.subf %14, %17 : vector<2x8x8xf32>
    %19 = math.exp %18 : vector<2x8x8xf32>
    %cst_8 = arith.constant dense<0.000000e+00> : vector<2x8xf32>
    %20 = vector.multi_reduction <add>, %19, %cst_8 [2] : vector<2x8x8xf32> to vector<2x8xf32>
    %21 = vector.shape_cast %20 : vector<2x8xf32> to vector<2x8x1xf32>
    %22 = tpu.reciprocal %21 : vector<2x8x1xf32> -> vector<2x8x1xf32>
    %23 = vector.broadcast %22 : vector<2x8x1xf32> to vector<2x8x8xf32>
    %24 = arith.mulf %19, %23 : vector<2x8x8xf32>
    "tpu.trace_start"() <{level = 10 : i32, message = "bqk,bkd->bqd"}> : () -> ()
    %cst_9 = arith.constant dense<0.000000e+00> : vector<2x8x16xf32>
    %25 = tpu.matmul %24, %13, %cst_9 {dimension_numbers = #tpu.dot_dimension_numbers<[2], [1], [1], [2], [0, 0, 0, 1, 1, 2], [0], [0]>, precision = #tpu.contract_precision<fp32>} : vector<2x8x8xf32>, vector<2x8x16xf32>, vector<2x8x16xf32> -> vector<2x8x16xf32>
    "tpu.trace_stop"() : () -> ()
    %26 = vector.shape_cast %25 : vector<2x8x16xf32> to vector<16x16xf32>
    %c0_10 = arith.constant 0 : index
    %c0_11 = arith.constant 0 : index
    %c0_12 = arith.constant 0 : index
    %27 = vector.load %arg3[%c0_10, %c0_11, %c0_12] : memref<2x16x32xf32, #tpu.memory_space<vmem>>, vector<1x16x32xf32>
    %28 = vector.shape_cast %27 : vector<1x16x32xf32> to vector<16x32xf32>
    %cst_13 = arith.constant dense<0.000000e+00> : vector<16x32xf32>
    %29 = tpu.matmul %26, %28, %cst_13 {dimension_numbers = #tpu.dot_dimension_numbers<[1], [0], [0], [1], [0, 0, 1, 1], [], []>, precision = #tpu.contract_precision<fp32>} : vector<16x16xf32>, vector<16x32xf32>, vector<16x32xf32> -> vector<16x32xf32>
    %30 = arith.addf %4, %29 : vector<16x32xf32>
    %31 = vector.extract_strided_slice %6 {offsets = [0, 0, 16], sizes = [2, 8, 16], strides = [1, 1, 1]} : vector<2x8x32xf32> to vector<2x8x16xf32>
    %32 = vector.extract_strided_slice %8 {offsets = [0, 0, 16], sizes = [2, 8, 16], strides = [1, 1, 1]} : vector<2x8x32xf32> to vector<2x8x16xf32>
    %33 = vector.extract_strided_slice %10 {offsets = [0, 0, 16], sizes = [2, 8, 16], strides = [1, 1, 1]} : vector<2x8x32xf32> to vector<2x8x16xf32>
    "tpu.trace_start"() <{level = 10 : i32, message = "bqd,bkd->bqk"}> : () -> ()
    %cst_14 = arith.constant dense<0.000000e+00> : vector<2x8x8xf32>
    %34 = tpu.matmul %31, %32, %cst_14 {dimension_numbers = #tpu.dot_dimension_numbers<[2], [2], [1], [1], [0, 0, 0, 1, 1, 1], [0], [0]>, precision = #tpu.contract_precision<fp32>} : vector<2x8x16xf32>, vector<2x8x16xf32>, vector<2x8x8xf32> -> vector<2x8x8xf32>
    "tpu.trace_stop"() : () -> ()
    %cst_15 = arith.constant dense<0xFF800000> : vector<2x8xf32>
    %35 = vector.multi_reduction <maximumf>, %34, %cst_15 [2] : vector<2x8x8xf32> to vector<2x8xf32>
    %36 = vector.shape_cast %35 : vector<2x8xf32> to vector<2x8x1xf32>
    %37 = vector.broadcast %36 : vector<2x8x1xf32> to vector<2x8x8xf32>
    %38 = arith.subf %34, %37 : vector<2x8x8xf32>
    %39 = math.exp %38 : vector<2x8x8xf32>
    %cst_16 = arith.constant dense<0.000000e+00> : vector<2x8xf32>
    %40 = vector.multi_reduction <add>, %39, %cst_16 [2] : vector<2x8x8xf32> to vector<2x8xf32>
    %41 = vector.shape_cast %40 : vector<2x8xf32> to vector<2x8x1xf32>
    %42 = tpu.reciprocal %41 : vector<2x8x1xf32> -> vector<2x8x1xf32>
    %43 = vector.broadcast %42 : vector<2x8x1xf32> to vector<2x8x8xf32>
    %44 = arith.mulf %39, %43 : vector<2x8x8xf32>
    "tpu.trace_start"() <{level = 10 : i32, message = "bqk,bkd->bqd"}> : () -> ()
    %cst_17 = arith.constant dense<0.000000e+00> : vector<2x8x16xf32>
    %45 = tpu.matmul %44, %33, %cst_17 {dimension_numbers = #tpu.dot_dimension_numbers<[2], [1], [1], [2], [0, 0, 0, 1, 1, 2], [0], [0]>, precision = #tpu.contract_precision<fp32>} : vector<2x8x8xf32>, vector<2x8x16xf32>, vector<2x8x16xf32> -> vector<2x8x16xf32>
    "tpu.trace_stop"() : () -> ()
    %46 = vector.shape_cast %45 : vector<2x8x16xf32> to vector<16x16xf32>
    %c1 = arith.constant 1 : index
    %c0_18 = arith.constant 0 : index
    %c0_19 = arith.constant 0 : index
    %47 = vector.load %arg3[%c1, %c0_18, %c0_19] : memref<2x16x32xf32, #tpu.memory_space<vmem>>, vector<1x16x32xf32>
    %48 = vector.shape_cast %47 : vector<1x16x32xf32> to vector<16x32xf32>
    %cst_20 = arith.constant dense<0.000000e+00> : vector<16x32xf32>
    %49 = tpu.matmul %46, %48, %cst_20 {dimension_numbers = #tpu.dot_dimension_numbers<[1], [0], [0], [1], [0, 0, 1, 1], [], []>, precision = #tpu.contract_precision<fp32>} : vector<16x16xf32>, vector<16x32xf32>, vector<16x32xf32> -> vector<16x32xf32>
    %50 = arith.addf %30, %49 : vector<16x32xf32>
    %cst_21 = arith.constant dense<0.000000e+00> : vector<16xf32>
    %51 = vector.multi_reduction <add>, %50, %cst_21 [1] : vector<16x32xf32> to vector<16xf32>
    %52 = vector.shape_cast %51 : vector<16xf32> to vector<16x1xf32>
    %cst_22 = arith.constant 3.200000e+01 : f32
    %53 = vector.broadcast %cst_22 : f32 to vector<16x1xf32>
    %54 = arith.divf %52, %53 : vector<16x1xf32>
    %55 = vector.broadcast %54 : vector<16x1xf32> to vector<16x32xf32>
    %56 = arith.subf %50, %55 : vector<16x32xf32>
    %57 = arith.mulf %56, %56 : vector<16x32xf32>
    %cst_23 = arith.constant dense<0.000000e+00> : vector<16xf32>
    %58 = vector.multi_reduction <add>, %57, %cst_23 [1] : vector<16x32xf32> to vector<16xf32>
    %59 = vector.shape_cast %58 : vector<16xf32> to vector<16x1xf32>
    %cst_24 = arith.constant 3.200000e+01 : f32
    %60 = vector.broadcast %cst_24 : f32 to vector<16x1xf32>
    %61 = arith.divf %59, %60 : vector<16x1xf32>
    %62 = vector.broadcast %54 : vector<16x1xf32> to vector<16x32xf32>
    %63 = arith.subf %50, %62 : vector<16x32xf32>
    %cst_25 = arith.constant 9.99999997E-7 : f32
    %64 = vector.broadcast %cst_25 : f32 to vector<16x1xf32>
    %65 = arith.addf %61, %64 : vector<16x1xf32>
    %66 = math.rsqrt %65 : vector<16x1xf32>
    %67 = vector.broadcast %66 : vector<16x1xf32> to vector<16x32xf32>
    %68 = arith.mulf %63, %67 : vector<16x32xf32>
    %c0_26 = arith.constant 0 : index
    %c0_27 = arith.constant 0 : index
    %69 = vector.load %arg4[%c0_26, %c0_27] : memref<1x32xf32, #tpu.memory_space<vmem>>, vector<1x32xf32>
    %70 = vector.broadcast %69 : vector<1x32xf32> to vector<16x32xf32>
    %71 = arith.mulf %68, %70 : vector<16x32xf32>
    %c0_28 = arith.constant 0 : index
    %c0_29 = arith.constant 0 : index
    %72 = vector.load %arg5[%c0_28, %c0_29] : memref<1x32xf32, #tpu.memory_space<vmem>>, vector<1x32xf32>
    %73 = vector.broadcast %72 : vector<1x32xf32> to vector<16x32xf32>
    %74 = arith.addf %71, %73 : vector<16x32xf32>
    %c0_30 = arith.constant 0 : index
    %c0_31 = arith.constant 0 : index
    %75 = vector.load %arg6[%c0_30, %c0_31] : memref<16x32xf32, #tpu.memory_space<vmem>>, vector<16x32xf32>
    tpu.vector_store %arg6[%c0_30, %c0_31], %74 {strides = array<i32>} : memref<16x32xf32, #tpu.memory_space<vmem>>, vector<16x32xf32>,
    return
  }
}

</mosaic_0001>

<llo_original>
// kernel: tpu_custom_call.1
$region0: #{tpu_custom_call.1}
  #allocation0 [shape = 'u32[]', space=smem, size = 0x4, offset = 0x4, fixed_abs, tag = 'smem constant byte address 0x4 - core index']
  #allocation1 [shape = 'u32[144,128]{1,0:T(1,128)}', space=vmem, size = 0x12000, scoped, tag = 'internal scratch']
  %s0 = inlined_call_operand.hbm [shape: f32[16,32], index: 0, kind: input, shape index: {}]
  %s1 = inlined_call_operand.hbm [shape: f32[32,96], index: 1, kind: input, shape index: {}]
  %s2 = inlined_call_operand.hbm [shape: f32[32,32], index: 2, kind: input, shape index: {}]
  %s3 = inlined_call_operand.hbm [shape: f32[2,16,32], index: 3, kind: input, shape index: {}]
  %s4 = inlined_call_operand.vmem [shape: f32[1,32], index: 4, kind: input, shape index: {}]
  %s5 = inlined_call_operand.vmem [shape: f32[1,32], index: 5, kind: input, shape index: {}]
  %s6 = inlined_call_operand.hbm [shape: f32[16,32], index: 6, kind: output, shape index: {}]
  %s7 = sld [smem:[#allocation0]]
  $region50: #{tpu_custom_call.1} parent=0
    _
  %s9 = ssub.s32 1, %s7
  %s10 = scalar_select 0, %s9, %s7
  $region1: #{tpu_custom_call.1} parent=0
    #allocation2 [shape = 'u8[8192]{0}', space=vmem, size = 0x2000, scoped, tag = 'input window, operand 0, single buffered']
    #allocation3 [shape = 's32[1]{0}', space=sflag, size = 0x4, scoped, tag = 'scoped memory for tpu_custom_call.1']
    #allocation4 [shape = 's32[1]{0}', space=sflag, size = 0x4, scoped, tag = 'scoped memory for tpu_custom_call.1']
    #allocation5 [shape = 'u8[16384]{0}', space=vmem, size = 0x4000, scoped, tag = 'input window, operand 1, single buffered']
    #allocation6 [shape = 's32[1]{0}', space=sflag, size = 0x4, scoped, tag = 'scoped memory for tpu_custom_call.1']
    #allocation7 [shape = 'u8[16384]{0}', space=vmem, size = 0x4000, scoped, tag = 'input window, operand 2, single buffered']
    #allocation8 [shape = 'u8[16384]{0}', space=vmem, size = 0x4000, scoped, tag = 'input window, operand 3, single buffered']
    #allocation9 [shape = 's32[1]{0}', space=sflag, size = 0x4, scoped, tag = 'scoped memory for tpu_custom_call.1']
    #allocation10 [shape = 'u8[8192]{0}', space=vmem, size = 0x2000, scoped, tag = 'output window, operand 0, single buffered']
    %11 = vsyncpa [#allocation3], 0
    %12 = vsyncpa [#allocation6], 0
    %13 = vsyncpa [#allocation9], 0
    %14 = vsyncpa [#allocation4], 0
    // Predicated region
    $region2: #{tpu_custom_call.1} parent=1 // pred_check
      _
    $region3: #{tpu_custom_call.1} parent=1 // pred_check_branch
      %16 = sbr.rel (0) target = $region5
    $region4: #{tpu_custom_call.1} parent=1 // pred_region
      %s18 = ssub.s32 256, 256
      %19 = vsyncadd [#allocation3], %s18
      %s20 = sshll.u32 [#allocation2], 4
      %s21 = int_to_ptr.vmem [resolvable:$true] %s20
      %26 = dma.hbm_to_vmem [thread:$0]  %s0, 256, %s21, [#allocation3], 128, 128, 8
    $region5: #{tpu_custom_call.1} parent=1 // pred_fallthru
      _
    // Predicated region
    $region6: #{tpu_custom_call.1} parent=1 // pred_check
      _
    $region7: #{tpu_custom_call.1} parent=1 // pred_check_branch
      %28 = sbr.rel (0) target = $region9
    $region8: #{tpu_custom_call.1} parent=1 // pred_region
      %s30 = ssub.s32 512, 512
      %31 = vsyncadd [#allocation6], %s30
      %s32 = sshll.u32 [#allocation5], 4
      %s33 = int_to_ptr.vmem [resolvable:$true] %s32
      %38 = dma.hbm_to_vmem [thread:$0]  %s1, 512, %s33, [#allocation6], 128, 128, 8
    $region9: #{tpu_custom_call.1} parent=1 // pred_fallthru
      _
    // Predicated region
    $region10: #{tpu_custom_call.1} parent=1 // pred_check
      _
    $region11: #{tpu_custom_call.1} parent=1 // pred_check_branch
      %40 = sbr.rel (0) target = $region13
    $region12: #{tpu_custom_call.1} parent=1 // pred_region
      %s42 = ssub.s32 512, 512
      %43 = vsyncadd [#allocation6], %s42
      %s44 = sshll.u32 [#allocation7], 4
      %s45 = int_to_ptr.vmem [resolvable:$true] %s44
      %50 = dma.hbm_to_vmem [thread:$0]  %s2, 512, %s45, [#allocation6], 128, 128, 8
    $region13: #{tpu_custom_call.1} parent=1 // pred_fallthru
      _
    // Predicated region
    $region14: #{tpu_custom_call.1} parent=1 // pred_check
      _
    $region15: #{tpu_custom_call.1} parent=1 // pred_check_branch
      %52 = sbr.rel (0) target = $region17
    $region16: #{tpu_custom_call.1} parent=1 // pred_region
      %s54 = ssub.s32 512, 512
      %55 = vsyncadd [#allocation9], %s54
      %s56 = sshll.u32 [#allocation8], 4
      %s57 = int_to_ptr.vmem [resolvable:$true] %s56
      %62 = dma.hbm_to_vmem [thread:$0]  %s3, 512, %s57, [#allocation9], 128, 128, 8
    $region17: #{tpu_custom_call.1} parent=1 // pred_fallthru
      _
    // Predicated region
    $region18: #{tpu_custom_call.1} parent=1 // pred_check
      _
    $region19: #{tpu_custom_call.1} parent=1 // pred_check_branch
      %64 = sbr.rel (0) target = $region21
    $region20: #{tpu_custom_call.1} parent=1 // pred_region
      _
    $region21: #{tpu_custom_call.1} parent=1 // pred_fallthru
      _
    // Predicated region
    $region22: #{tpu_custom_call.1} parent=1 // pred_check
      _
    $region23: #{tpu_custom_call.1} parent=1 // pred_check_branch
      %66 = sbr.rel (0) target = $region25
    $region24: #{tpu_custom_call.1} parent=1 // pred_region
      _
    $region25: #{tpu_custom_call.1} parent=1 // pred_fallthru
      _
    // Predicated region
    $region26: #{tpu_custom_call.1} parent=1 // pred_check
      _
    $region27: #{tpu_custom_call.1} parent=1 // pred_check_branch
      %68 = sbr.rel (0) target = $region29
    $region28: #{tpu_custom_call.1} parent=1 // pred_region
      %69 = dma.done [#allocation3], 256
    $region29: #{tpu_custom_call.1} parent=1 // pred_fallthru
      _
    // Predicated region
    $region30: #{tpu_custom_call.1} parent=1 // pred_check
      _
    $region31: #{tpu_custom_call.1} parent=1 // pred_check_branch
      %71 = sbr.rel (0) target = $region33
    $region32: #{tpu_custom_call.1} parent=1 // pred_region
      %72 = dma.done [#allocation6], 512
    $region33: #{tpu_custom_call.1} parent=1 // pred_fallthru
      _
    // Predicated region
    $region34: #{tpu_custom_call.1} parent=1 // pred_check
      _
    $region35: #{tpu_custom_call.1} parent=1 // pred_check_branch
      %74 = sbr.rel (0) target = $region37
    $region36: #{tpu_custom_call.1} parent=1 // pred_region
      %75 = dma.done [#allocation6], 512
    $region37: #{tpu_custom_call.1} parent=1 // pred_fallthru
      _
    // Predicated region
    $region38: #{tpu_custom_call.1} parent=1 // pred_check
      _
    $region39: #{tpu_custom_call.1} parent=1 // pred_check_branch
      %77 = sbr.rel (0) target = $region41
    $region40: #{tpu_custom_call.1} parent=1 // pred_region
      %78 = dma.done [#allocation9], 512
    $region41: #{tpu_custom_call.1} parent=1 // pred_fallthru
      _
    %v79 = vld [vmem:[#allocation2] sm:$0xff]
    %v80 = vld [vmem:[#allocation2 + $0x8] sm:$0xff]
    %v81 = vld [vmem:[#allocation5] sm:$0xff]
    %v82 = vld [vmem:[#allocation5 + $0x8] sm:$0xff]
    %v83 = vld [vmem:[#allocation5 + $0x10] sm:$0xff]
    %v84 = vld [vmem:[#allocation5 + $0x18] sm:$0xff]
    %vm85 = vcmask 261120
    %v87 = vsel %vm85, %v79, 0
    %v90 = vsel %vm85, %v80, 0
    %92 = vmatprep.subr.mxu0 0.0
    %v93 = vand.u32 %v81, 4294901760
    %94 = vmatpush1.msra.mxu0 %v93
    %95 = vmatprep.subr.mxu0 0.0
    %v96 = vand.u32 %v82, 4294901760
    %97 = vmatpush1.msra.mxu0 %v96
    %98 = vmatprep.subr.mxu0 0.0
    %v99 = vand.u32 %v83, 4294901760
    %100 = vmatpush1.msra.mxu0 %v99
    %101 = vmatprep.subr.mxu0 0.0
    %v102 = vand.u32 %v84, 4294901760
    %103 = vmatpush1.msra.mxu0 %v102
    %104 = vmatprep.subr.mxu0 0.0
    %105 = vmatpush1.msra.mxu0 0.0
    %106 = vmatprep.subr.mxu0 0.0
    %107 = vmatpush1.msra.mxu0 0.0
    %108 = vmatprep.subr.mxu0 0.0
    %109 = vmatpush1.msra.mxu0 0.0
    %110 = vmatprep.subr.mxu0 0.0
    %111 = vmatpush1.msra.mxu0 0.0
    %112 = vmatprep.subr.mxu0 0.0
    %113 = vmatpush1.msra.mxu0 0.0
    %114 = vmatprep.subr.mxu0 0.0
    %115 = vmatpush1.msra.mxu0 0.0
    %116 = vmatprep.subr.mxu0 0.0
    %117 = vmatpush1.msra.mxu0 0.0
    %118 = vmatprep.subr.mxu0 0.0
    %119 = vmatpush1.msra.mxu0 0.0
    %120 = vmatprep.subr.mxu0 0.0
    %121 = vmatpush1.msra.mxu0 0.0
    %122 = vmatprep.subr.mxu0 0.0
    %123 = vmatpush1.msra.mxu0 0.0
    %124 = vmatprep.subr.mxu0 0.0
    %125 = vmatpush1.msra.mxu0 0.0
    %126 = vmatprep.subr.mxu0 0.0
    %127 = vmatpush1.msra.mxu0 0.0
    %128 = vmatprep.subr.mxu0 0.0
    %129 = vmatpush1.msra.mxu0 0.0
    %130 = vmatprep.subr.mxu0 0.0
    %131 = vmatpush1.msra.mxu0 0.0
    %132 = vmatprep.subr.mxu0 0.0
    %133 = vmatpush1.msra.mxu0 0.0
    %134 = vmatprep.subr.mxu0 0.0
    %135 = vmatpush1.msra.mxu0 0.0
    %136 = vmatprep.subr.mxu0 0.0
    %137 = vmatpush1.msra.mxu0 0.0
    %138 = vmatprep.subr.mxu0 0.0
    %139 = vmatpush1.msra.mxu0 0.0
    %140 = vmatprep.subr.mxu0 0.0
    %141 = vmatpush1.msra.mxu0 0.0
    %142 = vmatprep.subr.mxu0 0.0
    %143 = vmatpush1.msra.mxu0 0.0
    %144 = vmatprep.subr.mxu0 0.0
    %145 = vmatpush1.msra.mxu0 0.0
    %146 = vmatprep.subr.mxu0 0.0
    %147 = vmatpush1.msra.mxu0 0.0
    %148 = vmatprep.subr.mxu0 0.0
    %149 = vmatpush1.msra.mxu0 0.0
    %150 = vmatprep.subr.mxu0 0.0
    %151 = vmatpush1.msra.mxu0 0.0
    %152 = vmatprep.subr.mxu0 0.0
    %153 = vmatpush1.msra.mxu0 0.0
    %154 = vmatprep.subr.mxu0 0.0
    %155 = vmatpush1.msra.mxu0 0.0
    %156 = vmatprep.subr.mxu0 0.0
    %157 = vmatpush1.msra.mxu0 0.0
    %158 = vmatprep.subr.mxu0 0.0
    %159 = vmatpush1.msra.mxu0 0.0
    %160 = vmatprep.mubr.f32.mxu0 0.0
    %v161 = vand.u32 %v87, 4294901760
    %v162 = vsub.f32 %v87, %v161
    %v163 = vand.u32 %v162, 4294901760
    %v164 = vsub.f32 %v162, %v163
    %v165 = vand.u32 %v164, 4294901760
    %166 = vmatmul.mubr.f32.gmra.mrb[0].mxu0 %v165
    %v167 = vpop.f32.mrb[0].mxu0
    %v168 = vadd.f32 0.0, %v167
    %v169 = vpop.f32.mrb[0].mxu0
    %170 = vmatprep.mubr.f32.mxu0 0.0
    %v171 = vand.u32 %v90, 4294901760
    %v172 = vsub.f32 %v90, %v171
    %v173 = vand.u32 %v172, 4294901760
    %v174 = vsub.f32 %v172, %v173
    %v175 = vand.u32 %v174, 4294901760
    %176 = vmatmul.mubr.f32.gmra.mrb[0].mxu0 %v175
    %v177 = vpop.f32.mrb[0].mxu0
    %v178 = vadd.f32 0.0, %v177
    %v179 = vpop.f32.mrb[0].mxu0
    %180 = vdwg.mxu0
    %181 = vmatprep.subr.mxu0 0.0
    %v182 = vand.u32 %v81, 4294901760
    %v183 = vsub.f32 %v81, %v182
    %v184 = vand.u32 %v183, 4294901760
    %v185 = vsub.f32 %v183, %v184
    %v186 = vand.u32 %v185, 4294901760
    %187 = vmatpush1.msra.mxu0 %v186
    %188 = vmatprep.subr.mxu0 0.0
    %v189 = vand.u32 %v82, 4294901760
    %v190 = vsub.f32 %v82, %v189
    %v191 = vand.u32 %v190, 4294901760
    %v192 = vsub.f32 %v190, %v191
    %v193 = vand.u32 %v192, 4294901760
    %194 = vmatpush1.msra.mxu0 %v193
    %195 = vmatprep.subr.mxu0 0.0
    %v196 = vand.u32 %v83, 4294901760
    %v197 = vsub.f32 %v83, %v196
    %v198 = vand.u32 %v197, 4294901760
    %v199 = vsub.f32 %v197, %v198
    %v200 = vand.u32 %v199, 4294901760
    %201 = vmatpush1.msra.mxu0 %v200
    %202 = vmatprep.subr.mxu0 0.0
    %v203 = vand.u32 %v84, 4294901760
    %v204 = vsub.f32 %v84, %v203
    %v205 = vand.u32 %v204, 4294901760
    %v206 = vsub.f32 %v204, %v205
    %v207 = vand.u32 %v206, 4294901760
    %208 = vmatpush1.msra.mxu0 %v207
    %209 = vmatprep.subr.mxu0 0.0
    %210 = vmatpush1.msra.mxu0 0.0
    %211 = vmatprep.subr.mxu0 0.0
    %212 = vmatpush1.msra.mxu0 0.0
    %213 = vmatprep.subr.mxu0 0.0
    %214 = vmatpush1.msra.mxu0 0.0
    %215 = vmatprep.subr.mxu0 0.0
    %216 = vmatpush1.msra.mxu0 0.0
    %217 = vmatprep.subr.mxu0 0.0
    %218 = vmatpush1.msra.mxu0 0.0
    %219 = vmatprep.subr.mxu0 0.0
    %220 = vmatpush1.msra.mxu0 0.0
    %221 = vmatprep.subr.mxu0 0.0
    %222 = vmatpush1.msra.mxu0 0.0
    %223 = vmatprep.subr.mxu0 0.0
    %224 = vmatpush1.msra.mxu0 0.0
    %225 = vmatprep.subr.mxu0 0.0
    %226 = vmatpush1.msra.mxu0 0.0
    %227 = vmatprep.subr.mxu0 0.0
    %228 = vmatpush1.msra.mxu0 0.0
    %229 = vmatprep.subr.mxu0 0.0
    %230 = vmatpush1.msra.mxu0 0.0
    %231 = vmatprep.subr.mxu0 0.0
    %232 = vmatpush1.msra.mxu0 0.0
    %233 = vmatprep.subr.mxu0 0.0
    %234 = vmatpush1.msra.mxu0 0.0
    %235 = vmatprep.subr.mxu0 0.0
    %236 = vmatpush1.msra.mxu0 0.0
    %237 = vmatprep.subr.mxu0 0.0
    %238 = vmatpush1.msra.mxu0 0.0
    %239 = vmatprep.subr.mxu0 0.0
    %240 = vmatpush1.msra.mxu0 0.0
    %241 = vmatprep.subr.mxu0 0.0
    %242 = vmatpush1.msra.mxu0 0.0
    %243 = vmatprep.subr.mxu0 0.0
    %244 = vmatpush1.msra.mxu0 0.0
    %245 = vmatprep.subr.mxu0 0.0
    %246 = vmatpush1.msra.mxu0 0.0
    %247 = vmatprep.subr.mxu0 0.0
    %248 = vmatpush1.msra.mxu0 0.0
    %249 = vmatprep.subr.mxu0 0.0
    %250 = vmatpush1.msra.mxu0 0.0
    %251 = vmatprep.subr.mxu0 0.0
    %252 = vmatpush1.msra.mxu0 0.0
    %253 = vmatprep.subr.mxu0 0.0
    %254 = vmatpush1.msra.mxu0 0.0
    %255 = vmatprep.subr.mxu0 0.0
    %256 = vmatpush1.msra.mxu0 0.0
    %257 = vmatprep.subr.mxu0 0.0
    %258 = vmatpush1.msra.mxu0 0.0
    %259 = vmatprep.subr.mxu0 0.0
    %260 = vmatpush1.msra.mxu0 0.0
    %261 = vmatprep.subr.mxu0 0.0
    %262 = vmatpush1.msra.mxu0 0.0
    %263 = vmatprep.subr.mxu0 0.0
    %264 = vmatpush1.msra.mxu0 0.0
    %265 = vmatprep.mubr.f32.mxu0 0.0
    %v266 = vand.u32 %v87, 4294901760
    %267 = vmatmul.mubr.f32.gmra.mrb[0].mxu0 %v266
    %v268 = vpop.f32.mrb[0].mxu0
    %v269 = vadd.f32 %v168, %v268
    %v270 = vpop.f32.mrb[0].mxu0
    %271 = vmatprep.mubr.f32.mxu0 0.0
    %v272 = vand.u32 %v90, 4294901760
    %273 = vmatmul.mubr.f32.gmra.mrb[0].mxu0 %v272
    %v274 = vpop.f32.mrb[0].mxu0
    %v275 = vadd.f32 %v178, %v274
    %v276 = vpop.f32.mrb[0].mxu0
    %277 = vdwg.mxu0
    %278 = vmatprep.subr.mxu0 0.0
    %v279 = vand.u32 %v81, 4294901760
    %v280 = vsub.f32 %v81, %v279
    %281 = vmatpush1.msra.mxu0 %v280
    %282 = vmatprep.subr.mxu0 0.0
    %v283 = vand.u32 %v82, 4294901760
    %v284 = vsub.f32 %v82, %v283
    %285 = vmatpush1.msra.mxu0 %v284
    %286 = vmatprep.subr.mxu0 0.0
    %v287 = vand.u32 %v83, 4294901760
    %v288 = vsub.f32 %v83, %v287
    %289 = vmatpush1.msra.mxu0 %v288
    %290 = vmatprep.subr.mxu0 0.0
    %v291 = vand.u32 %v84, 4294901760
    %v292 = vsub.f32 %v84, %v291
    %293 = vmatpush1.msra.mxu0 %v292
    %294 = vmatprep.subr.mxu0 0.0
    %295 = vmatpush1.msra.mxu0 0.0
    %296 = vmatprep.subr.mxu0 0.0
    %297 = vmatpush1.msra.mxu0 0.0
    %298 = vmatprep.subr.mxu0 0.0
    %299 = vmatpush1.msra.mxu0 0.0
    %300 = vmatprep.subr.mxu0 0.0
    %301 = vmatpush1.msra.mxu0 0.0
    %302 = vmatprep.subr.mxu0 0.0
    %303 = vmatpush1.msra.mxu0 0.0
    %304 = vmatprep.subr.mxu0 0.0
    %305 = vmatpush1.msra.mxu0 0.0
    %306 = vmatprep.subr.mxu0 0.0
    %307 = vmatpush1.msra.mxu0 0.0
    %308 = vmatprep.subr.mxu0 0.0
    %309 = vmatpush1.msra.mxu0 0.0
    %310 = vmatprep.subr.mxu0 0.0
    %311 = vmatpush1.msra.mxu0 0.0
    %312 = vmatprep.subr.mxu0 0.0
    %313 = vmatpush1.msra.mxu0 0.0
    %314 = vmatprep.subr.mxu0 0.0
    %315 = vmatpush1.msra.mxu0 0.0
    %316 = vmatprep.subr.mxu0 0.0
    %317 = vmatpush1.msra.mxu0 0.0
    %318 = vmatprep.subr.mxu0 0.0
    %319 = vmatpush1.msra.mxu0 0.0
    %320 = vmatprep.subr.mxu0 0.0
    %321 = vmatpush1.msra.mxu0 0.0
    %322 = vmatprep.subr.mxu0 0.0
    %323 = vmatpush1.msra.mxu0 0.0
    %324 = vmatprep.subr.mxu0 0.0
    %325 = vmatpush1.msra.mxu0 0.0
    %326 = vmatprep.subr.mxu0 0.0
    %327 = vmatpush1.msra.mxu0 0.0
    %328 = vmatprep.subr.mxu0 0.0
    %329 = vmatpush1.msra.mxu0 0.0
    %330 = vmatprep.subr.mxu0 0.0
    %331 = vmatpush1.msra.mxu0 0.0
    %332 = vmatprep.subr.mxu0 0.0
    %333 = vmatpush1.msra.mxu0 0.0
    %334 = vmatprep.subr.mxu0 0.0
    %335 = vmatpush1.msra.mxu0 0.0
    %336 = vmatprep.subr.mxu0 0.0
    %337 = vmatpush1.msra.mxu0 0.0
    %338 = vmatprep.subr.mxu0 0.0
    %339 = vmatpush1.msra.mxu0 0.0
    %340 = vmatprep.subr.mxu0 0.0
    %341 = vmatpush1.msra.mxu0 0.0
    %342 = vmatprep.subr.mxu0 0.0
    %343 = vmatpush1.msra.mxu0 0.0
    %344 = vmatprep.subr.mxu0 0.0
    %345 = vmatpush1.msra.mxu0 0.0
    %346 = vmatprep.subr.mxu0 0.0
    %347 = vmatpush1.msra.mxu0 0.0
    %348 = vmatprep.subr.mxu0 0.0
    %349 = vmatpush1.msra.mxu0 0.0
    %350 = vmatprep.mubr.f32.mxu0 0.0
    %v351 = vand.u32 %v87, 4294901760
    %v352 = vsub.f32 %v87, %v351
    %353 = vmatmul.mubr.f32.gmra.mrb[0].mxu0 %v352
    %v354 = vpop.f32.mrb[0].mxu0
    %v355 = vadd.f32 %v269, %v354
    %v356 = vpop.f32.mrb[0].mxu0
    %357 = vmatprep.mubr.f32.mxu0 0.0
    %v358 = vand.u32 %v90, 4294901760
    %v359 = vsub.f32 %v90, %v358
    %360 = vmatmul.mubr.f32.gmra.mrb[0].mxu0 %v359
    %v361 = vpop.f32.mrb[0].mxu0
    %v362 = vadd.f32 %v275, %v361
    %v363 = vpop.f32.mrb[0].mxu0
    %364 = vdwg.mxu0
    %365 = vmatprep.subr.mxu0 0.0
    %v366 = vand.u32 %v81, 4294901760
    %367 = vmatpush1.msra.mxu0 %v366
    %368 = vmatprep.subr.mxu0 0.0
    %v369 = vand.u32 %v82, 4294901760
    %370 = vmatpush1.msra.mxu0 %v369
    %371 = vmatprep.subr.mxu0 0.0
    %v372 = vand.u32 %v83, 4294901760
    %373 = vmatpush1.msra.mxu0 %v372
    %374 = vmatprep.subr.mxu0 0.0
    %v375 = vand.u32 %v84, 4294901760
    %376 = vmatpush1.msra.mxu0 %v375
    %377 = vmatprep.subr.mxu0 0.0
    %378 = vmatpush1.msra.mxu0 0.0
    %379 = vmatprep.subr.mxu0 0.0
    %380 = vmatpush1.msra.mxu0 0.0
    %381 = vmatprep.subr.mxu0 0.0
    %382 = vmatpush1.msra.mxu0 0.0
    %383 = vmatprep.subr.mxu0 0.0
    %384 = vmatpush1.msra.mxu0 0.0
    %385 = vmatprep.subr.mxu0 0.0
    %386 = vmatpush1.msra.mxu0 0.0
    %387 = vmatprep.subr.mxu0 0.0
    %388 = vmatpush1.msra.mxu0 0.0
    %389 = vmatprep.subr.mxu0 0.0
    %390 = vmatpush1.msra.mxu0 0.0
    %391 = vmatprep.subr.mxu0 0.0
    %392 = vmatpush1.msra.mxu0 0.0
    %393 = vmatprep.subr.mxu0 0.0
    %394 = vmatpush1.msra.mxu0 0.0
    %395 = vmatprep.subr.mxu0 0.0
    %396 = vmatpush1.msra.mxu0 0.0
    %397 = vmatprep.subr.mxu0 0.0
    %398 = vmatpush1.msra.mxu0 0.0
    %399 = vmatprep.subr.mxu0 0.0
    %400 = vmatpush1.msra.mxu0 0.0
    %401 = vmatprep.subr.mxu0 0.0
    %402 = vmatpush1.msra.mxu0 0.0
    %403 = vmatprep.subr.mxu0 0.0
    %404 = vmatpush1.msra.mxu0 0.0
    %405 = vmatprep.subr.mxu0 0.0
    %406 = vmatpush1.msra.mxu0 0.0
    %407 = vmatprep.subr.mxu0 0.0
    %408 = vmatpush1.msra.mxu0 0.0
    %409 = vmatprep.subr.mxu0 0.0
    %410 = vmatpush1.msra.mxu0 0.0
    %411 = vmatprep.subr.mxu0 0.0
    %412 = vmatpush1.msra.mxu0 0.0
    %413 = vmatprep.subr.mxu0 0.0
    %414 = vmatpush1.msra.mxu0 0.0
    %415 = vmatprep.subr.mxu0 0.0
    %416 = vmatpush1.msra.mxu0 0.0
    %417 = vmatprep.subr.mxu0 0.0
    %418 = vmatpush1.msra.mxu0 0.0
    %419 = vmatprep.subr.mxu0 0.0
    %420 = vmatpush1.msra.mxu0 0.0
    %421 = vmatprep.subr.mxu0 0.0
    %422 = vmatpush1.msra.mxu0 0.0
    %423 = vmatprep.subr.mxu0 0.0
    %424 = vmatpush1.msra.mxu0 0.0
    %425 = vmatprep.subr.mxu0 0.0
    %426 = vmatpush1.msra.mxu0 0.0
    %427 = vmatprep.subr.mxu0 0.0
    %428 = vmatpush1.msra.mxu0 0.0
    %429 = vmatprep.subr.mxu0 0.0
    %430 = vmatpush1.msra.mxu0 0.0
    %431 = vmatprep.subr.mxu0 0.0
    %432 = vmatpush1.msra.mxu0 0.0
    %433 = vmatprep.mubr.f32.mxu0 0.0
    %v434 = vand.u32 %v87, 4294901760
    %v435 = vsub.f32 %v87, %v434
    %v436 = vand.u32 %v435, 4294901760
    %437 = vmatmul.mubr.f32.gmra.mrb[0].mxu0 %v436
    %v438 = vpop.f32.mrb[0].mxu0
    %v439 = vadd.f32 %v355, %v438
    %v440 = vpop.f32.mrb[0].mxu0
    %441 = vmatprep.mubr.f32.mxu0 0.0
    %v442 = vand.u32 %v90, 4294901760
    %v443 = vsub.f32 %v90, %v442
    %v444 = vand.u32 %v443, 4294901760
    %445 = vmatmul.mubr.f32.gmra.mrb[0].mxu0 %v444
    %v446 = vpop.f32.mrb[0].mxu0
    %v447 = vadd.f32 %v362, %v446
    %v448 = vpop.f32.mrb[0].mxu0
    %449 = vdwg.mxu0
    %450 = vmatprep.subr.mxu0 0.0
    %v451 = vand.u32 %v81, 4294901760
    %v452 = vsub.f32 %v81, %v451
    %v453 = vand.u32 %v452, 4294901760
    %454 = vmatpush1.msra.mxu0 %v453
    %455 = vmatprep.subr.mxu0 0.0
    %v456 = vand.u32 %v82, 4294901760
    %v457 = vsub.f32 %v82, %v456
    %v458 = vand.u32 %v457, 4294901760
    %459 = vmatpush1.msra.mxu0 %v458
    %460 = vmatprep.subr.mxu0 0.0
    %v461 = vand.u32 %v83, 4294901760
    %v462 = vsub.f32 %v83, %v461
    %v463 = vand.u32 %v462, 4294901760
    %464 = vmatpush1.msra.mxu0 %v463
    %465 = vmatprep.subr.mxu0 0.0
    %v466 = vand.u32 %v84, 4294901760
    %v467 = vsub.f32 %v84, %v466
    %v468 = vand.u32 %v467, 4294901760
    %469 = vmatpush1.msra.mxu0 %v468
    %470 = vmatprep.subr.mxu0 0.0
    %471 = vmatpush1.msra.mxu0 0.0
    %472 = vmatprep.subr.mxu0 0.0
    %473 = vmatpush1.msra.mxu0 0.0
    %474 = vmatprep.subr.mxu0 0.0
    %475 = vmatpush1.msra.mxu0 0.0
    %476 = vmatprep.subr.mxu0 0.0
    %477 = vmatpush1.msra.mxu0 0.0
    %478 = vmatprep.subr.mxu0 0.0
    %479 = vmatpush1.msra.mxu0 0.0
    %480 = vmatprep.subr.mxu0 0.0
    %481 = vmatpush1.msra.mxu0 0.0
    %482 = vmatprep.subr.mxu0 0.0
    %483 = vmatpush1.msra.mxu0 0.0
    %484 = vmatprep.subr.mxu0 0.0
    %485 = vmatpush1.msra.mxu0 0.0
    %486 = vmatprep.subr.mxu0 0.0
    %487 = vmatpush1.msra.mxu0 0.0
    %488 = vmatprep.subr.mxu0 0.0
    %489 = vmatpush1.msra.mxu0 0.0
    %490 = vmatprep.subr.mxu0 0.0
    %491 = vmatpush1.msra.mxu0 0.0
    %492 = vmatprep.subr.mxu0 0.0
    %493 = vmatpush1.msra.mxu0 0.0
    %494 = vmatprep.subr.mxu0 0.0
    %495 = vmatpush1.msra.mxu0 0.0
    %496 = vmatprep.subr.mxu0 0.0
    %497 = vmatpush1.msra.mxu0 0.0
    %498 = vmatprep.subr.mxu0 0.0
    %499 = vmatpush1.msra.mxu0 0.0
    %500 = vmatprep.subr.mxu0 0.0
    %501 = vmatpush1.msra.mxu0 0.0
    %502 = vmatprep.subr.mxu0 0.0
    %503 = vmatpush1.msra.mxu0 0.0
    %504 = vmatprep.subr.mxu0 0.0
    %505 = vmatpush1.msra.mxu0 0.0
    %506 = vmatprep.subr.mxu0 0.0
    %507 = vmatpush1.msra.mxu0 0.0
    %508 = vmatprep.subr.mxu0 0.0
    %509 = vmatpush1.msra.mxu0 0.0
    %510 = vmatprep.subr.mxu0 0.0
    %511 = vmatpush1.msra.mxu0 0.0
    %512 = vmatprep.subr.mxu0 0.0
    %513 = vmatpush1.msra.mxu0 0.0
    %514 = vmatprep.subr.mxu0 0.0
    %515 = vmatpush1.msra.mxu0 0.0
    %516 = vmatprep.subr.mxu0 0.0
    %517 = vmatpush1.msra.mxu0 0.0
    %518 = vmatprep.subr.mxu0 0.0
    %519 = vmatpush1.msra.mxu0 0.0
    %520 = vmatprep.subr.mxu0 0.0
    %521 = vmatpush1.msra.mxu0 0.0
    %522 = vmatprep.subr.mxu0 0.0
    %523 = vmatpush1.msra.mxu0 0.0
    %524 = vmatprep.subr.mxu0 0.0
    %525 = vmatpush1.msra.mxu0 0.0
    %526 = vmatprep.mubr.f32.mxu0 0.0
    %v527 = vand.u32 %v87, 4294901760
    %528 = vmatmul.mubr.f32.gmra.mrb[0].mxu0 %v527
    %v529 = vpop.f32.mrb[0].mxu0
    %v530 = vadd.f32 %v439, %v529
    %v531 = vpop.f32.mrb[0].mxu0
    %532 = vmatprep.mubr.f32.mxu0 0.0
    %v533 = vand.u32 %v90, 4294901760
    %534 = vmatmul.mubr.f32.gmra.mrb[0].mxu0 %v533
    %v535 = vpop.f32.mrb[0].mxu0
    %v536 = vadd.f32 %v447, %v535
    %v537 = vpop.f32.mrb[0].mxu0
    %538 = vdwg.mxu0
    %539 = vmatprep.subr.mxu0 0.0
    %v540 = vand.u32 %v81, 4294901760
    %541 = vmatpush1.msra.mxu0 %v540
    %542 = vmatprep.subr.mxu0 0.0
    %v543 = vand.u32 %v82, 4294901760
    %544 = vmatpush1.msra.mxu0 %v543
    %545 = vmatprep.subr.mxu0 0.0
    %v546 = vand.u32 %v83, 4294901760
    %547 = vmatpush1.msra.mxu0 %v546
    %548 = vmatprep.subr.mxu0 0.0
    %v549 = vand.u32 %v84, 4294901760
    %550 = vmatpush1.msra.mxu0 %v549
    %551 = vmatprep.subr.mxu0 0.0
    %552 = vmatpush1.msra.mxu0 0.0
    %553 = vmatprep.subr.mxu0 0.0
    %554 = vmatpush1.msra.mxu0 0.0
    %555 = vmatprep.subr.mxu0 0.0
    %556 = vmatpush1.msra.mxu0 0.0
    %557 = vmatprep.subr.mxu0 0.0
    %558 = vmatpush1.msra.mxu0 0.0
    %559 = vmatprep.subr.mxu0 0.0
    %560 = vmatpush1.msra.mxu0 0.0
    %561 = vmatprep.subr.mxu0 0.0
    %562 = vmatpush1.msra.mxu0 0.0
    %563 = vmatprep.subr.mxu0 0.0
    %564 = vmatpush1.msra.mxu0 0.0
    %565 = vmatprep.subr.mxu0 0.0
    %566 = vmatpush1.msra.mxu0 0.0
    %567 = vmatprep.subr.mxu0 0.0
    %568 = vmatpush1.msra.mxu0 0.0
    %569 = vmatprep.subr.mxu0 0.0
    %570 = vmatpush1.msra.mxu0 0.0
    %571 = vmatprep.subr.mxu0 0.0
    %572 = vmatpush1.msra.mxu0 0.0
    %573 = vmatprep.subr.mxu0 0.0
    %574 = vmatpush1.msra.mxu0 0.0
    %575 = vmatprep.subr.mxu0 0.0
    %576 = vmatpush1.msra.mxu0 0.0
    %577 = vmatprep.subr.mxu0 0.0
    %578 = vmatpush1.msra.mxu0 0.0
    %579 = vmatprep.subr.mxu0 0.0
    %580 = vmatpush1.msra.mxu0 0.0
    %581 = vmatprep.subr.mxu0 0.0
    %582 = vmatpush1.msra.mxu0 0.0
    %583 = vmatprep.subr.mxu0 0.0
    %584 = vmatpush1.msra.mxu0 0.0
    %585 = vmatprep.subr.mxu0 0.0
    %586 = vmatpush1.msra.mxu0 0.0
    %587 = vmatprep.subr.mxu0 0.0
    %588 = vmatpush1.msra.mxu0 0.0
    %589 = vmatprep.subr.mxu0 0.0
    %590 = vmatpush1.msra.mxu0 0.0
    %591 = vmatprep.subr.mxu0 0.0
    %592 = vmatpush1.msra.mxu0 0.0
    %593 = vmatprep.subr.mxu0 0.0
    %594 = vmatpush1.msra.mxu0 0.0
    %595 = vmatprep.subr.mxu0 0.0
    %596 = vmatpush1.msra.mxu0 0.0
    %597 = vmatprep.subr.mxu0 0.0
    %598 = vmatpush1.msra.mxu0 0.0
    %599 = vmatprep.subr.mxu0 0.0
    %600 = vmatpush1.msra.mxu0 0.0
    %601 = vmatprep.subr.mxu0 0.0
    %602 = vmatpush1.msra.mxu0 0.0
    %603 = vmatprep.subr.mxu0 0.0
    %604 = vmatpush1.msra.mxu0 0.0
    %605 = vmatprep.subr.mxu0 0.0
    %606 = vmatpush1.msra.mxu0 0.0
    %607 = vmatprep.mubr.f32.mxu0 0.0
    %v608 = vand.u32 %v87, 4294901760
    %609 = vmatmul.mubr.f32.gmra.mrb[0].mxu0 %v608
    %v610 = vpop.f32.mrb[0].mxu0
    %v611 = vadd.f32 %v530, %v610
    %v612 = vpop.f32.mrb[0].mxu0
    %613 = vmatprep.mubr.f32.mxu0 0.0
    %v614 = vand.u32 %v90, 4294901760
    %615 = vmatmul.mubr.f32.gmra.mrb[0].mxu0 %v614
    %v616 = vpop.f32.mrb[0].mxu0
    %v617 = vadd.f32 %v536, %v616
    %v618 = vpop.f32.mrb[0].mxu0
    %619 = vdwg.mxu0
    %v620 = vld [vmem:[#allocation7] sm:$0xff]
    %v621 = vld [vmem:[#allocation7 + $0x8] sm:$0xff]
    %v622 = vld [vmem:[#allocation7 + $0x10] sm:$0xff]
    %v623 = vld [vmem:[#allocation7 + $0x18] sm:$0xff]
    %625 = vrot.lane.b32.xlu0 %v611, 96
    %v626 = vpop.permute.xlu0 %625
    %vm627 = vcmask 130048
    %v628 = vsel %vm627, %v611, 0
    %v630 = vsel %vm627, %v626, 0
    %632 = vmatprep.subr.mxu0 0.0
    %v633 = vand.u32 %v630, 4294901760
    %634 = vmatpush1.xpose.msra.mxu0 %v633
    %635 = vmatprep.subr.mxu0 0.0
    %636 = vmatpush1.xpose.msra.mxu0 0.0
    %637 = vmatprep.subr.mxu0 0.0
    %638 = vmatpush1.xpose.msra.mxu0 0.0
    %639 = vmatprep.subr.mxu0 0.0
    %640 = vmatpush1.xpose.msra.mxu0 0.0
    %641 = vmatprep.subr.mxu0 0.0
    %642 = vmatpush1.xpose.msra.mxu0 0.0
    %643 = vmatprep.subr.mxu0 0.0
    %644 = vmatpush1.xpose.msra.mxu0 0.0
    %645 = vmatprep.subr.mxu0 0.0
    %646 = vmatpush1.xpose.msra.mxu0 0.0
    %647 = vmatprep.subr.mxu0 0.0
    %648 = vmatpush1.xpose.msra.mxu0 0.0
    %649 = vmatprep.subr.mxu0 0.0
    %650 = vmatpush1.xpose.msra.mxu0 0.0
    %651 = vmatprep.subr.mxu0 0.0
    %652 = vmatpush1.xpose.msra.mxu0 0.0
    %653 = vmatprep.subr.mxu0 0.0
    %654 = vmatpush1.xpose.msra.mxu0 0.0
    %655 = vmatprep.subr.mxu0 0.0
    %656 = vmatpush1.xpose.msra.mxu0 0.0
    %657 = vmatprep.subr.mxu0 0.0
    %658 = vmatpush1.xpose.msra.mxu0 0.0
    %659 = vmatprep.subr.mxu0 0.0
    %660 = vmatpush1.xpose.msra.mxu0 0.0
    %661 = vmatprep.subr.mxu0 0.0
    %662 = vmatpush1.xpose.msra.mxu0 0.0
    %663 = vmatprep.subr.mxu0 0.0
    %664 = vmatpush1.xpose.msra.mxu0 0.0
    %665 = vmatprep.subr.mxu0 0.0
    %666 = vmatpush1.xpose.msra.mxu0 0.0
    %667 = vmatprep.subr.mxu0 0.0
    %668 = vmatpush1.xpose.msra.mxu0 0.0
    %669 = vmatprep.subr.mxu0 0.0
    %670 = vmatpush1.xpose.msra.mxu0 0.0
    %671 = vmatprep.subr.mxu0 0.0
    %672 = vmatpush1.xpose.msra.mxu0 0.0
    %673 = vmatprep.subr.mxu0 0.0
    %674 = vmatpush1.xpose.msra.mxu0 0.0
    %675 = vmatprep.subr.mxu0 0.0
    %676 = vmatpush1.xpose.msra.mxu0 0.0
    %677 = vmatprep.subr.mxu0 0.0
    %678 = vmatpush1.xpose.msra.mxu0 0.0
    %679 = vmatprep.subr.mxu0 0.0
    %680 = vmatpush1.xpose.msra.mxu0 0.0
    %681 = vmatprep.subr.mxu0 0.0
    %682 = vmatpush1.xpose.msra.mxu0 0.0
    %683 = vmatprep.subr.mxu0 0.0
    %684 = vmatpush1.xpose.msra.mxu0 0.0
    %685 = vmatprep.subr.mxu0 0.0
    %686 = vmatpush1.xpose.msra.mxu0 0.0
    %687 = vmatprep.subr.mxu0 0.0
    %688 = vmatpush1.xpose.msra.mxu0 0.0
    %689 = vmatprep.subr.mxu0 0.0
    %690 = vmatpush1.xpose.msra.mxu0 0.0
    %691 = vmatprep.subr.mxu0 0.0
    %692 = vmatpush1.xpose.msra.mxu0 0.0
    %693 = vmatprep.subr.mxu0 0.0
    %694 = vmatpush1.xpose.msra.mxu0 0.0
    %695 = vmatprep.subr.mxu0 0.0
    %696 = vmatpush1.xpose.msra.mxu0 0.0
    %697 = vmatprep.mubr.f32.mxu0 0.0
    %v698 = vand.u32 %v628, 4294901760
    %v699 = vsub.f32 %v628, %v698
    %v700 = vand.u32 %v699, 4294901760
    %v701 = vsub.f32 %v699, %v700
    %v702 = vand.u32 %v701, 4294901760
    %703 = vmatmul.mubr.f32.gmra.mrb[0].mxu0 %v702
    %v704 = vpop.f32.mrb[0].mxu0
    %v705 = vadd.f32 0.0, %v704
    %v706 = vpop.f32.mrb[0].mxu0
    %707 = vdwg.mxu0
    %708 = vmatprep.subr.mxu0 0.0
    %v709 = vand.u32 %v630, 4294901760
    %v710 = vsub.f32 %v630, %v709
    %v711 = vand.u32 %v710, 4294901760
    %v712 = vsub.f32 %v710, %v711
    %v713 = vand.u32 %v712, 4294901760
    %714 = vmatpush1.xpose.msra.mxu0 %v713
    %715 = vmatprep.subr.mxu0 0.0
    %716 = vmatpush1.xpose.msra.mxu0 0.0
    %717 = vmatprep.subr.mxu0 0.0
    %718 = vmatpush1.xpose.msra.mxu0 0.0
    %719 = vmatprep.subr.mxu0 0.0
    %720 = vmatpush1.xpose.msra.mxu0 0.0
    %721 = vmatprep.subr.mxu0 0.0
    %722 = vmatpush1.xpose.msra.mxu0 0.0
    %723 = vmatprep.subr.mxu0 0.0
    %724 = vmatpush1.xpose.msra.mxu0 0.0
    %725 = vmatprep.subr.mxu0 0.0
    %726 = vmatpush1.xpose.msra.mxu0 0.0
    %727 = vmatprep.subr.mxu0 0.0
    %728 = vmatpush1.xpose.msra.mxu0 0.0
    %729 = vmatprep.subr.mxu0 0.0
    %730 = vmatpush1.xpose.msra.mxu0 0.0
    %731 = vmatprep.subr.mxu0 0.0
    %732 = vmatpush1.xpose.msra.mxu0 0.0
    %733 = vmatprep.subr.mxu0 0.0
    %734 = vmatpush1.xpose.msra.mxu0 0.0
    %735 = vmatprep.subr.mxu0 0.0
    %736 = vmatpush1.xpose.msra.mxu0 0.0
    %737 = vmatprep.subr.mxu0 0.0
    %738 = vmatpush1.xpose.msra.mxu0 0.0
    %739 = vmatprep.subr.mxu0 0.0
    %740 = vmatpush1.xpose.msra.mxu0 0.0
    %741 = vmatprep.subr.mxu0 0.0
    %742 = vmatpush1.xpose.msra.mxu0 0.0
    %743 = vmatprep.subr.mxu0 0.0
    %744 = vmatpush1.xpose.msra.mxu0 0.0
    %745 = vmatprep.subr.mxu0 0.0
    %746 = vmatpush1.xpose.msra.mxu0 0.0
    %747 = vmatprep.subr.mxu0 0.0
    %748 = vmatpush1.xpose.msra.mxu0 0.0
    %749 = vmatprep.subr.mxu0 0.0
    %750 = vmatpush1.xpose.msra.mxu0 0.0
    %751 = vmatprep.subr.mxu0 0.0
    %752 = vmatpush1.xpose.msra.mxu0 0.0
    %753 = vmatprep.subr.mxu0 0.0
    %754 = vmatpush1.xpose.msra.mxu0 0.0
    %755 = vmatprep.subr.mxu0 0.0
    %756 = vmatpush1.xpose.msra.mxu0 0.0
    %757 = vmatprep.subr.mxu0 0.0
    %758 = vmatpush1.xpose.msra.mxu0 0.0
    %759 = vmatprep.subr.mxu0 0.0
    %760 = vmatpush1.xpose.msra.mxu0 0.0
    %761 = vmatprep.subr.mxu0 0.0
    %762 = vmatpush1.xpose.msra.mxu0 0.0
    %763 = vmatprep.subr.mxu0 0.0
    %764 = vmatpush1.xpose.msra.mxu0 0.0
    %765 = vmatprep.subr.mxu0 0.0
    %766 = vmatpush1.xpose.msra.mxu0 0.0
    %767 = vmatprep.subr.mxu0 0.0
    %768 = vmatpush1.xpose.msra.mxu0 0.0
    %769 = vmatprep.subr.mxu0 0.0
    %770 = vmatpush1.xpose.msra.mxu0 0.0
    %771 = vmatprep.subr.mxu0 0.0
    %772 = vmatpush1.xpose.msra.mxu0 0.0
    %773 = vmatprep.subr.mxu0 0.0
    %774 = vmatpush1.xpose.msra.mxu0 0.0
    %775 = vmatprep.subr.mxu0 0.0
    %776 = vmatpush1.xpose.msra.mxu0 0.0
    %777 = vmatprep.mubr.f32.mxu0 0.0
    %v778 = vand.u32 %v628, 4294901760
    %779 = vmatmul.mubr.f32.gmra.mrb[0].mxu0 %v778
    %v780 = vpop.f32.mrb[0].mxu0
    %v781 = vadd.f32 %v705, %v780
    %v782 = vpop.f32.mrb[0].mxu0
    %783 = vdwg.mxu0
    %784 = vmatprep.subr.mxu0 0.0
    %v785 = vand.u32 %v630, 4294901760
    %v786 = vsub.f32 %v630, %v785
    %787 = vmatpush1.xpose.msra.mxu0 %v786
    %788 = vmatprep.subr.mxu0 0.0
    %789 = vmatpush1.xpose.msra.mxu0 0.0
    %790 = vmatprep.subr.mxu0 0.0
    %791 = vmatpush1.xpose.msra.mxu0 0.0
    %792 = vmatprep.subr.mxu0 0.0
    %793 = vmatpush1.xpose.msra.mxu0 0.0
    %794 = vmatprep.subr.mxu0 0.0
    %795 = vmatpush1.xpose.msra.mxu0 0.0
    %796 = vmatprep.subr.mxu0 0.0
    %797 = vmatpush1.xpose.msra.mxu0 0.0
    %798 = vmatprep.subr.mxu0 0.0
    %799 = vmatpush1.xpose.msra.mxu0 0.0
    %800 = vmatprep.subr.mxu0 0.0
    %801 = vmatpush1.xpose.msra.mxu0 0.0
    %802 = vmatprep.subr.mxu0 0.0
    %803 = vmatpush1.xpose.msra.mxu0 0.0
    %804 = vmatprep.subr.mxu0 0.0
    %805 = vmatpush1.xpose.msra.mxu0 0.0
    %806 = vmatprep.subr.mxu0 0.0
    %807 = vmatpush1.xpose.msra.mxu0 0.0
    %808 = vmatprep.subr.mxu0 0.0
    %809 = vmatpush1.xpose.msra.mxu0 0.0
    %810 = vmatprep.subr.mxu0 0.0
    %811 = vmatpush1.xpose.msra.mxu0 0.0
    %812 = vmatprep.subr.mxu0 0.0
    %813 = vmatpush1.xpose.msra.mxu0 0.0
    %814 = vmatprep.subr.mxu0 0.0
    %815 = vmatpush1.xpose.msra.mxu0 0.0
    %816 = vmatprep.subr.mxu0 0.0
    %817 = vmatpush1.xpose.msra.mxu0 0.0
    %818 = vmatprep.subr.mxu0 0.0
    %819 = vmatpush1.xpose.msra.mxu0 0.0
    %820 = vmatprep.subr.mxu0 0.0
    %821 = vmatpush1.xpose.msra.mxu0 0.0
    %822 = vmatprep.subr.mxu0 0.0
    %823 = vmatpush1.xpose.msra.mxu0 0.0
    %824 = vmatprep.subr.mxu0 0.0
    %825 = vmatpush1.xpose.msra.mxu0 0.0
    %826 = vmatprep.subr.mxu0 0.0
    %827 = vmatpush1.xpose.msra.mxu0 0.0
    %828 = vmatprep.subr.mxu0 0.0
    %829 = vmatpush1.xpose.msra.mxu0 0.0
    %830 = vmatprep.subr.mxu0 0.0
    %831 = vmatpush1.xpose.msra.mxu0 0.0
    %832 = vmatprep.subr.mxu0 0.0
    %833 = vmatpush1.xpose.msra.mxu0 0.0
    %834 = vmatprep.subr.mxu0 0.0
    %835 = vmatpush1.xpose.msra.mxu0 0.0
    %836 = vmatprep.subr.mxu0 0.0
    %837 = vmatpush1.xpose.msra.mxu0 0.0
    %838 = vmatprep.subr.mxu0 0.0
    %839 = vmatpush1.xpose.msra.mxu0 0.0
    %840 = vmatprep.subr.mxu0 0.0
    %841 = vmatpush1.xpose.msra.mxu0 0.0
    %842 = vmatprep.subr.mxu0 0.0
    %843 = vmatpush1.xpose.msra.mxu0 0.0
    %844 = vmatprep.subr.mxu0 0.0
    %845 = vmatpush1.xpose.msra.mxu0 0.0
    %846 = vmatprep.subr.mxu0 0.0
    %847 = vmatpush1.xpose.msra.mxu0 0.0
    %848 = vmatprep.subr.mxu0 0.0
    %849 = vmatpush1.xpose.msra.mxu0 0.0
    %850 = vmatprep.mubr.f32.mxu0 0.0
    %v851 = vand.u32 %v628, 4294901760
    %v852 = vsub.f32 %v628, %v851
    %853 = vmatmul.mubr.f32.gmra.mrb[0].mxu0 %v852
    %v854 = vpop.f32.mrb[0].mxu0
    %v855 = vadd.f32 %v781, %v854
    %v856 = vpop.f32.mrb[0].mxu0
    %857 = vdwg.mxu0
    %858 = vmatprep.subr.mxu0 0.0
    %v859 = vand.u32 %v630, 4294901760
    %860 = vmatpush1.xpose.msra.mxu0 %v859
    %861 = vmatprep.subr.mxu0 0.0
    %862 = vmatpush1.xpose.msra.mxu0 0.0
    %863 = vmatprep.subr.mxu0 0.0
    %864 = vmatpush1.xpose.msra.mxu0 0.0
    %865 = vmatprep.subr.mxu0 0.0
    %866 = vmatpush1.xpose.msra.mxu0 0.0
    %867 = vmatprep.subr.mxu0 0.0
    %868 = vmatpush1.xpose.msra.mxu0 0.0
    %869 = vmatprep.subr.mxu0 0.0
    %870 = vmatpush1.xpose.msra.mxu0 0.0
    %871 = vmatprep.subr.mxu0 0.0
    %872 = vmatpush1.xpose.msra.mxu0 0.0
    %873 = vmatprep.subr.mxu0 0.0
    %874 = vmatpush1.xpose.msra.mxu0 0.0
    %875 = vmatprep.subr.mxu0 0.0
    %876 = vmatpush1.xpose.msra.mxu0 0.0
    %877 = vmatprep.subr.mxu0 0.0
    %878 = vmatpush1.xpose.msra.mxu0 0.0
    %879 = vmatprep.subr.mxu0 0.0
    %880 = vmatpush1.xpose.msra.mxu0 0.0
    %881 = vmatprep.subr.mxu0 0.0
    %882 = vmatpush1.xpose.msra.mxu0 0.0
    %883 = vmatprep.subr.mxu0 0.0
    %884 = vmatpush1.xpose.msra.mxu0 0.0
    %885 = vmatprep.subr.mxu0 0.0
    %886 = vmatpush1.xpose.msra.mxu0 0.0
    %887 = vmatprep.subr.mxu0 0.0
    %888 = vmatpush1.xpose.msra.mxu0 0.0
    %889 = vmatprep.subr.mxu0 0.0
    %890 = vmatpush1.xpose.msra.mxu0 0.0
    %891 = vmatprep.subr.mxu0 0.0
    %892 = vmatpush1.xpose.msra.mxu0 0.0
    %893 = vmatprep.subr.mxu0 0.0
    %894 = vmatpush1.xpose.msra.mxu0 0.0
    %895 = vmatprep.subr.mxu0 0.0
    %896 = vmatpush1.xpose.msra.mxu0 0.0
    %897 = vmatprep.subr.mxu0 0.0
    %898 = vmatpush1.xpose.msra.mxu0 0.0
    %899 = vmatprep.subr.mxu0 0.0
    %900 = vmatpush1.xpose.msra.mxu0 0.0
    %901 = vmatprep.subr.mxu0 0.0
    %902 = vmatpush1.xpose.msra.mxu0 0.0
    %903 = vmatprep.subr.mxu0 0.0
    %904 = vmatpush1.xpose.msra.mxu0 0.0
    %905 = vmatprep.subr.mxu0 0.0
    %906 = vmatpush1.xpose.msra.mxu0 0.0
    %907 = vmatprep.subr.mxu0 0.0
    %908 = vmatpush1.xpose.msra.mxu0 0.0
    %909 = vmatprep.subr.mxu0 0.0
    %910 = vmatpush1.xpose.msra.mxu0 0.0
    %911 = vmatprep.subr.mxu0 0.0
    %912 = vmatpush1.xpose.msra.mxu0 0.0
    %913 = vmatprep.subr.mxu0 0.0
    %914 = vmatpush1.xpose.msra.mxu0 0.0
    %915 = vmatprep.subr.mxu0 0.0
    %916 = vmatpush1.xpose.msra.mxu0 0.0
    %917 = vmatprep.subr.mxu0 0.0
    %918 = vmatpush1.xpose.msra.mxu0 0.0
    %919 = vmatprep.subr.mxu0 0.0
    %920 = vmatpush1.xpose.msra.mxu0 0.0
    %921 = vmatprep.subr.mxu0 0.0
    %922 = vmatpush1.xpose.msra.mxu0 0.0
    %923 = vmatprep.mubr.f32.mxu0 0.0
    %v924 = vand.u32 %v628, 4294901760
    %v925 = vsub.f32 %v628, %v924
    %v926 = vand.u32 %v925, 4294901760
    %927 = vmatmul.mubr.f32.gmra.mrb[0].mxu0 %v926
    %v928 = vpop.f32.mrb[0].mxu0
    %v929 = vadd.f32 %v855, %v928
    %v930 = vpop.f32.mrb[0].mxu0
    %931 = vdwg.mxu0
    %932 = vmatprep.subr.mxu0 0.0
    %v933 = vand.u32 %v630, 4294901760
    %v934 = vsub.f32 %v630, %v933
    %v935 = vand.u32 %v934, 4294901760
    %936 = vmatpush1.xpose.msra.mxu0 %v935
    %937 = vmatprep.subr.mxu0 0.0
    %938 = vmatpush1.xpose.msra.mxu0 0.0
    %939 = vmatprep.subr.mxu0 0.0
    %940 = vmatpush1.xpose.msra.mxu0 0.0
    %941 = vmatprep.subr.mxu0 0.0
    %942 = vmatpush1.xpose.msra.mxu0 0.0
    %943 = vmatprep.subr.mxu0 0.0
    %944 = vmatpush1.xpose.msra.mxu0 0.0
    %945 = vmatprep.subr.mxu0 0.0
    %946 = vmatpush1.xpose.msra.mxu0 0.0
    %947 = vmatprep.subr.mxu0 0.0
    %948 = vmatpush1.xpose.msra.mxu0 0.0
    %949 = vmatprep.subr.mxu0 0.0
    %950 = vmatpush1.xpose.msra.mxu0 0.0
    %951 = vmatprep.subr.mxu0 0.0
    %952 = vmatpush1.xpose.msra.mxu0 0.0
    %953 = vmatprep.subr.mxu0 0.0
    %954 = vmatpush1.xpose.msra.mxu0 0.0
    %955 = vmatprep.subr.mxu0 0.0
    %956 = vmatpush1.xpose.msra.mxu0 0.0
    %957 = vmatprep.subr.mxu0 0.0
    %958 = vmatpush1.xpose.msra.mxu0 0.0
    %959 = vmatprep.subr.mxu0 0.0
    %960 = vmatpush1.xpose.msra.mxu0 0.0
    %961 = vmatprep.subr.mxu0 0.0
    %962 = vmatpush1.xpose.msra.mxu0 0.0
    %963 = vmatprep.subr.mxu0 0.0
    %964 = vmatpush1.xpose.msra.mxu0 0.0
    %965 = vmatprep.subr.mxu0 0.0
    %966 = vmatpush1.xpose.msra.mxu0 0.0
    %967 = vmatprep.subr.mxu0 0.0
    %968 = vmatpush1.xpose.msra.mxu0 0.0
    %969 = vmatprep.subr.mxu0 0.0
    %970 = vmatpush1.xpose.msra.mxu0 0.0
    %971 = vmatprep.subr.mxu0 0.0
    %972 = vmatpush1.xpose.msra.mxu0 0.0
    %973 = vmatprep.subr.mxu0 0.0
    %974 = vmatpush1.xpose.msra.mxu0 0.0
    %975 = vmatprep.subr.mxu0 0.0
    %976 = vmatpush1.xpose.msra.mxu0 0.0
    %977 = vmatprep.subr.mxu0 0.0
    %978 = vmatpush1.xpose.msra.mxu0 0.0
    %979 = vmatprep.subr.mxu0 0.0
    %980 = vmatpush1.xpose.msra.mxu0 0.0
    %981 = vmatprep.subr.mxu0 0.0
    %982 = vmatpush1.xpose.msra.mxu0 0.0
    %983 = vmatprep.subr.mxu0 0.0
    %984 = vmatpush1.xpose.msra.mxu0 0.0
    %985 = vmatprep.subr.mxu0 0.0
    %986 = vmatpush1.xpose.msra.mxu0 0.0
    %987 = vmatprep.subr.mxu0 0.0
    %988 = vmatpush1.xpose.msra.mxu0 0.0
    %989 = vmatprep.subr.mxu0 0.0
    %990 = vmatpush1.xpose.msra.mxu0 0.0
    %991 = vmatprep.subr.mxu0 0.0
    %992 = vmatpush1.xpose.msra.mxu0 0.0
    %993 = vmatprep.subr.mxu0 0.0
    %994 = vmatpush1.xpose.msra.mxu0 0.0
    %995 = vmatprep.subr.mxu0 0.0
    %996 = vmatpush1.xpose.msra.mxu0 0.0
    %997 = vmatprep.subr.mxu0 0.0
    %998 = vmatpush1.xpose.msra.mxu0 0.0
    %999 = vmatprep.mubr.f32.mxu0 0.0
    %v1000 = vand.u32 %v628, 4294901760
    %1001 = vmatmul.mubr.f32.gmra.mrb[0].mxu0 %v1000
    %v1002 = vpop.f32.mrb[0].mxu0
    %v1003 = vadd.f32 %v929, %v1002
    %v1004 = vpop.f32.mrb[0].mxu0
    %1005 = vdwg.mxu0
    %1006 = vmatprep.subr.mxu0 0.0
    %v1007 = vand.u32 %v630, 4294901760
    %1008 = vmatpush1.xpose.msra.mxu0 %v1007
    %1009 = vmatprep.subr.mxu0 0.0
    %1010 = vmatpush1.xpose.msra.mxu0 0.0
    %1011 = vmatprep.subr.mxu0 0.0
    %1012 = vmatpush1.xpose.msra.mxu0 0.0
    %1013 = vmatprep.subr.mxu0 0.0
    %1014 = vmatpush1.xpose.msra.mxu0 0.0
    %1015 = vmatprep.subr.mxu0 0.0
    %1016 = vmatpush1.xpose.msra.mxu0 0.0
    %1017 = vmatprep.subr.mxu0 0.0
    %1018 = vmatpush1.xpose.msra.mxu0 0.0
    %1019 = vmatprep.subr.mxu0 0.0
    %1020 = vmatpush1.xpose.msra.mxu0 0.0
    %1021 = vmatprep.subr.mxu0 0.0
    %1022 = vmatpush1.xpose.msra.mxu0 0.0
    %1023 = vmatprep.subr.mxu0 0.0
    %1024 = vmatpush1.xpose.msra.mxu0 0.0
    %1025 = vmatprep.subr.mxu0 0.0
    %1026 = vmatpush1.xpose.msra.mxu0 0.0
    %1027 = vmatprep.subr.mxu0 0.0
    %1028 = vmatpush1.xpose.msra.mxu0 0.0
    %1029 = vmatprep.subr.mxu0 0.0
    %1030 = vmatpush1.xpose.msra.mxu0 0.0
    %1031 = vmatprep.subr.mxu0 0.0
    %1032 = vmatpush1.xpose.msra.mxu0 0.0
    %1033 = vmatprep.subr.mxu0 0.0
    %1034 = vmatpush1.xpose.msra.mxu0 0.0
    %1035 = vmatprep.subr.mxu0 0.0
    %1036 = vmatpush1.xpose.msra.mxu0 0.0
    %1037 = vmatprep.subr.mxu0 0.0
    %1038 = vmatpush1.xpose.msra.mxu0 0.0
    %1039 = vmatprep.subr.mxu0 0.0
    %1040 = vmatpush1.xpose.msra.mxu0 0.0
    %1041 = vmatprep.subr.mxu0 0.0
    %1042 = vmatpush1.xpose.msra.mxu0 0.0
    %1043 = vmatprep.subr.mxu0 0.0
    %1044 = vmatpush1.xpose.msra.mxu0 0.0
    %1045 = vmatprep.subr.mxu0 0.0
    %1046 = vmatpush1.xpose.msra.mxu0 0.0
    %1047 = vmatprep.subr.mxu0 0.0
    %1048 = vmatpush1.xpose.msra.mxu0 0.0
    %1049 = vmatprep.subr.mxu0 0.0
    %1050 = vmatpush1.xpose.msra.mxu0 0.0
    %1051 = vmatprep.subr.mxu0 0.0
    %1052 = vmatpush1.xpose.msra.mxu0 0.0
    %1053 = vmatprep.subr.mxu0 0.0
    %1054 = vmatpush1.xpose.msra.mxu0 0.0
    %1055 = vmatprep.subr.mxu0 0.0
    %1056 = vmatpush1.xpose.msra.mxu0 0.0
    %1057 = vmatprep.subr.mxu0 0.0
    %1058 = vmatpush1.xpose.msra.mxu0 0.0
    %1059 = vmatprep.subr.mxu0 0.0
    %1060 = vmatpush1.xpose.msra.mxu0 0.0
    %1061 = vmatprep.subr.mxu0 0.0
    %1062 = vmatpush1.xpose.msra.mxu0 0.0
    %1063 = vmatprep.subr.mxu0 0.0
    %1064 = vmatpush1.xpose.msra.mxu0 0.0
    %1065 = vmatprep.subr.mxu0 0.0
    %1066 = vmatpush1.xpose.msra.mxu0 0.0
    %1067 = vmatprep.subr.mxu0 0.0
    %1068 = vmatpush1.xpose.msra.mxu0 0.0
    %1069 = vmatprep.subr.mxu0 0.0
    %1070 = vmatpush1.xpose.msra.mxu0 0.0
    %1071 = vmatprep.mubr.f32.mxu0 0.0
    %v1072 = vand.u32 %v628, 4294901760
    %1073 = vmatmul.mubr.f32.gmra.mrb[0].mxu0 %v1072
    %v1074 = vpop.f32.mrb[0].mxu0
    %v1075 = vadd.f32 %v1003, %v1074
    %v1076 = vpop.f32.mrb[0].mxu0
    %1077 = vdwg.mxu0
    %1079 = vrot.lane.b32.xlu0 %v617, 96
    %v1080 = vpop.permute.xlu0 %1079
    %v1081 = vsel %vm627, %v617, 0
    %v1083 = vsel %vm627, %v1080, 0
    %1085 = vmatprep.subr.mxu0 0.0
    %v1086 = vand.u32 %v1083, 4294901760
    %1087 = vmatpush1.xpose.msra.mxu0 %v1086
    %1088 = vmatprep.subr.mxu0 0.0
    %1089 = vmatpush1.xpose.msra.mxu0 0.0
    %1090 = vmatprep.subr.mxu0 0.0
    %1091 = vmatpush1.xpose.msra.mxu0 0.0
    %1092 = vmatprep.subr.mxu0 0.0
    %1093 = vmatpush1.xpose.msra.mxu0 0.0
    %1094 = vmatprep.subr.mxu0 0.0
    %1095 = vmatpush1.xpose.msra.mxu0 0.0
    %1096 = vmatprep.subr.mxu0 0.0
    %1097 = vmatpush1.xpose.msra.mxu0 0.0
    %1098 = vmatprep.subr.mxu0 0.0
    %1099 = vmatpush1.xpose.msra.mxu0 0.0
    %1100 = vmatprep.subr.mxu0 0.0
    %1101 = vmatpush1.xpose.msra.mxu0 0.0
    %1102 = vmatprep.subr.mxu0 0.0
    %1103 = vmatpush1.xpose.msra.mxu0 0.0
    %1104 = vmatprep.subr.mxu0 0.0
    %1105 = vmatpush1.xpose.msra.mxu0 0.0
    %1106 = vmatprep.subr.mxu0 0.0
    %1107 = vmatpush1.xpose.msra.mxu0 0.0
    %1108 = vmatprep.subr.mxu0 0.0
    %1109 = vmatpush1.xpose.msra.mxu0 0.0
    %1110 = vmatprep.subr.mxu0 0.0
    %1111 = vmatpush1.xpose.msra.mxu0 0.0
    %1112 = vmatprep.subr.mxu0 0.0
    %1113 = vmatpush1.xpose.msra.mxu0 0.0
    %1114 = vmatprep.subr.mxu0 0.0
    %1115 = vmatpush1.xpose.msra.mxu0 0.0
    %1116 = vmatprep.subr.mxu0 0.0
    %1117 = vmatpush1.xpose.msra.mxu0 0.0
    %1118 = vmatprep.subr.mxu0 0.0
    %1119 = vmatpush1.xpose.msra.mxu0 0.0
    %1120 = vmatprep.subr.mxu0 0.0
    %1121 = vmatpush1.xpose.msra.mxu0 0.0
    %1122 = vmatprep.subr.mxu0 0.0
    %1123 = vmatpush1.xpose.msra.mxu0 0.0
    %1124 = vmatprep.subr.mxu0 0.0
    %1125 = vmatpush1.xpose.msra.mxu0 0.0
    %1126 = vmatprep.subr.mxu0 0.0
    %1127 = vmatpush1.xpose.msra.mxu0 0.0
    %1128 = vmatprep.subr.mxu0 0.0
    %1129 = vmatpush1.xpose.msra.mxu0 0.0
    %1130 = vmatprep.subr.mxu0 0.0
    %1131 = vmatpush1.xpose.msra.mxu0 0.0
    %1132 = vmatprep.subr.mxu0 0.0
    %1133 = vmatpush1.xpose.msra.mxu0 0.0
    %1134 = vmatprep.subr.mxu0 0.0
    %1135 = vmatpush1.xpose.msra.mxu0 0.0
    %1136 = vmatprep.subr.mxu0 0.0
    %1137 = vmatpush1.xpose.msra.mxu0 0.0
    %1138 = vmatprep.subr.mxu0 0.0
    %1139 = vmatpush1.xpose.msra.mxu0 0.0
    %1140 = vmatprep.subr.mxu0 0.0
    %1141 = vmatpush1.xpose.msra.mxu0 0.0
    %1142 = vmatprep.subr.mxu0 0.0
    %1143 = vmatpush1.xpose.msra.mxu0 0.0
    %1144 = vmatprep.subr.mxu0 0.0
    %1145 = vmatpush1.xpose.msra.mxu0 0.0
    %1146 = vmatprep.subr.mxu0 0.0
    %1147 = vmatpush1.xpose.msra.mxu0 0.0
    %1148 = vmatprep.subr.mxu0 0.0
    %1149 = vmatpush1.xpose.msra.mxu0 0.0
    %1150 = vmatprep.mubr.f32.mxu0 0.0
    %v1151 = vand.u32 %v1081, 4294901760
    %v1152 = vsub.f32 %v1081, %v1151
    %v1153 = vand.u32 %v1152, 4294901760
    %v1154 = vsub.f32 %v1152, %v1153
    %v1155 = vand.u32 %v1154, 4294901760
    %1156 = vmatmul.mubr.f32.gmra.mrb[0].mxu0 %v1155
    %v1157 = vpop.f32.mrb[0].mxu0
    %v1158 = vadd.f32 0.0, %v1157
    %v1159 = vpop.f32.mrb[0].mxu0
    %1160 = vdwg.mxu0
    %1161 = vmatprep.subr.mxu0 0.0
    %v1162 = vand.u32 %v1083, 4294901760
    %v1163 = vsub.f32 %v1083, %v1162
    %v1164 = vand.u32 %v1163, 4294901760
    %v1165 = vsub.f32 %v1163, %v1164
    %v1166 = vand.u32 %v1165, 4294901760
    %1167 = vmatpush1.xpose.msra.mxu0 %v1166
    %1168 = vmatprep.subr.mxu0 0.0
    %1169 = vmatpush1.xpose.msra.mxu0 0.0
    %1170 = vmatprep.subr.mxu0 0.0
    %1171 = vmatpush1.xpose.msra.mxu0 0.0
    %1172 = vmatprep.subr.mxu0 0.0
    %1173 = vmatpush1.xpose.msra.mxu0 0.0
    %1174 = vmatprep.subr.mxu0 0.0
    %1175 = vmatpush1.xpose.msra.mxu0 0.0
    %1176 = vmatprep.subr.mxu0 0.0
    %1177 = vmatpush1.xpose.msra.mxu0 0.0
    %1178 = vmatprep.subr.mxu0 0.0
    %1179 = vmatpush1.xpose.msra.mxu0 0.0
    %1180 = vmatprep.subr.mxu0 0.0
    %1181 = vmatpush1.xpose.msra.mxu0 0.0
    %1182 = vmatprep.subr.mxu0 0.0
    %1183 = vmatpush1.xpose.msra.mxu0 0.0
    %1184 = vmatprep.subr.mxu0 0.0
    %1185 = vmatpush1.xpose.msra.mxu0 0.0
    %1186 = vmatprep.subr.mxu0 0.0
    %1187 = vmatpush1.xpose.msra.mxu0 0.0
    %1188 = vmatprep.subr.mxu0 0.0
    %1189 = vmatpush1.xpose.msra.mxu0 0.0
    %1190 = vmatprep.subr.mxu0 0.0
    %1191 = vmatpush1.xpose.msra.mxu0 0.0
    %1192 = vmatprep.subr.mxu0 0.0
    %1193 = vmatpush1.xpose.msra.mxu0 0.0
    %1194 = vmatprep.subr.mxu0 0.0
    %1195 = vmatpush1.xpose.msra.mxu0 0.0
    %1196 = vmatprep.subr.mxu0 0.0
    %1197 = vmatpush1.xpose.msra.mxu0 0.0
    %1198 = vmatprep.subr.mxu0 0.0
    %1199 = vmatpush1.xpose.msra.mxu0 0.0
    %1200 = vmatprep.subr.mxu0 0.0
    %1201 = vmatpush1.xpose.msra.mxu0 0.0
    %1202 = vmatprep.subr.mxu0 0.0
    %1203 = vmatpush1.xpose.msra.mxu0 0.0
    %1204 = vmatprep.subr.mxu0 0.0
    %1205 = vmatpush1.xpose.msra.mxu0 0.0
    %1206 = vmatprep.subr.mxu0 0.0
    %1207 = vmatpush1.xpose.msra.mxu0 0.0
    %1208 = vmatprep.subr.mxu0 0.0
    %1209 = vmatpush1.xpose.msra.mxu0 0.0
    %1210 = vmatprep.subr.mxu0 0.0
    %1211 = vmatpush1.xpose.msra.mxu0 0.0
    %1212 = vmatprep.subr.mxu0 0.0
    %1213 = vmatpush1.xpose.msra.mxu0 0.0
    %1214 = vmatprep.subr.mxu0 0.0
    %1215 = vmatpush1.xpose.msra.mxu0 0.0
    %1216 = vmatprep.subr.mxu0 0.0
    %1217 = vmatpush1.xpose.msra.mxu0 0.0
    %1218 = vmatprep.subr.mxu0 0.0
    %1219 = vmatpush1.xpose.msra.mxu0 0.0
    %1220 = vmatprep.subr.mxu0 0.0
    %1221 = vmatpush1.xpose.msra.mxu0 0.0
    %1222 = vmatprep.subr.mxu0 0.0
    %1223 = vmatpush1.xpose.msra.mxu0 0.0
    %1224 = vmatprep.subr.mxu0 0.0
    %1225 = vmatpush1.xpose.msra.mxu0 0.0
    %1226 = vmatprep.subr.mxu0 0.0
    %1227 = vmatpush1.xpose.msra.mxu0 0.0
    %1228 = vmatprep.subr.mxu0 0.0
    %1229 = vmatpush1.xpose.msra.mxu0 0.0
    %1230 = vmatprep.mubr.f32.mxu0 0.0
    %v1231 = vand.u32 %v1081, 4294901760
    %1232 = vmatmul.mubr.f32.gmra.mrb[0].mxu0 %v1231
    %v1233 = vpop.f32.mrb[0].mxu0
    %v1234 = vadd.f32 %v1158, %v1233
    %v1235 = vpop.f32.mrb[0].mxu0
    %1236 = vdwg.mxu0
    %1237 = vmatprep.subr.mxu0 0.0
    %v1238 = vand.u32 %v1083, 4294901760
    %v1239 = vsub.f32 %v1083, %v1238
    %1240 = vmatpush1.xpose.msra.mxu0 %v1239
    %1241 = vmatprep.subr.mxu0 0.0
    %1242 = vmatpush1.xpose.msra.mxu0 0.0
    %1243 = vmatprep.subr.mxu0 0.0
    %1244 = vmatpush1.xpose.msra.mxu0 0.0
    %1245 = vmatprep.subr.mxu0 0.0
    %1246 = vmatpush1.xpose.msra.mxu0 0.0
    %1247 = vmatprep.subr.mxu0 0.0
    %1248 = vmatpush1.xpose.msra.mxu0 0.0
    %1249 = vmatprep.subr.mxu0 0.0
    %1250 = vmatpush1.xpose.msra.mxu0 0.0
    %1251 = vmatprep.subr.mxu0 0.0
    %1252 = vmatpush1.xpose.msra.mxu0 0.0
    %1253 = vmatprep.subr.mxu0 0.0
    %1254 = vmatpush1.xpose.msra.mxu0 0.0
    %1255 = vmatprep.subr.mxu0 0.0
    %1256 = vmatpush1.xpose.msra.mxu0 0.0
    %1257 = vmatprep.subr.mxu0 0.0
    %1258 = vmatpush1.xpose.msra.mxu0 0.0
    %1259 = vmatprep.subr.mxu0 0.0
    %1260 = vmatpush1.xpose.msra.mxu0 0.0
    %1261 = vmatprep.subr.mxu0 0.0
    %1262 = vmatpush1.xpose.msra.mxu0 0.0
    %1263 = vmatprep.subr.mxu0 0.0
    %1264 = vmatpush1.xpose.msra.mxu0 0.0
    %1265 = vmatprep.subr.mxu0 0.0
    %1266 = vmatpush1.xpose.msra.mxu0 0.0
    %1267 = vmatprep.subr.mxu0 0.0
    %1268 = vmatpush1.xpose.msra.mxu0 0.0
    %1269 = vmatprep.subr.mxu0 0.0
    %1270 = vmatpush1.xpose.msra.mxu0 0.0
    %1271 = vmatprep.subr.mxu0 0.0
    %1272 = vmatpush1.xpose.msra.mxu0 0.0
    %1273 = vmatprep.subr.mxu0 0.0
    %1274 = vmatpush1.xpose.msra.mxu0 0.0
    %1275 = vmatprep.subr.mxu0 0.0
    %1276 = vmatpush1.xpose.msra.mxu0 0.0
    %1277 = vmatprep.subr.mxu0 0.0
    %1278 = vmatpush1.xpose.msra.mxu0 0.0
    %1279 = vmatprep.subr.mxu0 0.0
    %1280 = vmatpush1.xpose.msra.mxu0 0.0
    %1281 = vmatprep.subr.mxu0 0.0
    %1282 = vmatpush1.xpose.msra.mxu0 0.0
    %1283 = vmatprep.subr.mxu0 0.0
    %1284 = vmatpush1.xpose.msra.mxu0 0.0
    %1285 = vmatprep.subr.mxu0 0.0
    %1286 = vmatpush1.xpose.msra.mxu0 0.0
    %1287 = vmatprep.subr.mxu0 0.0
    %1288 = vmatpush1.xpose.msra.mxu0 0.0
    %1289 = vmatprep.subr.mxu0 0.0
    %1290 = vmatpush1.xpose.msra.mxu0 0.0
    %1291 = vmatprep.subr.mxu0 0.0
    %1292 = vmatpush1.xpose.msra.mxu0 0.0
    %1293 = vmatprep.subr.mxu0 0.0
    %1294 = vmatpush1.xpose.msra.mxu0 0.0
    %1295 = vmatprep.subr.mxu0 0.0
    %1296 = vmatpush1.xpose.msra.mxu0 0.0
    %1297 = vmatprep.subr.mxu0 0.0
    %1298 = vmatpush1.xpose.msra.mxu0 0.0
    %1299 = vmatprep.subr.mxu0 0.0
    %1300 = vmatpush1.xpose.msra.mxu0 0.0
    %1301 = vmatprep.subr.mxu0 0.0
    %1302 = vmatpush1.xpose.msra.mxu0 0.0
    %1303 = vmatprep.mubr.f32.mxu0 0.0
    %v1304 = vand.u32 %v1081, 4294901760
    %v1305 = vsub.f32 %v1081, %v1304
    %1306 = vmatmul.mubr.f32.gmra.mrb[0].mxu0 %v1305
    %v1307 = vpop.f32.mrb[0].mxu0
    %v1308 = vadd.f32 %v1234, %v1307
    %v1309 = vpop.f32.mrb[0].mxu0
    %1310 = vdwg.mxu0
    %1311 = vmatprep.subr.mxu0 0.0
    %v1312 = vand.u32 %v1083, 4294901760
    %1313 = vmatpush1.xpose.msra.mxu0 %v1312
    %1314 = vmatprep.subr.mxu0 0.0
    %1315 = vmatpush1.xpose.msra.mxu0 0.0
    %1316 = vmatprep.subr.mxu0 0.0
    %1317 = vmatpush1.xpose.msra.mxu0 0.0
    %1318 = vmatprep.subr.mxu0 0.0
    %1319 = vmatpush1.xpose.msra.mxu0 0.0
    %1320 = vmatprep.subr.mxu0 0.0
    %1321 = vmatpush1.xpose.msra.mxu0 0.0
    %1322 = vmatprep.subr.mxu0 0.0
    %1323 = vmatpush1.xpose.msra.mxu0 0.0
    %1324 = vmatprep.subr.mxu0 0.0
    %1325 = vmatpush1.xpose.msra.mxu0 0.0
    %1326 = vmatprep.subr.mxu0 0.0
    %1327 = vmatpush1.xpose.msra.mxu0 0.0
    %1328 = vmatprep.subr.mxu0 0.0
    %1329 = vmatpush1.xpose.msra.mxu0 0.0
    %1330 = vmatprep.subr.mxu0 0.0
    %1331 = vmatpush1.xpose.msra.mxu0 0.0
    %1332 = vmatprep.subr.mxu0 0.0
    %1333 = vmatpush1.xpose.msra.mxu0 0.0
    %1334 = vmatprep.subr.mxu0 0.0
    %1335 = vmatpush1.xpose.msra.mxu0 0.0
    %1336 = vmatprep.subr.mxu0 0.0
    %1337 = vmatpush1.xpose.msra.mxu0 0.0
    %1338 = vmatprep.subr.mxu0 0.0
    %1339 = vmatpush1.xpose.msra.mxu0 0.0
    %1340 = vmatprep.subr.mxu0 0.0
    %1341 = vmatpush1.xpose.msra.mxu0 0.0
    %1342 = vmatprep.subr.mxu0 0.0
    %1343 = vmatpush1.xpose.msra.mxu0 0.0
    %1344 = vmatprep.subr.mxu0 0.0
    %1345 = vmatpush1.xpose.msra.mxu0 0.0
    %1346 = vmatprep.subr.mxu0 0.0
    %1347 = vmatpush1.xpose.msra.mxu0 0.0
    %1348 = vmatprep.subr.mxu0 0.0
    %1349 = vmatpush1.xpose.msra.mxu0 0.0
    %1350 = vmatprep.subr.mxu0 0.0
    %1351 = vmatpush1.xpose.msra.mxu0 0.0
    %1352 = vmatprep.subr.mxu0 0.0
    %1353 = vmatpush1.xpose.msra.mxu0 0.0
    %1354 = vmatprep.subr.mxu0 0.0
    %1355 = vmatpush1.xpose.msra.mxu0 0.0
    %1356 = vmatprep.subr.mxu0 0.0
    %1357 = vmatpush1.xpose.msra.mxu0 0.0
    %1358 = vmatprep.subr.mxu0 0.0
    %1359 = vmatpush1.xpose.msra.mxu0 0.0
    %1360 = vmatprep.subr.mxu0 0.0
    %1361 = vmatpush1.xpose.msra.mxu0 0.0
    %1362 = vmatprep.subr.mxu0 0.0
    %1363 = vmatpush1.xpose.msra.mxu0 0.0
    %1364 = vmatprep.subr.mxu0 0.0
    %1365 = vmatpush1.xpose.msra.mxu0 0.0
    %1366 = vmatprep.subr.mxu0 0.0
    %1367 = vmatpush1.xpose.msra.mxu0 0.0
    %1368 = vmatprep.subr.mxu0 0.0
    %1369 = vmatpush1.xpose.msra.mxu0 0.0
    %1370 = vmatprep.subr.mxu0 0.0
    %1371 = vmatpush1.xpose.msra.mxu0 0.0
    %1372 = vmatprep.subr.mxu0 0.0
    %1373 = vmatpush1.xpose.msra.mxu0 0.0
    %1374 = vmatprep.subr.mxu0 0.0
    %1375 = vmatpush1.xpose.msra.mxu0 0.0
    %1376 = vmatprep.mubr.f32.mxu0 0.0
    %v1377 = vand.u32 %v1081, 4294901760
    %v1378 = vsub.f32 %v1081, %v1377
    %v1379 = vand.u32 %v1378, 4294901760
    %1380 = vmatmul.mubr.f32.gmra.mrb[0].mxu0 %v1379
    %v1381 = vpop.f32.mrb[0].mxu0
    %v1382 = vadd.f32 %v1308, %v1381
    %v1383 = vpop.f32.mrb[0].mxu0
    %1384 = vdwg.mxu0
    %1385 = vmatprep.subr.mxu0 0.0
    %v1386 = vand.u32 %v1083, 4294901760
    %v1387 = vsub.f32 %v1083, %v1386
    %v1388 = vand.u32 %v1387, 4294901760
    %1389 = vmatpush1.xpose.msra.mxu0 %v1388
    %1390 = vmatprep.subr.mxu0 0.0
    %1391 = vmatpush1.xpose.msra.mxu0 0.0
    %1392 = vmatprep.subr.mxu0 0.0
    %1393 = vmatpush1.xpose.msra.mxu0 0.0
    %1394 = vmatprep.subr.mxu0 0.0
    %1395 = vmatpush1.xpose.msra.mxu0 0.0
    %1396 = vmatprep.subr.mxu0 0.0
    %1397 = vmatpush1.xpose.msra.mxu0 0.0
    %1398 = vmatprep.subr.mxu0 0.0
    %1399 = vmatpush1.xpose.msra.mxu0 0.0
    %1400 = vmatprep.subr.mxu0 0.0
    %1401 = vmatpush1.xpose.msra.mxu0 0.0
    %1402 = vmatprep.subr.mxu0 0.0
    %1403 = vmatpush1.xpose.msra.mxu0 0.0
    %1404 = vmatprep.subr.mxu0 0.0
    %1405 = vmatpush1.xpose.msra.mxu0 0.0
    %1406 = vmatprep.subr.mxu0 0.0
    %1407 = vmatpush1.xpose.msra.mxu0 0.0
    %1408 = vmatprep.subr.mxu0 0.0
    %1409 = vmatpush1.xpose.msra.mxu0 0.0
    %1410 = vmatprep.subr.mxu0 0.0
    %1411 = vmatpush1.xpose.msra.mxu0 0.0
    %1412 = vmatprep.subr.mxu0 0.0
    %1413 = vmatpush1.xpose.msra.mxu0 0.0
    %1414 = vmatprep.subr.mxu0 0.0
    %1415 = vmatpush1.xpose.msra.mxu0 0.0
    %1416 = vmatprep.subr.mxu0 0.0
    %1417 = vmatpush1.xpose.msra.mxu0 0.0
    %1418 = vmatprep.subr.mxu0 0.0
    %1419 = vmatpush1.xpose.msra.mxu0 0.0
    %1420 = vmatprep.subr.mxu0 0.0
    %1421 = vmatpush1.xpose.msra.mxu0 0.0
    %1422 = vmatprep.subr.mxu0 0.0
    %1423 = vmatpush1.xpose.msra.mxu0 0.0
    %1424 = vmatprep.subr.mxu0 0.0
    %1425 = vmatpush1.xpose.msra.mxu0 0.0
    %1426 = vmatprep.subr.mxu0 0.0
    %1427 = vmatpush1.xpose.msra.mxu0 0.0
    %1428 = vmatprep.subr.mxu0 0.0
    %1429 = vmatpush1.xpose.msra.mxu0 0.0
    %1430 = vmatprep.subr.mxu0 0.0
    %1431 = vmatpush1.xpose.msra.mxu0 0.0
    %1432 = vmatprep.subr.mxu0 0.0
    %1433 = vmatpush1.xpose.msra.mxu0 0.0
    %1434 = vmatprep.subr.mxu0 0.0
    %1435 = vmatpush1.xpose.msra.mxu0 0.0
    %1436 = vmatprep.subr.mxu0 0.0
    %1437 = vmatpush1.xpose.msra.mxu0 0.0
    %1438 = vmatprep.subr.mxu0 0.0
    %1439 = vmatpush1.xpose.msra.mxu0 0.0
    %1440 = vmatprep.subr.mxu0 0.0
    %1441 = vmatpush1.xpose.msra.mxu0 0.0
    %1442 = vmatprep.subr.mxu0 0.0
    %1443 = vmatpush1.xpose.msra.mxu0 0.0
    %1444 = vmatprep.subr.mxu0 0.0
    %1445 = vmatpush1.xpose.msra.mxu0 0.0
    %1446 = vmatprep.subr.mxu0 0.0
    %1447 = vmatpush1.xpose.msra.mxu0 0.0
    %1448 = vmatprep.subr.mxu0 0.0
    %1449 = vmatpush1.xpose.msra.mxu0 0.0
    %1450 = vmatprep.subr.mxu0 0.0
    %1451 = vmatpush1.xpose.msra.mxu0 0.0
    %1452 = vmatprep.mubr.f32.mxu0 0.0
    %v1453 = vand.u32 %v1081, 4294901760
    %1454 = vmatmul.mubr.f32.gmra.mrb[0].mxu0 %v1453
    %v1455 = vpop.f32.mrb[0].mxu0
    %v1456 = vadd.f32 %v1382, %v1455
    %v1457 = vpop.f32.mrb[0].mxu0
    %1458 = vdwg.mxu0
    %1459 = vmatprep.subr.mxu0 0.0
    %v1460 = vand.u32 %v1083, 4294901760
    %1461 = vmatpush1.xpose.msra.mxu0 %v1460
    %1462 = vmatprep.subr.mxu0 0.0
    %1463 = vmatpush1.xpose.msra.mxu0 0.0
    %1464 = vmatprep.subr.mxu0 0.0
    %1465 = vmatpush1.xpose.msra.mxu0 0.0
    %1466 = vmatprep.subr.mxu0 0.0
    %1467 = vmatpush1.xpose.msra.mxu0 0.0
    %1468 = vmatprep.subr.mxu0 0.0
    %1469 = vmatpush1.xpose.msra.mxu0 0.0
    %1470 = vmatprep.subr.mxu0 0.0
    %1471 = vmatpush1.xpose.msra.mxu0 0.0
    %1472 = vmatprep.subr.mxu0 0.0
    %1473 = vmatpush1.xpose.msra.mxu0 0.0
    %1474 = vmatprep.subr.mxu0 0.0
    %1475 = vmatpush1.xpose.msra.mxu0 0.0
    %1476 = vmatprep.subr.mxu0 0.0
    %1477 = vmatpush1.xpose.msra.mxu0 0.0
    %1478 = vmatprep.subr.mxu0 0.0
    %1479 = vmatpush1.xpose.msra.mxu0 0.0
    %1480 = vmatprep.subr.mxu0 0.0
    %1481 = vmatpush1.xpose.msra.mxu0 0.0
    %1482 = vmatprep.subr.mxu0 0.0
    %1483 = vmatpush1.xpose.msra.mxu0 0.0
    %1484 = vmatprep.subr.mxu0 0.0
    %1485 = vmatpush1.xpose.msra.mxu0 0.0
    %1486 = vmatprep.subr.mxu0 0.0
    %1487 = vmatpush1.xpose.msra.mxu0 0.0
    %1488 = vmatprep.subr.mxu0 0.0
    %1489 = vmatpush1.xpose.msra.mxu0 0.0
    %1490 = vmatprep.subr.mxu0 0.0
    %1491 = vmatpush1.xpose.msra.mxu0 0.0
    %1492 = vmatprep.subr.mxu0 0.0
    %1493 = vmatpush1.xpose.msra.mxu0 0.0
    %1494 = vmatprep.subr.mxu0 0.0
    %1495 = vmatpush1.xpose.msra.mxu0 0.0
    %1496 = vmatprep.subr.mxu0 0.0
    %1497 = vmatpush1.xpose.msra.mxu0 0.0
    %1498 = vmatprep.subr.mxu0 0.0
    %1499 = vmatpush1.xpose.msra.mxu0 0.0
    %1500 = vmatprep.subr.mxu0 0.0
    %1501 = vmatpush1.xpose.msra.mxu0 0.0
    %1502 = vmatprep.subr.mxu0 0.0
    %1503 = vmatpush1.xpose.msra.mxu0 0.0
    %1504 = vmatprep.subr.mxu0 0.0
    %1505 = vmatpush1.xpose.msra.mxu0 0.0
    %1506 = vmatprep.subr.mxu0 0.0
    %1507 = vmatpush1.xpose.msra.mxu0 0.0
    %1508 = vmatprep.subr.mxu0 0.0
    %1509 = vmatpush1.xpose.msra.mxu0 0.0
    %1510 = vmatprep.subr.mxu0 0.0
    %1511 = vmatpush1.xpose.msra.mxu0 0.0
    %1512 = vmatprep.subr.mxu0 0.0
    %1513 = vmatpush1.xpose.msra.mxu0 0.0
    %1514 = vmatprep.subr.mxu0 0.0
    %1515 = vmatpush1.xpose.msra.mxu0 0.0
    %1516 = vmatprep.subr.mxu0 0.0
    %1517 = vmatpush1.xpose.msra.mxu0 0.0
    %1518 = vmatprep.subr.mxu0 0.0
    %1519 = vmatpush1.xpose.msra.mxu0 0.0
    %1520 = vmatprep.subr.mxu0 0.0
    %1521 = vmatpush1.xpose.msra.mxu0 0.0
    %1522 = vmatprep.subr.mxu0 0.0
    %1523 = vmatpush1.xpose.msra.mxu0 0.0
    %1524 = vmatprep.mubr.f32.mxu0 0.0
    %v1525 = vand.u32 %v1081, 4294901760
    %1526 = vmatmul.mubr.f32.gmra.mrb[0].mxu0 %v1525
    %v1527 = vpop.f32.mrb[0].mxu0
    %v1528 = vadd.f32 %v1456, %v1527
    %v1529 = vpop.f32.mrb[0].mxu0
    %1530 = vdwg.mxu0
    %vm1531 = vcmask 64512
    %v1532 = vsel %vm1531, %v1075, -inf
    %1533 = vmax.xlane.f32.xlu0 %v1532
    %v1534 = vpop.xlane.xlu0 %1533
    %v1535 = vsel %vm1531, %v1528, -inf
    %1536 = vmax.xlane.f32.xlu0 %v1535
    %v1537 = vpop.xlane.xlu0 %1536
    %v1538 = vsub.f32 %v1075, %v1534
    %v1539 = vsub.f32 %v1528, %v1537
    %v1540 = vmul.f32 %v1538, 1.442695
    %v1541 = vpow.pop %v1540
    %v1542 = vmul.f32 %v1539, 1.442695
    %v1543 = vpow.pop %v1542
    %v1544 = vsel %vm1531, %v1541, 0.0
    %1545 = vadd.xlane.f32.xlu0 %v1544
    %v1546 = vpop.xlane.xlu0 %1545
    %v1547 = vsel %vm1531, %v1543, 0.0
    %1548 = vadd.xlane.f32.xlu0 %v1547
    %v1549 = vpop.xlane.xlu0 %1548
    %v1550 = vrcp.pop %v1546
    %v1551 = vrcp.pop %v1549
    %v1552 = vmul.f32 %v1541, %v1550
    %v1553 = vmul.f32 %v1543, %v1551
    %1554 = vrot.lane.b32.xlu0 %v611, 64
    %v1555 = vpop.permute.xlu0 %1554
    %v1558 = vsel %vm1531, %v1552, 0
    %1560 = vmatprep.subr.mxu0 0.0
    %v1561 = vand.u32 %v1555, 4294901760
    %1562 = vmatpush1.msra.mxu0 %v1561
    %1563 = vmatprep.subr.mxu0 0.0
    %1564 = vmatpush1.msra.mxu0 0.0
    %1565 = vmatprep.subr.mxu0 0.0
    %1566 = vmatpush1.msra.mxu0 0.0
    %1567 = vmatprep.subr.mxu0 0.0
    %1568 = vmatpush1.msra.mxu0 0.0
    %1569 = vmatprep.subr.mxu0 0.0
    %1570 = vmatpush1.msra.mxu0 0.0
    %1571 = vmatprep.subr.mxu0 0.0
    %1572 = vmatpush1.msra.mxu0 0.0
    %1573 = vmatprep.subr.mxu0 0.0
    %1574 = vmatpush1.msra.mxu0 0.0
    %1575 = vmatprep.subr.mxu0 0.0
    %1576 = vmatpush1.msra.mxu0 0.0
    %1577 = vmatprep.subr.mxu0 0.0
    %1578 = vmatpush1.msra.mxu0 0.0
    %1579 = vmatprep.subr.mxu0 0.0
    %1580 = vmatpush1.msra.mxu0 0.0
    %1581 = vmatprep.subr.mxu0 0.0
    %1582 = vmatpush1.msra.mxu0 0.0
    %1583 = vmatprep.subr.mxu0 0.0
    %1584 = vmatpush1.msra.mxu0 0.0
    %1585 = vmatprep.subr.mxu0 0.0
    %1586 = vmatpush1.msra.mxu0 0.0
    %1587 = vmatprep.subr.mxu0 0.0
    %1588 = vmatpush1.msra.mxu0 0.0
    %1589 = vmatprep.subr.mxu0 0.0
    %1590 = vmatpush1.msra.mxu0 0.0
    %1591 = vmatprep.subr.mxu0 0.0
    %1592 = vmatpush1.msra.mxu0 0.0
    %1593 = vmatprep.subr.mxu0 0.0
    %1594 = vmatpush1.msra.mxu0 0.0
    %1595 = vmatprep.subr.mxu0 0.0
    %1596 = vmatpush1.msra.mxu0 0.0
    %1597 = vmatprep.subr.mxu0 0.0
    %1598 = vmatpush1.msra.mxu0 0.0
    %1599 = vmatprep.subr.mxu0 0.0
    %1600 = vmatpush1.msra.mxu0 0.0
    %1601 = vmatprep.subr.mxu0 0.0
    %1602 = vmatpush1.msra.mxu0 0.0
    %1603 = vmatprep.subr.mxu0 0.0
    %1604 = vmatpush1.msra.mxu0 0.0
    %1605 = vmatprep.subr.mxu0 0.0
    %1606 = vmatpush1.msra.mxu0 0.0
    %1607 = vmatprep.subr.mxu0 0.0
    %1608 = vmatpush1.msra.mxu0 0.0
    %1609 = vmatprep.subr.mxu0 0.0
    %1610 = vmatpush1.msra.mxu0 0.0
    %1611 = vmatprep.subr.mxu0 0.0
    %1612 = vmatpush1.msra.mxu0 0.0
    %1613 = vmatprep.subr.mxu0 0.0
    %1614 = vmatpush1.msra.mxu0 0.0
    %1615 = vmatprep.subr.mxu0 0.0
    %1616 = vmatpush1.msra.mxu0 0.0
    %1617 = vmatprep.subr.mxu0 0.0
    %1618 = vmatpush1.msra.mxu0 0.0
    %1619 = vmatprep.subr.mxu0 0.0
    %1620 = vmatpush1.msra.mxu0 0.0
    %1621 = vmatprep.subr.mxu0 0.0
    %1622 = vmatpush1.msra.mxu0 0.0
    %1623 = vmatprep.subr.mxu0 0.0
    %1624 = vmatpush1.msra.mxu0 0.0
    %1625 = vmatprep.mubr.f32.mxu0 0.0
    %v1626 = vand.u32 %v1558, 4294901760
    %v1627 = vsub.f32 %v1558, %v1626
    %v1628 = vand.u32 %v1627, 4294901760
    %v1629 = vsub.f32 %v1627, %v1628
    %v1630 = vand.u32 %v1629, 4294901760
    %1631 = vmatmul.mubr.f32.gmra.mrb[0].mxu0 %v1630
    %v1632 = vpop.f32.mrb[0].mxu0
    %v1633 = vadd.f32 0.0, %v1632
    %v1634 = vpop.f32.mrb[0].mxu0
    %1635 = vdwg.mxu0
    %1636 = vmatprep.subr.mxu0 0.0
    %v1637 = vand.u32 %v1555, 4294901760
    %v1638 = vsub.f32 %v1555, %v1637
    %v1639 = vand.u32 %v1638, 4294901760
    %v1640 = vsub.f32 %v1638, %v1639
    %v1641 = vand.u32 %v1640, 4294901760
    %1642 = vmatpush1.msra.mxu0 %v1641
    %1643 = vmatprep.subr.mxu0 0.0
    %1644 = vmatpush1.msra.mxu0 0.0
    %1645 = vmatprep.subr.mxu0 0.0
    %1646 = vmatpush1.msra.mxu0 0.0
    %1647 = vmatprep.subr.mxu0 0.0
    %1648 = vmatpush1.msra.mxu0 0.0
    %1649 = vmatprep.subr.mxu0 0.0
    %1650 = vmatpush1.msra.mxu0 0.0
    %1651 = vmatprep.subr.mxu0 0.0
    %1652 = vmatpush1.msra.mxu0 0.0
    %1653 = vmatprep.subr.mxu0 0.0
    %1654 = vmatpush1.msra.mxu0 0.0
    %1655 = vmatprep.subr.mxu0 0.0
    %1656 = vmatpush1.msra.mxu0 0.0
    %1657 = vmatprep.subr.mxu0 0.0
    %1658 = vmatpush1.msra.mxu0 0.0
    %1659 = vmatprep.subr.mxu0 0.0
    %1660 = vmatpush1.msra.mxu0 0.0
    %1661 = vmatprep.subr.mxu0 0.0
    %1662 = vmatpush1.msra.mxu0 0.0
    %1663 = vmatprep.subr.mxu0 0.0
    %1664 = vmatpush1.msra.mxu0 0.0
    %1665 = vmatprep.subr.mxu0 0.0
    %1666 = vmatpush1.msra.mxu0 0.0
    %1667 = vmatprep.subr.mxu0 0.0
    %1668 = vmatpush1.msra.mxu0 0.0
    %1669 = vmatprep.subr.mxu0 0.0
    %1670 = vmatpush1.msra.mxu0 0.0
    %1671 = vmatprep.subr.mxu0 0.0
    %1672 = vmatpush1.msra.mxu0 0.0
    %1673 = vmatprep.subr.mxu0 0.0
    %1674 = vmatpush1.msra.mxu0 0.0
    %1675 = vmatprep.subr.mxu0 0.0
    %1676 = vmatpush1.msra.mxu0 0.0
    %1677 = vmatprep.subr.mxu0 0.0
    %1678 = vmatpush1.msra.mxu0 0.0
    %1679 = vmatprep.subr.mxu0 0.0
    %1680 = vmatpush1.msra.mxu0 0.0
    %1681 = vmatprep.subr.mxu0 0.0
    %1682 = vmatpush1.msra.mxu0 0.0
    %1683 = vmatprep.subr.mxu0 0.0
    %1684 = vmatpush1.msra.mxu0 0.0
    %1685 = vmatprep.subr.mxu0 0.0
    %1686 = vmatpush1.msra.mxu0 0.0
    %1687 = vmatprep.subr.mxu0 0.0
    %1688 = vmatpush1.msra.mxu0 0.0
    %1689 = vmatprep.subr.mxu0 0.0
    %1690 = vmatpush1.msra.mxu0 0.0
    %1691 = vmatprep.subr.mxu0 0.0
    %1692 = vmatpush1.msra.mxu0 0.0
    %1693 = vmatprep.subr.mxu0 0.0
    %1694 = vmatpush1.msra.mxu0 0.0
    %1695 = vmatprep.subr.mxu0 0.0
    %1696 = vmatpush1.msra.mxu0 0.0
    %1697 = vmatprep.subr.mxu0 0.0
    %1698 = vmatpush1.msra.mxu0 0.0
    %1699 = vmatprep.subr.mxu0 0.0
    %1700 = vmatpush1.msra.mxu0 0.0
    %1701 = vmatprep.subr.mxu0 0.0
    %1702 = vmatpush1.msra.mxu0 0.0
    %1703 = vmatprep.subr.mxu0 0.0
    %1704 = vmatpush1.msra.mxu0 0.0
    %1705 = vmatprep.mubr.f32.mxu0 0.0
    %v1706 = vand.u32 %v1558, 4294901760
    %1707 = vmatmul.mubr.f32.gmra.mrb[0].mxu0 %v1706
    %v1708 = vpop.f32.mrb[0].mxu0
    %v1709 = vadd.f32 %v1633, %v1708
    %v1710 = vpop.f32.mrb[0].mxu0
    %1711 = vdwg.mxu0
    %1712 = vmatprep.subr.mxu0 0.0
    %v1713 = vand.u32 %v1555, 4294901760
    %v1714 = vsub.f32 %v1555, %v1713
    %1715 = vmatpush1.msra.mxu0 %v1714
    %1716 = vmatprep.subr.mxu0 0.0
    %1717 = vmatpush1.msra.mxu0 0.0
    %1718 = vmatprep.subr.mxu0 0.0
    %1719 = vmatpush1.msra.mxu0 0.0
    %1720 = vmatprep.subr.mxu0 0.0
    %1721 = vmatpush1.msra.mxu0 0.0
    %1722 = vmatprep.subr.mxu0 0.0
    %1723 = vmatpush1.msra.mxu0 0.0
    %1724 = vmatprep.subr.mxu0 0.0
    %1725 = vmatpush1.msra.mxu0 0.0
    %1726 = vmatprep.subr.mxu0 0.0
    %1727 = vmatpush1.msra.mxu0 0.0
    %1728 = vmatprep.subr.mxu0 0.0
    %1729 = vmatpush1.msra.mxu0 0.0
    %1730 = vmatprep.subr.mxu0 0.0
    %1731 = vmatpush1.msra.mxu0 0.0
    %1732 = vmatprep.subr.mxu0 0.0
    %1733 = vmatpush1.msra.mxu0 0.0
    %1734 = vmatprep.subr.mxu0 0.0
    %1735 = vmatpush1.msra.mxu0 0.0
    %1736 = vmatprep.subr.mxu0 0.0
    %1737 = vmatpush1.msra.mxu0 0.0
    %1738 = vmatprep.subr.mxu0 0.0
    %1739 = vmatpush1.msra.mxu0 0.0
    %1740 = vmatprep.subr.mxu0 0.0
    %1741 = vmatpush1.msra.mxu0 0.0
    %1742 = vmatprep.subr.mxu0 0.0
    %1743 = vmatpush1.msra.mxu0 0.0
    %1744 = vmatprep.subr.mxu0 0.0
    %1745 = vmatpush1.msra.mxu0 0.0
    %1746 = vmatprep.subr.mxu0 0.0
    %1747 = vmatpush1.msra.mxu0 0.0
    %1748 = vmatprep.subr.mxu0 0.0
    %1749 = vmatpush1.msra.mxu0 0.0
    %1750 = vmatprep.subr.mxu0 0.0
    %1751 = vmatpush1.msra.mxu0 0.0
    %1752 = vmatprep.subr.mxu0 0.0
    %1753 = vmatpush1.msra.mxu0 0.0
    %1754 = vmatprep.subr.mxu0 0.0
    %1755 = vmatpush1.msra.mxu0 0.0
    %1756 = vmatprep.subr.mxu0 0.0
    %1757 = vmatpush1.msra.mxu0 0.0
    %1758 = vmatprep.subr.mxu0 0.0
    %1759 = vmatpush1.msra.mxu0 0.0
    %1760 = vmatprep.subr.mxu0 0.0
    %1761 = vmatpush1.msra.mxu0 0.0
    %1762 = vmatprep.subr.mxu0 0.0
    %1763 = vmatpush1.msra.mxu0 0.0
    %1764 = vmatprep.subr.mxu0 0.0
    %1765 = vmatpush1.msra.mxu0 0.0
    %1766 = vmatprep.subr.mxu0 0.0
    %1767 = vmatpush1.msra.mxu0 0.0
    %1768 = vmatprep.subr.mxu0 0.0
    %1769 = vmatpush1.msra.mxu0 0.0
    %1770 = vmatprep.subr.mxu0 0.0
    %1771 = vmatpush1.msra.mxu0 0.0
    %1772 = vmatprep.subr.mxu0 0.0
    %1773 = vmatpush1.msra.mxu0 0.0
    %1774 = vmatprep.subr.mxu0 0.0
    %1775 = vmatpush1.msra.mxu0 0.0
    %1776 = vmatprep.subr.mxu0 0.0
    %1777 = vmatpush1.msra.mxu0 0.0
    %1778 = vmatprep.mubr.f32.mxu0 0.0
    %v1779 = vand.u32 %v1558, 4294901760
    %v1780 = vsub.f32 %v1558, %v1779
    %1781 = vmatmul.mubr.f32.gmra.mrb[0].mxu0 %v1780
    %v1782 = vpop.f32.mrb[0].mxu0
    %v1783 = vadd.f32 %v1709, %v1782
    %v1784 = vpop.f32.mrb[0].mxu0
    %1785 = vdwg.mxu0
    %1786 = vmatprep.subr.mxu0 0.0
    %v1787 = vand.u32 %v1555, 4294901760
    %1788 = vmatpush1.msra.mxu0 %v1787
    %1789 = vmatprep.subr.mxu0 0.0
    %1790 = vmatpush1.msra.mxu0 0.0
    %1791 = vmatprep.subr.mxu0 0.0
    %1792 = vmatpush1.msra.mxu0 0.0
    %1793 = vmatprep.subr.mxu0 0.0
    %1794 = vmatpush1.msra.mxu0 0.0
    %1795 = vmatprep.subr.mxu0 0.0
    %1796 = vmatpush1.msra.mxu0 0.0
    %1797 = vmatprep.subr.mxu0 0.0
    %1798 = vmatpush1.msra.mxu0 0.0
    %1799 = vmatprep.subr.mxu0 0.0
    %1800 = vmatpush1.msra.mxu0 0.0
    %1801 = vmatprep.subr.mxu0 0.0
    %1802 = vmatpush1.msra.mxu0 0.0
    %1803 = vmatprep.subr.mxu0 0.0
    %1804 = vmatpush1.msra.mxu0 0.0
    %1805 = vmatprep.subr.mxu0 0.0
    %1806 = vmatpush1.msra.mxu0 0.0
    %1807 = vmatprep.subr.mxu0 0.0
    %1808 = vmatpush1.msra.mxu0 0.0
    %1809 = vmatprep.subr.mxu0 0.0
    %1810 = vmatpush1.msra.mxu0 0.0
    %1811 = vmatprep.subr.mxu0 0.0
    %1812 = vmatpush1.msra.mxu0 0.0
    %1813 = vmatprep.subr.mxu0 0.0
    %1814 = vmatpush1.msra.mxu0 0.0
    %1815 = vmatprep.subr.mxu0 0.0
    %1816 = vmatpush1.msra.mxu0 0.0
    %1817 = vmatprep.subr.mxu0 0.0
    %1818 = vmatpush1.msra.mxu0 0.0
    %1819 = vmatprep.subr.mxu0 0.0
    %1820 = vmatpush1.msra.mxu0 0.0
    %1821 = vmatprep.subr.mxu0 0.0
    %1822 = vmatpush1.msra.mxu0 0.0
    %1823 = vmatprep.subr.mxu0 0.0
    %1824 = vmatpush1.msra.mxu0 0.0
    %1825 = vmatprep.subr.mxu0 0.0
    %1826 = vmatpush1.msra.mxu0 0.0
    %1827 = vmatprep.subr.mxu0 0.0
    %1828 = vmatpush1.msra.mxu0 0.0
    %1829 = vmatprep.subr.mxu0 0.0
    %1830 = vmatpush1.msra.mxu0 0.0
    %1831 = vmatprep.subr.mxu0 0.0
    %1832 = vmatpush1.msra.mxu0 0.0
    %1833 = vmatprep.subr.mxu0 0.0
    %1834 = vmatpush1.msra.mxu0 0.0
    %1835 = vmatprep.subr.mxu0 0.0
    %1836 = vmatpush1.msra.mxu0 0.0
    %1837 = vmatprep.subr.mxu0 0.0
    %1838 = vmatpush1.msra.mxu0 0.0
    %1839 = vmatprep.subr.mxu0 0.0
    %1840 = vmatpush1.msra.mxu0 0.0
    %1841 = vmatprep.subr.mxu0 0.0
    %1842 = vmatpush1.msra.mxu0 0.0
    %1843 = vmatprep.subr.mxu0 0.0
    %1844 = vmatpush1.msra.mxu0 0.0
    %1845 = vmatprep.subr.mxu0 0.0
    %1846 = vmatpush1.msra.mxu0 0.0
    %1847 = vmatprep.subr.mxu0 0.0
    %1848 = vmatpush1.msra.mxu0 0.0
    %1849 = vmatprep.subr.mxu0 0.0
    %1850 = vmatpush1.msra.mxu0 0.0
    %1851 = vmatprep.mubr.f32.mxu0 0.0
    %v1852 = vand.u32 %v1558, 4294901760
    %v1853 = vsub.f32 %v1558, %v1852
    %v1854 = vand.u32 %v1853, 4294901760
    %1855 = vmatmul.mubr.f32.gmra.mrb[0].mxu0 %v1854
    %v1856 = vpop.f32.mrb[0].mxu0
    %v1857 = vadd.f32 %v1783, %v1856
    %v1858 = vpop.f32.mrb[0].mxu0
    %1859 = vdwg.mxu0
    %1860 = vmatprep.subr.mxu0 0.0
    %v1861 = vand.u32 %v1555, 4294901760
    %v1862 = vsub.f32 %v1555, %v1861
    %v1863 = vand.u32 %v1862, 4294901760
    %1864 = vmatpush1.msra.mxu0 %v1863
    %1865 = vmatprep.subr.mxu0 0.0
    %1866 = vmatpush1.msra.mxu0 0.0
    %1867 = vmatprep.subr.mxu0 0.0
    %1868 = vmatpush1.msra.mxu0 0.0
    %1869 = vmatprep.subr.mxu0 0.0
    %1870 = vmatpush1.msra.mxu0 0.0
    %1871 = vmatprep.subr.mxu0 0.0
    %1872 = vmatpush1.msra.mxu0 0.0
    %1873 = vmatprep.subr.mxu0 0.0
    %1874 = vmatpush1.msra.mxu0 0.0
    %1875 = vmatprep.subr.mxu0 0.0
    %1876 = vmatpush1.msra.mxu0 0.0
    %1877 = vmatprep.subr.mxu0 0.0
    %1878 = vmatpush1.msra.mxu0 0.0
    %1879 = vmatprep.subr.mxu0 0.0
    %1880 = vmatpush1.msra.mxu0 0.0
    %1881 = vmatprep.subr.mxu0 0.0
    %1882 = vmatpush1.msra.mxu0 0.0
    %1883 = vmatprep.subr.mxu0 0.0
    %1884 = vmatpush1.msra.mxu0 0.0
    %1885 = vmatprep.subr.mxu0 0.0
    %1886 = vmatpush1.msra.mxu0 0.0
    %1887 = vmatprep.subr.mxu0 0.0
    %1888 = vmatpush1.msra.mxu0 0.0
    %1889 = vmatprep.subr.mxu0 0.0
    %1890 = vmatpush1.msra.mxu0 0.0
    %1891 = vmatprep.subr.mxu0 0.0
    %1892 = vmatpush1.msra.mxu0 0.0
    %1893 = vmatprep.subr.mxu0 0.0
    %1894 = vmatpush1.msra.mxu0 0.0
    %1895 = vmatprep.subr.mxu0 0.0
    %1896 = vmatpush1.msra.mxu0 0.0
    %1897 = vmatprep.subr.mxu0 0.0
    %1898 = vmatpush1.msra.mxu0 0.0
    %1899 = vmatprep.subr.mxu0 0.0
    %1900 = vmatpush1.msra.mxu0 0.0
    %1901 = vmatprep.subr.mxu0 0.0
    %1902 = vmatpush1.msra.mxu0 0.0
    %1903 = vmatprep.subr.mxu0 0.0
    %1904 = vmatpush1.msra.mxu0 0.0
    %1905 = vmatprep.subr.mxu0 0.0
    %1906 = vmatpush1.msra.mxu0 0.0
    %1907 = vmatprep.subr.mxu0 0.0
    %1908 = vmatpush1.msra.mxu0 0.0
    %1909 = vmatprep.subr.mxu0 0.0
    %1910 = vmatpush1.msra.mxu0 0.0
    %1911 = vmatprep.subr.mxu0 0.0
    %1912 = vmatpush1.msra.mxu0 0.0
    %1913 = vmatprep.subr.mxu0 0.0
    %1914 = vmatpush1.msra.mxu0 0.0
    %1915 = vmatprep.subr.mxu0 0.0
    %1916 = vmatpush1.msra.mxu0 0.0
    %1917 = vmatprep.subr.mxu0 0.0
    %1918 = vmatpush1.msra.mxu0 0.0
    %1919 = vmatprep.subr.mxu0 0.0
    %1920 = vmatpush1.msra.mxu0 0.0
    %1921 = vmatprep.subr.mxu0 0.0
    %1922 = vmatpush1.msra.mxu0 0.0
    %1923 = vmatprep.subr.mxu0 0.0
    %1924 = vmatpush1.msra.mxu0 0.0
    %1925 = vmatprep.subr.mxu0 0.0
    %1926 = vmatpush1.msra.mxu0 0.0
    %1927 = vmatprep.mubr.f32.mxu0 0.0
    %v1928 = vand.u32 %v1558, 4294901760
    %1929 = vmatmul.mubr.f32.gmra.mrb[0].mxu0 %v1928
    %v1930 = vpop.f32.mrb[0].mxu0
    %v1931 = vadd.f32 %v1857, %v1930
    %v1932 = vpop.f32.mrb[0].mxu0
    %1933 = vdwg.mxu0
    %1934 = vmatprep.subr.mxu0 0.0
    %v1935 = vand.u32 %v1555, 4294901760
    %1936 = vmatpush1.msra.mxu0 %v1935
    %1937 = vmatprep.subr.mxu0 0.0
    %1938 = vmatpush1.msra.mxu0 0.0
    %1939 = vmatprep.subr.mxu0 0.0
    %1940 = vmatpush1.msra.mxu0 0.0
    %1941 = vmatprep.subr.mxu0 0.0
    %1942 = vmatpush1.msra.mxu0 0.0
    %1943 = vmatprep.subr.mxu0 0.0
    %1944 = vmatpush1.msra.mxu0 0.0
    %1945 = vmatprep.subr.mxu0 0.0
    %1946 = vmatpush1.msra.mxu0 0.0
    %1947 = vmatprep.subr.mxu0 0.0
    %1948 = vmatpush1.msra.mxu0 0.0
    %1949 = vmatprep.subr.mxu0 0.0
    %1950 = vmatpush1.msra.mxu0 0.0
    %1951 = vmatprep.subr.mxu0 0.0
    %1952 = vmatpush1.msra.mxu0 0.0
    %1953 = vmatprep.subr.mxu0 0.0
    %1954 = vmatpush1.msra.mxu0 0.0
    %1955 = vmatprep.subr.mxu0 0.0
    %1956 = vmatpush1.msra.mxu0 0.0
    %1957 = vmatprep.subr.mxu0 0.0
    %1958 = vmatpush1.msra.mxu0 0.0
    %1959 = vmatprep.subr.mxu0 0.0
    %1960 = vmatpush1.msra.mxu0 0.0
    %1961 = vmatprep.subr.mxu0 0.0
    %1962 = vmatpush1.msra.mxu0 0.0
    %1963 = vmatprep.subr.mxu0 0.0
    %1964 = vmatpush1.msra.mxu0 0.0
    %1965 = vmatprep.subr.mxu0 0.0
    %1966 = vmatpush1.msra.mxu0 0.0
    %1967 = vmatprep.subr.mxu0 0.0
    %1968 = vmatpush1.msra.mxu0 0.0
    %1969 = vmatprep.subr.mxu0 0.0
    %1970 = vmatpush1.msra.mxu0 0.0
    %1971 = vmatprep.subr.mxu0 0.0
    %1972 = vmatpush1.msra.mxu0 0.0
    %1973 = vmatprep.subr.mxu0 0.0
    %1974 = vmatpush1.msra.mxu0 0.0
    %1975 = vmatprep.subr.mxu0 0.0
    %1976 = vmatpush1.msra.mxu0 0.0
    %1977 = vmatprep.subr.mxu0 0.0
    %1978 = vmatpush1.msra.mxu0 0.0
    %1979 = vmatprep.subr.mxu0 0.0
    %1980 = vmatpush1.msra.mxu0 0.0
    %1981 = vmatprep.subr.mxu0 0.0
    %1982 = vmatpush1.msra.mxu0 0.0
    %1983 = vmatprep.subr.mxu0 0.0
    %1984 = vmatpush1.msra.mxu0 0.0
    %1985 = vmatprep.subr.mxu0 0.0
    %1986 = vmatpush1.msra.mxu0 0.0
    %1987 = vmatprep.subr.mxu0 0.0
    %1988 = vmatpush1.msra.mxu0 0.0
    %1989 = vmatprep.subr.mxu0 0.0
    %1990 = vmatpush1.msra.mxu0 0.0
    %1991 = vmatprep.subr.mxu0 0.0
    %1992 = vmatpush1.msra.mxu0 0.0
    %1993 = vmatprep.subr.mxu0 0.0
    %1994 = vmatpush1.msra.mxu0 0.0
    %1995 = vmatprep.subr.mxu0 0.0
    %1996 = vmatpush1.msra.mxu0 0.0
    %1997 = vmatprep.subr.mxu0 0.0
    %1998 = vmatpush1.msra.mxu0 0.0
    %1999 = vmatprep.mubr.f32.mxu0 0.0
    %v2000 = vand.u32 %v1558, 4294901760
    %2001 = vmatmul.mubr.f32.gmra.mrb[0].mxu0 %v2000
    %v2002 = vpop.f32.mrb[0].mxu0
    %v2003 = vadd.f32 %v1931, %v2002
    %v2004 = vpop.f32.mrb[0].mxu0
    %2005 = vdwg.mxu0
    %2006 = vrot.lane.b32.xlu0 %v617, 64
    %v2007 = vpop.permute.xlu0 %2006
    %v2010 = vsel %vm1531, %v1553, 0
    %2012 = vmatprep.subr.mxu0 0.0
    %v2013 = vand.u32 %v2007, 4294901760
    %2014 = vmatpush1.msra.mxu0 %v2013
    %2015 = vmatprep.subr.mxu0 0.0
    %2016 = vmatpush1.msra.mxu0 0.0
    %2017 = vmatprep.subr.mxu0 0.0
    %2018 = vmatpush1.msra.mxu0 0.0
    %2019 = vmatprep.subr.mxu0 0.0
    %2020 = vmatpush1.msra.mxu0 0.0
    %2021 = vmatprep.subr.mxu0 0.0
    %2022 = vmatpush1.msra.mxu0 0.0
    %2023 = vmatprep.subr.mxu0 0.0
    %2024 = vmatpush1.msra.mxu0 0.0
    %2025 = vmatprep.subr.mxu0 0.0
    %2026 = vmatpush1.msra.mxu0 0.0
    %2027 = vmatprep.subr.mxu0 0.0
    %2028 = vmatpush1.msra.mxu0 0.0
    %2029 = vmatprep.subr.mxu0 0.0
    %2030 = vmatpush1.msra.mxu0 0.0
    %2031 = vmatprep.subr.mxu0 0.0
    %2032 = vmatpush1.msra.mxu0 0.0
    %2033 = vmatprep.subr.mxu0 0.0
    %2034 = vmatpush1.msra.mxu0 0.0
    %2035 = vmatprep.subr.mxu0 0.0
    %2036 = vmatpush1.msra.mxu0 0.0
    %2037 = vmatprep.subr.mxu0 0.0
    %2038 = vmatpush1.msra.mxu0 0.0
    %2039 = vmatprep.subr.mxu0 0.0
    %2040 = vmatpush1.msra.mxu0 0.0
    %2041 = vmatprep.subr.mxu0 0.0
    %2042 = vmatpush1.msra.mxu0 0.0
    %2043 = vmatprep.subr.mxu0 0.0
    %2044 = vmatpush1.msra.mxu0 0.0
    %2045 = vmatprep.subr.mxu0 0.0
    %2046 = vmatpush1.msra.mxu0 0.0
    %2047 = vmatprep.subr.mxu0 0.0
    %2048 = vmatpush1.msra.mxu0 0.0
    %2049 = vmatprep.subr.mxu0 0.0
    %2050 = vmatpush1.msra.mxu0 0.0
    %2051 = vmatprep.subr.mxu0 0.0
    %2052 = vmatpush1.msra.mxu0 0.0
    %2053 = vmatprep.subr.mxu0 0.0
    %2054 = vmatpush1.msra.mxu0 0.0
    %2055 = vmatprep.subr.mxu0 0.0
    %2056 = vmatpush1.msra.mxu0 0.0
    %2057 = vmatprep.subr.mxu0 0.0
    %2058 = vmatpush1.msra.mxu0 0.0
    %2059 = vmatprep.subr.mxu0 0.0
    %2060 = vmatpush1.msra.mxu0 0.0
    %2061 = vmatprep.subr.mxu0 0.0
    %2062 = vmatpush1.msra.mxu0 0.0
    %2063 = vmatprep.subr.mxu0 0.0
    %2064 = vmatpush1.msra.mxu0 0.0
    %2065 = vmatprep.subr.mxu0 0.0
    %2066 = vmatpush1.msra.mxu0 0.0
    %2067 = vmatprep.subr.mxu0 0.0
    %2068 = vmatpush1.msra.mxu0 0.0
    %2069 = vmatprep.subr.mxu0 0.0
    %2070 = vmatpush1.msra.mxu0 0.0
    %2071 = vmatprep.subr.mxu0 0.0
    %2072 = vmatpush1.msra.mxu0 0.0
    %2073 = vmatprep.subr.mxu0 0.0
    %2074 = vmatpush1.msra.mxu0 0.0
    %2075 = vmatprep.subr.mxu0 0.0
    %2076 = vmatpush1.msra.mxu0 0.0
    %2077 = vmatprep.mubr.f32.mxu0 0.0
    %v2078 = vand.u32 %v2010, 4294901760
    %v2079 = vsub.f32 %v2010, %v2078
    %v2080 = vand.u32 %v2079, 4294901760
    %v2081 = vsub.f32 %v2079, %v2080
    %v2082 = vand.u32 %v2081, 4294901760
    %2083 = vmatmul.mubr.f32.gmra.mrb[0].mxu0 %v2082
    %v2084 = vpop.f32.mrb[0].mxu0
    %v2085 = vadd.f32 0.0, %v2084
    %v2086 = vpop.f32.mrb[0].mxu0
    %2087 = vdwg.mxu0
    %2088 = vmatprep.subr.mxu0 0.0
    %v2089 = vand.u32 %v2007, 4294901760
    %v2090 = vsub.f32 %v2007, %v2089
    %v2091 = vand.u32 %v2090, 4294901760
    %v2092 = vsub.f32 %v2090, %v2091
    %v2093 = vand.u32 %v2092, 4294901760
    %2094 = vmatpush1.msra.mxu0 %v2093
    %2095 = vmatprep.subr.mxu0 0.0
    %2096 = vmatpush1.msra.mxu0 0.0
    %2097 = vmatprep.subr.mxu0 0.0
    %2098 = vmatpush1.msra.mxu0 0.0
    %2099 = vmatprep.subr.mxu0 0.0
    %2100 = vmatpush1.msra.mxu0 0.0
    %2101 = vmatprep.subr.mxu0 0.0
    %2102 = vmatpush1.msra.mxu0 0.0
    %2103 = vmatprep.subr.mxu0 0.0
    %2104 = vmatpush1.msra.mxu0 0.0
    %2105 = vmatprep.subr.mxu0 0.0
    %2106 = vmatpush1.msra.mxu0 0.0
    %2107 = vmatprep.subr.mxu0 0.0
    %2108 = vmatpush1.msra.mxu0 0.0
    %2109 = vmatprep.subr.mxu0 0.0
    %2110 = vmatpush1.msra.mxu0 0.0
    %2111 = vmatprep.subr.mxu0 0.0
    %2112 = vmatpush1.msra.mxu0 0.0
    %2113 = vmatprep.subr.mxu0 0.0
    %2114 = vmatpush1.msra.mxu0 0.0
    %2115 = vmatprep.subr.mxu0 0.0
    %2116 = vmatpush1.msra.mxu0 0.0
    %2117 = vmatprep.subr.mxu0 0.0
    %2118 = vmatpush1.msra.mxu0 0.0
    %2119 = vmatprep.subr.mxu0 0.0
    %2120 = vmatpush1.msra.mxu0 0.0
    %2121 = vmatprep.subr.mxu0 0.0
    %2122 = vmatpush1.msra.mxu0 0.0
    %2123 = vmatprep.subr.mxu0 0.0
    %2124 = vmatpush1.msra.mxu0 0.0
    %2125 = vmatprep.subr.mxu0 0.0
    %2126 = vmatpush1.msra.mxu0 0.0
    %2127 = vmatprep.subr.mxu0 0.0
    %2128 = vmatpush1.msra.mxu0 0.0
    %2129 = vmatprep.subr.mxu0 0.0
    %2130 = vmatpush1.msra.mxu0 0.0
    %2131 = vmatprep.subr.mxu0 0.0
    %2132 = vmatpush1.msra.mxu0 0.0
    %2133 = vmatprep.subr.mxu0 0.0
    %2134 = vmatpush1.msra.mxu0 0.0
    %2135 = vmatprep.subr.mxu0 0.0
    %2136 = vmatpush1.msra.mxu0 0.0
    %2137 = vmatprep.subr.mxu0 0.0
    %2138 = vmatpush1.msra.mxu0 0.0
    %2139 = vmatprep.subr.mxu0 0.0
    %2140 = vmatpush1.msra.mxu0 0.0
    %2141 = vmatprep.subr.mxu0 0.0
    %2142 = vmatpush1.msra.mxu0 0.0
    %2143 = vmatprep.subr.mxu0 0.0
    %2144 = vmatpush1.msra.mxu0 0.0
    %2145 = vmatprep.subr.mxu0 0.0
    %2146 = vmatpush1.msra.mxu0 0.0
    %2147 = vmatprep.subr.mxu0 0.0
    %2148 = vmatpush1.msra.mxu0 0.0
    %2149 = vmatprep.subr.mxu0 0.0
    %2150 = vmatpush1.msra.mxu0 0.0
    %2151 = vmatprep.subr.mxu0 0.0
    %2152 = vmatpush1.msra.mxu0 0.0
    %2153 = vmatprep.subr.mxu0 0.0
    %2154 = vmatpush1.msra.mxu0 0.0
    %2155 = vmatprep.subr.mxu0 0.0
    %2156 = vmatpush1.msra.mxu0 0.0
    %2157 = vmatprep.mubr.f32.mxu0 0.0
    %v2158 = vand.u32 %v2010, 4294901760
    %2159 = vmatmul.mubr.f32.gmra.mrb[0].mxu0 %v2158
    %v2160 = vpop.f32.mrb[0].mxu0
    %v2161 = vadd.f32 %v2085, %v2160
    %v2162 = vpop.f32.mrb[0].mxu0
    %2163 = vdwg.mxu0
    %2164 = vmatprep.subr.mxu0 0.0
    %v2165 = vand.u32 %v2007, 4294901760
    %v2166 = vsub.f32 %v2007, %v2165
    %2167 = vmatpush1.msra.mxu0 %v2166
    %2168 = vmatprep.subr.mxu0 0.0
    %2169 = vmatpush1.msra.mxu0 0.0
    %2170 = vmatprep.subr.mxu0 0.0
    %2171 = vmatpush1.msra.mxu0 0.0
    %2172 = vmatprep.subr.mxu0 0.0
    %2173 = vmatpush1.msra.mxu0 0.0
    %2174 = vmatprep.subr.mxu0 0.0
    %2175 = vmatpush1.msra.mxu0 0.0
    %2176 = vmatprep.subr.mxu0 0.0
    %2177 = vmatpush1.msra.mxu0 0.0
    %2178 = vmatprep.subr.mxu0 0.0
    %2179 = vmatpush1.msra.mxu0 0.0
    %2180 = vmatprep.subr.mxu0 0.0
    %2181 = vmatpush1.msra.mxu0 0.0
    %2182 = vmatprep.subr.mxu0 0.0
    %2183 = vmatpush1.msra.mxu0 0.0
    %2184 = vmatprep.subr.mxu0 0.0
    %2185 = vmatpush1.msra.mxu0 0.0
    %2186 = vmatprep.subr.mxu0 0.0
    %2187 = vmatpush1.msra.mxu0 0.0
    %2188 = vmatprep.subr.mxu0 0.0
    %2189 = vmatpush1.msra.mxu0 0.0
    %2190 = vmatprep.subr.mxu0 0.0
    %2191 = vmatpush1.msra.mxu0 0.0
    %2192 = vmatprep.subr.mxu0 0.0
    %2193 = vmatpush1.msra.mxu0 0.0
    %2194 = vmatprep.subr.mxu0 0.0
    %2195 = vmatpush1.msra.mxu0 0.0
    %2196 = vmatprep.subr.mxu0 0.0
    %2197 = vmatpush1.msra.mxu0 0.0
    %2198 = vmatprep.subr.mxu0 0.0
    %2199 = vmatpush1.msra.mxu0 0.0
    %2200 = vmatprep.subr.mxu0 0.0
    %2201 = vmatpush1.msra.mxu0 0.0
    %2202 = vmatprep.subr.mxu0 0.0
    %2203 = vmatpush1.msra.mxu0 0.0
    %2204 = vmatprep.subr.mxu0 0.0
    %2205 = vmatpush1.msra.mxu0 0.0
    %2206 = vmatprep.subr.mxu0 0.0
    %2207 = vmatpush1.msra.mxu0 0.0
    %2208 = vmatprep.subr.mxu0 0.0
    %2209 = vmatpush1.msra.mxu0 0.0
    %2210 = vmatprep.subr.mxu0 0.0
    %2211 = vmatpush1.msra.mxu0 0.0
    %2212 = vmatprep.subr.mxu0 0.0
    %2213 = vmatpush1.msra.mxu0 0.0
    %2214 = vmatprep.subr.mxu0 0.0
    %2215 = vmatpush1.msra.mxu0 0.0
    %2216 = vmatprep.subr.mxu0 0.0
    %2217 = vmatpush1.msra.mxu0 0.0
    %2218 = vmatprep.subr.mxu0 0.0
    %2219 = vmatpush1.msra.mxu0 0.0
    %2220 = vmatprep.subr.mxu0 0.0
    %2221 = vmatpush1.msra.mxu0 0.0
    %2222 = vmatprep.subr.mxu0 0.0
    %2223 = vmatpush1.msra.mxu0 0.0
    %2224 = vmatprep.subr.mxu0 0.0
    %2225 = vmatpush1.msra.mxu0 0.0
    %2226 = vmatprep.subr.mxu0 0.0
    %2227 = vmatpush1.msra.mxu0 0.0
    %2228 = vmatprep.subr.mxu0 0.0
    %2229 = vmatpush1.msra.mxu0 0.0
    %2230 = vmatprep.mubr.f32.mxu0 0.0
    %v2231 = vand.u32 %v2010, 4294901760
    %v2232 = vsub.f32 %v2010, %v2231
    %2233 = vmatmul.mubr.f32.gmra.mrb[0].mxu0 %v2232
    %v2234 = vpop.f32.mrb[0].mxu0
    %v2235 = vadd.f32 %v2161, %v2234
    %v2236 = vpop.f32.mrb[0].mxu0
    %2237 = vdwg.mxu0
    %2238 = vmatprep.subr.mxu0 0.0
    %v2239 = vand.u32 %v2007, 4294901760
    %2240 = vmatpush1.msra.mxu0 %v2239
    %2241 = vmatprep.subr.mxu0 0.0
    %2242 = vmatpush1.msra.mxu0 0.0
    %2243 = vmatprep.subr.mxu0 0.0
    %2244 = vmatpush1.msra.mxu0 0.0
    %2245 = vmatprep.subr.mxu0 0.0
    %2246 = vmatpush1.msra.mxu0 0.0
    %2247 = vmatprep.subr.mxu0 0.0
    %2248 = vmatpush1.msra.mxu0 0.0
    %2249 = vmatprep.subr.mxu0 0.0
    %2250 = vmatpush1.msra.mxu0 0.0
    %2251 = vmatprep.subr.mxu0 0.0
    %2252 = vmatpush1.msra.mxu0 0.0
    %2253 = vmatprep.subr.mxu0 0.0
    %2254 = vmatpush1.msra.mxu0 0.0
    %2255 = vmatprep.subr.mxu0 0.0
    %2256 = vmatpush1.msra.mxu0 0.0
    %2257 = vmatprep.subr.mxu0 0.0
    %2258 = vmatpush1.msra.mxu0 0.0
    %2259 = vmatprep.subr.mxu0 0.0
    %2260 = vmatpush1.msra.mxu0 0.0
    %2261 = vmatprep.subr.mxu0 0.0
    %2262 = vmatpush1.msra.mxu0 0.0
    %2263 = vmatprep.subr.mxu0 0.0
    %2264 = vmatpush1.msra.mxu0 0.0
    %2265 = vmatprep.subr.mxu0 0.0
    %2266 = vmatpush1.msra.mxu0 0.0
    %2267 = vmatprep.subr.mxu0 0.0
    %2268 = vmatpush1.msra.mxu0 0.0
    %2269 = vmatprep.subr.mxu0 0.0
    %2270 = vmatpush1.msra.mxu0 0.0
    %2271 = vmatprep.subr.mxu0 0.0
    %2272 = vmatpush1.msra.mxu0 0.0
    %2273 = vmatprep.subr.mxu0 0.0
    %2274 = vmatpush1.msra.mxu0 0.0
    %2275 = vmatprep.subr.mxu0 0.0
    %2276 = vmatpush1.msra.mxu0 0.0
    %2277 = vmatprep.subr.mxu0 0.0
    %2278 = vmatpush1.msra.mxu0 0.0
    %2279 = vmatprep.subr.mxu0 0.0
    %2280 = vmatpush1.msra.mxu0 0.0
    %2281 = vmatprep.subr.mxu0 0.0
    %2282 = vmatpush1.msra.mxu0 0.0
    %2283 = vmatprep.subr.mxu0 0.0
    %2284 = vmatpush1.msra.mxu0 0.0
    %2285 = vmatprep.subr.mxu0 0.0
    %2286 = vmatpush1.msra.mxu0 0.0
    %2287 = vmatprep.subr.mxu0 0.0
    %2288 = vmatpush1.msra.mxu0 0.0
    %2289 = vmatprep.subr.mxu0 0.0
    %2290 = vmatpush1.msra.mxu0 0.0
    %2291 = vmatprep.subr.mxu0 0.0
    %2292 = vmatpush1.msra.mxu0 0.0
    %2293 = vmatprep.subr.mxu0 0.0
    %2294 = vmatpush1.msra.mxu0 0.0
    %2295 = vmatprep.subr.mxu0 0.0
    %2296 = vmatpush1.msra.mxu0 0.0
    %2297 = vmatprep.subr.mxu0 0.0
    %2298 = vmatpush1.msra.mxu0 0.0
    %2299 = vmatprep.subr.mxu0 0.0
    %2300 = vmatpush1.msra.mxu0 0.0
    %2301 = vmatprep.subr.mxu0 0.0
    %2302 = vmatpush1.msra.mxu0 0.0
    %2303 = vmatprep.mubr.f32.mxu0 0.0
    %v2304 = vand.u32 %v2010, 4294901760
    %v2305 = vsub.f32 %v2010, %v2304
    %v2306 = vand.u32 %v2305, 4294901760
    %2307 = vmatmul.mubr.f32.gmra.mrb[0].mxu0 %v2306
    %v2308 = vpop.f32.mrb[0].mxu0
    %v2309 = vadd.f32 %v2235, %v2308
    %v2310 = vpop.f32.mrb[0].mxu0
    %2311 = vdwg.mxu0
    %2312 = vmatprep.subr.mxu0 0.0
    %v2313 = vand.u32 %v2007, 4294901760
    %v2314 = vsub.f32 %v2007, %v2313
    %v2315 = vand.u32 %v2314, 4294901760
    %2316 = vmatpush1.msra.mxu0 %v2315
    %2317 = vmatprep.subr.mxu0 0.0
    %2318 = vmatpush1.msra.mxu0 0.0
    %2319 = vmatprep.subr.mxu0 0.0
    %2320 = vmatpush1.msra.mxu0 0.0
    %2321 = vmatprep.subr.mxu0 0.0
    %2322 = vmatpush1.msra.mxu0 0.0
    %2323 = vmatprep.subr.mxu0 0.0
    %2324 = vmatpush1.msra.mxu0 0.0
    %2325 = vmatprep.subr.mxu0 0.0
    %2326 = vmatpush1.msra.mxu0 0.0
    %2327 = vmatprep.subr.mxu0 0.0
    %2328 = vmatpush1.msra.mxu0 0.0
    %2329 = vmatprep.subr.mxu0 0.0
    %2330 = vmatpush1.msra.mxu0 0.0
    %2331 = vmatprep.subr.mxu0 0.0
    %2332 = vmatpush1.msra.mxu0 0.0
    %2333 = vmatprep.subr.mxu0 0.0
    %2334 = vmatpush1.msra.mxu0 0.0
    %2335 = vmatprep.subr.mxu0 0.0
    %2336 = vmatpush1.msra.mxu0 0.0
    %2337 = vmatprep.subr.mxu0 0.0
    %2338 = vmatpush1.msra.mxu0 0.0
    %2339 = vmatprep.subr.mxu0 0.0
    %2340 = vmatpush1.msra.mxu0 0.0
    %2341 = vmatprep.subr.mxu0 0.0
    %2342 = vmatpush1.msra.mxu0 0.0
    %2343 = vmatprep.subr.mxu0 0.0
    %2344 = vmatpush1.msra.mxu0 0.0
    %2345 = vmatprep.subr.mxu0 0.0
    %2346 = vmatpush1.msra.mxu0 0.0
    %2347 = vmatprep.subr.mxu0 0.0
    %2348 = vmatpush1.msra.mxu0 0.0
    %2349 = vmatprep.subr.mxu0 0.0
    %2350 = vmatpush1.msra.mxu0 0.0
    %2351 = vmatprep.subr.mxu0 0.0
    %2352 = vmatpush1.msra.mxu0 0.0
    %2353 = vmatprep.subr.mxu0 0.0
    %2354 = vmatpush1.msra.mxu0 0.0
    %2355 = vmatprep.subr.mxu0 0.0
    %2356 = vmatpush1.msra.mxu0 0.0
    %2357 = vmatprep.subr.mxu0 0.0
    %2358 = vmatpush1.msra.mxu0 0.0
    %2359 = vmatprep.subr.mxu0 0.0
    %2360 = vmatpush1.msra.mxu0 0.0
    %2361 = vmatprep.subr.mxu0 0.0
    %2362 = vmatpush1.msra.mxu0 0.0
    %2363 = vmatprep.subr.mxu0 0.0
    %2364 = vmatpush1.msra.mxu0 0.0
    %2365 = vmatprep.subr.mxu0 0.0
    %2366 = vmatpush1.msra.mxu0 0.0
    %2367 = vmatprep.subr.mxu0 0.0
    %2368 = vmatpush1.msra.mxu0 0.0
    %2369 = vmatprep.subr.mxu0 0.0
    %2370 = vmatpush1.msra.mxu0 0.0
    %2371 = vmatprep.subr.mxu0 0.0
    %2372 = vmatpush1.msra.mxu0 0.0
    %2373 = vmatprep.subr.mxu0 0.0
    %2374 = vmatpush1.msra.mxu0 0.0
    %2375 = vmatprep.subr.mxu0 0.0
    %2376 = vmatpush1.msra.mxu0 0.0
    %2377 = vmatprep.subr.mxu0 0.0
    %2378 = vmatpush1.msra.mxu0 0.0
    %2379 = vmatprep.mubr.f32.mxu0 0.0
    %v2380 = vand.u32 %v2010, 4294901760
    %2381 = vmatmul.mubr.f32.gmra.mrb[0].mxu0 %v2380
    %v2382 = vpop.f32.mrb[0].mxu0
    %v2383 = vadd.f32 %v2309, %v2382
    %v2384 = vpop.f32.mrb[0].mxu0
    %2385 = vdwg.mxu0
    %2386 = vmatprep.subr.mxu0 0.0
    %v2387 = vand.u32 %v2007, 4294901760
    %2388 = vmatpush1.msra.mxu0 %v2387
    %2389 = vmatprep.subr.mxu0 0.0
    %2390 = vmatpush1.msra.mxu0 0.0
    %2391 = vmatprep.subr.mxu0 0.0
    %2392 = vmatpush1.msra.mxu0 0.0
    %2393 = vmatprep.subr.mxu0 0.0
    %2394 = vmatpush1.msra.mxu0 0.0
    %2395 = vmatprep.subr.mxu0 0.0
    %2396 = vmatpush1.msra.mxu0 0.0
    %2397 = vmatprep.subr.mxu0 0.0
    %2398 = vmatpush1.msra.mxu0 0.0
    %2399 = vmatprep.subr.mxu0 0.0
    %2400 = vmatpush1.msra.mxu0 0.0
    %2401 = vmatprep.subr.mxu0 0.0
    %2402 = vmatpush1.msra.mxu0 0.0
    %2403 = vmatprep.subr.mxu0 0.0
    %2404 = vmatpush1.msra.mxu0 0.0
    %2405 = vmatprep.subr.mxu0 0.0
    %2406 = vmatpush1.msra.mxu0 0.0
    %2407 = vmatprep.subr.mxu0 0.0
    %2408 = vmatpush1.msra.mxu0 0.0
    %2409 = vmatprep.subr.mxu0 0.0
    %2410 = vmatpush1.msra.mxu0 0.0
    %2411 = vmatprep.subr.mxu0 0.0
    %2412 = vmatpush1.msra.mxu0 0.0
    %2413 = vmatprep.subr.mxu0 0.0
    %2414 = vmatpush1.msra.mxu0 0.0
    %2415 = vmatprep.subr.mxu0 0.0
    %2416 = vmatpush1.msra.mxu0 0.0
    %2417 = vmatprep.subr.mxu0 0.0
    %2418 = vmatpush1.msra.mxu0 0.0
    %2419 = vmatprep.subr.mxu0 0.0
    %2420 = vmatpush1.msra.mxu0 0.0
    %2421 = vmatprep.subr.mxu0 0.0
    %2422 = vmatpush1.msra.mxu0 0.0
    %2423 = vmatprep.subr.mxu0 0.0
    %2424 = vmatpush1.msra.mxu0 0.0
    %2425 = vmatprep.subr.mxu0 0.0
    %2426 = vmatpush1.msra.mxu0 0.0
    %2427 = vmatprep.subr.mxu0 0.0
    %2428 = vmatpush1.msra.mxu0 0.0
    %2429 = vmatprep.subr.mxu0 0.0
    %2430 = vmatpush1.msra.mxu0 0.0
    %2431 = vmatprep.subr.mxu0 0.0
    %2432 = vmatpush1.msra.mxu0 0.0
    %2433 = vmatprep.subr.mxu0 0.0
    %2434 = vmatpush1.msra.mxu0 0.0
    %2435 = vmatprep.subr.mxu0 0.0
    %2436 = vmatpush1.msra.mxu0 0.0
    %2437 = vmatprep.subr.mxu0 0.0
    %2438 = vmatpush1.msra.mxu0 0.0
    %2439 = vmatprep.subr.mxu0 0.0
    %2440 = vmatpush1.msra.mxu0 0.0
    %2441 = vmatprep.subr.mxu0 0.0
    %2442 = vmatpush1.msra.mxu0 0.0
    %2443 = vmatprep.subr.mxu0 0.0
    %2444 = vmatpush1.msra.mxu0 0.0
    %2445 = vmatprep.subr.mxu0 0.0
    %2446 = vmatpush1.msra.mxu0 0.0
    %2447 = vmatprep.subr.mxu0 0.0
    %2448 = vmatpush1.msra.mxu0 0.0
    %2449 = vmatprep.subr.mxu0 0.0
    %2450 = vmatpush1.msra.mxu0 0.0
    %2451 = vmatprep.mubr.f32.mxu0 0.0
    %v2452 = vand.u32 %v2010, 4294901760
    %2453 = vmatmul.mubr.f32.gmra.mrb[0].mxu0 %v2452
    %v2454 = vpop.f32.mrb[0].mxu0
    %v2455 = vadd.f32 %v2383, %v2454
    %v2456 = vpop.f32.mrb[0].mxu0
    %2457 = vdwg.mxu0
    %v2458 = vld [vmem:[#allocation8] sm:$0xff]
    %v2459 = vld [vmem:[#allocation8 + $0x8] sm:$0xff]
    %v2461 = vsel %vm627, %v2003, 0
    %v2464 = vsel %vm627, %v2455, 0
    %2466 = vmatprep.subr.mxu0 0.0
    %v2467 = vand.u32 %v2458, 4294901760
    %2468 = vmatpush1.msra.mxu0 %v2467
    %2469 = vmatprep.subr.mxu0 0.0
    %v2470 = vand.u32 %v2459, 4294901760
    %2471 = vmatpush1.msra.mxu0 %v2470
    %2472 = vmatprep.subr.mxu0 0.0
    %2473 = vmatpush1.msra.mxu0 0.0
    %2474 = vmatprep.subr.mxu0 0.0
    %2475 = vmatpush1.msra.mxu0 0.0
    %2476 = vmatprep.subr.mxu0 0.0
    %2477 = vmatpush1.msra.mxu0 0.0
    %2478 = vmatprep.subr.mxu0 0.0
    %2479 = vmatpush1.msra.mxu0 0.0
    %2480 = vmatprep.subr.mxu0 0.0
    %2481 = vmatpush1.msra.mxu0 0.0
    %2482 = vmatprep.subr.mxu0 0.0
    %2483 = vmatpush1.msra.mxu0 0.0
    %2484 = vmatprep.subr.mxu0 0.0
    %2485 = vmatpush1.msra.mxu0 0.0
    %2486 = vmatprep.subr.mxu0 0.0
    %2487 = vmatpush1.msra.mxu0 0.0
    %2488 = vmatprep.subr.mxu0 0.0
    %2489 = vmatpush1.msra.mxu0 0.0
    %2490 = vmatprep.subr.mxu0 0.0
    %2491 = vmatpush1.msra.mxu0 0.0
    %2492 = vmatprep.subr.mxu0 0.0
    %2493 = vmatpush1.msra.mxu0 0.0
    %2494 = vmatprep.subr.mxu0 0.0
    %2495 = vmatpush1.msra.mxu0 0.0
    %2496 = vmatprep.subr.mxu0 0.0
    %2497 = vmatpush1.msra.mxu0 0.0
    %2498 = vmatprep.subr.mxu0 0.0
    %2499 = vmatpush1.msra.mxu0 0.0
    %2500 = vmatprep.subr.mxu0 0.0
    %2501 = vmatpush1.msra.mxu0 0.0
    %2502 = vmatprep.subr.mxu0 0.0
    %2503 = vmatpush1.msra.mxu0 0.0
    %2504 = vmatprep.subr.mxu0 0.0
    %2505 = vmatpush1.msra.mxu0 0.0
    %2506 = vmatprep.subr.mxu0 0.0
    %2507 = vmatpush1.msra.mxu0 0.0
    %2508 = vmatprep.subr.mxu0 0.0
    %2509 = vmatpush1.msra.mxu0 0.0
    %2510 = vmatprep.subr.mxu0 0.0
    %2511 = vmatpush1.msra.mxu0 0.0
    %2512 = vmatprep.subr.mxu0 0.0
    %2513 = vmatpush1.msra.mxu0 0.0
    %2514 = vmatprep.subr.mxu0 0.0
    %2515 = vmatpush1.msra.mxu0 0.0
    %2516 = vmatprep.subr.mxu0 0.0
    %2517 = vmatpush1.msra.mxu0 0.0
    %2518 = vmatprep.subr.mxu0 0.0
    %2519 = vmatpush1.msra.mxu0 0.0
    %2520 = vmatprep.subr.mxu0 0.0
    %2521 = vmatpush1.msra.mxu0 0.0
    %2522 = vmatprep.subr.mxu0 0.0
    %2523 = vmatpush1.msra.mxu0 0.0
    %2524 = vmatprep.subr.mxu0 0.0
    %2525 = vmatpush1.msra.mxu0 0.0
    %2526 = vmatprep.subr.mxu0 0.0
    %2527 = vmatpush1.msra.mxu0 0.0
    %2528 = vmatprep.subr.mxu0 0.0
    %2529 = vmatpush1.msra.mxu0 0.0
    %2530 = vmatprep.subr.mxu0 0.0
    %2531 = vmatpush1.msra.mxu0 0.0
    %2532 = vmatprep.mubr.f32.mxu0 0.0
    %v2533 = vand.u32 %v2461, 4294901760
    %v2534 = vsub.f32 %v2461, %v2533
    %v2535 = vand.u32 %v2534, 4294901760
    %v2536 = vsub.f32 %v2534, %v2535
    %v2537 = vand.u32 %v2536, 4294901760
    %2538 = vmatmul.mubr.f32.gmra.mrb[0].mxu0 %v2537
    %v2539 = vpop.f32.mrb[0].mxu0
    %v2540 = vadd.f32 0.0, %v2539
    %v2541 = vpop.f32.mrb[0].mxu0
    %2542 = vmatprep.mubr.f32.mxu0 0.0
    %v2543 = vand.u32 %v2464, 4294901760
    %v2544 = vsub.f32 %v2464, %v2543
    %v2545 = vand.u32 %v2544, 4294901760
    %v2546 = vsub.f32 %v2544, %v2545
    %v2547 = vand.u32 %v2546, 4294901760
    %2548 = vmatmul.mubr.f32.gmra.mrb[0].mxu0 %v2547
    %v2549 = vpop.f32.mrb[0].mxu0
    %v2550 = vadd.f32 0.0, %v2549
    %v2551 = vpop.f32.mrb[0].mxu0
    %2552 = vdwg.mxu0
    %2553 = vmatprep.subr.mxu0 0.0
    %v2554 = vand.u32 %v2458, 4294901760
    %v2555 = vsub.f32 %v2458, %v2554
    %v2556 = vand.u32 %v2555, 4294901760
    %v2557 = vsub.f32 %v2555, %v2556
    %v2558 = vand.u32 %v2557, 4294901760
    %2559 = vmatpush1.msra.mxu0 %v2558
    %2560 = vmatprep.subr.mxu0 0.0
    %v2561 = vand.u32 %v2459, 4294901760
    %v2562 = vsub.f32 %v2459, %v2561
    %v2563 = vand.u32 %v2562, 4294901760
    %v2564 = vsub.f32 %v2562, %v2563
    %v2565 = vand.u32 %v2564, 4294901760
    %2566 = vmatpush1.msra.mxu0 %v2565
    %2567 = vmatprep.subr.mxu0 0.0
    %2568 = vmatpush1.msra.mxu0 0.0
    %2569 = vmatprep.subr.mxu0 0.0
    %2570 = vmatpush1.msra.mxu0 0.0
    %2571 = vmatprep.subr.mxu0 0.0
    %2572 = vmatpush1.msra.mxu0 0.0
    %2573 = vmatprep.subr.mxu0 0.0
    %2574 = vmatpush1.msra.mxu0 0.0
    %2575 = vmatprep.subr.mxu0 0.0
    %2576 = vmatpush1.msra.mxu0 0.0
    %2577 = vmatprep.subr.mxu0 0.0
    %2578 = vmatpush1.msra.mxu0 0.0
    %2579 = vmatprep.subr.mxu0 0.0
    %2580 = vmatpush1.msra.mxu0 0.0
    %2581 = vmatprep.subr.mxu0 0.0
    %2582 = vmatpush1.msra.mxu0 0.0
    %2583 = vmatprep.subr.mxu0 0.0
    %2584 = vmatpush1.msra.mxu0 0.0
    %2585 = vmatprep.subr.mxu0 0.0
    %2586 = vmatpush1.msra.mxu0 0.0
    %2587 = vmatprep.subr.mxu0 0.0
    %2588 = vmatpush1.msra.mxu0 0.0
    %2589 = vmatprep.subr.mxu0 0.0
    %2590 = vmatpush1.msra.mxu0 0.0
    %2591 = vmatprep.subr.mxu0 0.0
    %2592 = vmatpush1.msra.mxu0 0.0
    %2593 = vmatprep.subr.mxu0 0.0
    %2594 = vmatpush1.msra.mxu0 0.0
    %2595 = vmatprep.subr.mxu0 0.0
    %2596 = vmatpush1.msra.mxu0 0.0
    %2597 = vmatprep.subr.mxu0 0.0
    %2598 = vmatpush1.msra.mxu0 0.0
    %2599 = vmatprep.subr.mxu0 0.0
    %2600 = vmatpush1.msra.mxu0 0.0
    %2601 = vmatprep.subr.mxu0 0.0
    %2602 = vmatpush1.msra.mxu0 0.0
    %2603 = vmatprep.subr.mxu0 0.0
    %2604 = vmatpush1.msra.mxu0 0.0
    %2605 = vmatprep.subr.mxu0 0.0
    %2606 = vmatpush1.msra.mxu0 0.0
    %2607 = vmatprep.subr.mxu0 0.0
    %2608 = vmatpush1.msra.mxu0 0.0
    %2609 = vmatprep.subr.mxu0 0.0
    %2610 = vmatpush1.msra.mxu0 0.0
    %2611 = vmatprep.subr.mxu0 0.0
    %2612 = vmatpush1.msra.mxu0 0.0
    %2613 = vmatprep.subr.mxu0 0.0
    %2614 = vmatpush1.msra.mxu0 0.0
    %2615 = vmatprep.subr.mxu0 0.0
    %2616 = vmatpush1.msra.mxu0 0.0
    %2617 = vmatprep.subr.mxu0 0.0
    %2618 = vmatpush1.msra.mxu0 0.0
    %2619 = vmatprep.subr.mxu0 0.0
    %2620 = vmatpush1.msra.mxu0 0.0
    %2621 = vmatprep.subr.mxu0 0.0
    %2622 = vmatpush1.msra.mxu0 0.0
    %2623 = vmatprep.subr.mxu0 0.0
    %2624 = vmatpush1.msra.mxu0 0.0
    %2625 = vmatprep.subr.mxu0 0.0
    %2626 = vmatpush1.msra.mxu0 0.0
    %2627 = vmatprep.mubr.f32.mxu0 0.0
    %v2628 = vand.u32 %v2461, 4294901760
    %2629 = vmatmul.mubr.f32.gmra.mrb[0].mxu0 %v2628
    %v2630 = vpop.f32.mrb[0].mxu0
    %v2631 = vadd.f32 %v2540, %v2630
    %v2632 = vpop.f32.mrb[0].mxu0
    %2633 = vmatprep.mubr.f32.mxu0 0.0
    %v2634 = vand.u32 %v2464, 4294901760
    %2635 = vmatmul.mubr.f32.gmra.mrb[0].mxu0 %v2634
    %v2636 = vpop.f32.mrb[0].mxu0
    %v2637 = vadd.f32 %v2550, %v2636
    %v2638 = vpop.f32.mrb[0].mxu0
    %2639 = vdwg.mxu0
    %2640 = vmatprep.subr.mxu0 0.0
    %v2641 = vand.u32 %v2458, 4294901760
    %v2642 = vsub.f32 %v2458, %v2641
    %2643 = vmatpush1.msra.mxu0 %v2642
    %2644 = vmatprep.subr.mxu0 0.0
    %v2645 = vand.u32 %v2459, 4294901760
    %v2646 = vsub.f32 %v2459, %v2645
    %2647 = vmatpush1.msra.mxu0 %v2646
    %2648 = vmatprep.subr.mxu0 0.0
    %2649 = vmatpush1.msra.mxu0 0.0
    %2650 = vmatprep.subr.mxu0 0.0
    %2651 = vmatpush1.msra.mxu0 0.0
    %2652 = vmatprep.subr.mxu0 0.0
    %2653 = vmatpush1.msra.mxu0 0.0
    %2654 = vmatprep.subr.mxu0 0.0
    %2655 = vmatpush1.msra.mxu0 0.0
    %2656 = vmatprep.subr.mxu0 0.0
    %2657 = vmatpush1.msra.mxu0 0.0
    %2658 = vmatprep.subr.mxu0 0.0
    %2659 = vmatpush1.msra.mxu0 0.0
    %2660 = vmatprep.subr.mxu0 0.0
    %2661 = vmatpush1.msra.mxu0 0.0
    %2662 = vmatprep.subr.mxu0 0.0
    %2663 = vmatpush1.msra.mxu0 0.0
    %2664 = vmatprep.subr.mxu0 0.0
    %2665 = vmatpush1.msra.mxu0 0.0
    %2666 = vmatprep.subr.mxu0 0.0
    %2667 = vmatpush1.msra.mxu0 0.0
    %2668 = vmatprep.subr.mxu0 0.0
    %2669 = vmatpush1.msra.mxu0 0.0
    %2670 = vmatprep.subr.mxu0 0.0
    %2671 = vmatpush1.msra.mxu0 0.0
    %2672 = vmatprep.subr.mxu0 0.0
    %2673 = vmatpush1.msra.mxu0 0.0
    %2674 = vmatprep.subr.mxu0 0.0
    %2675 = vmatpush1.msra.mxu0 0.0
    %2676 = vmatprep.subr.mxu0 0.0
    %2677 = vmatpush1.msra.mxu0 0.0
    %2678 = vmatprep.subr.mxu0 0.0
    %2679 = vmatpush1.msra.mxu0 0.0
    %2680 = vmatprep.subr.mxu0 0.0
    %2681 = vmatpush1.msra.mxu0 0.0
    %2682 = vmatprep.subr.mxu0 0.0
    %2683 = vmatpush1.msra.mxu0 0.0
    %2684 = vmatprep.subr.mxu0 0.0
    %2685 = vmatpush1.msra.mxu0 0.0
    %2686 = vmatprep.subr.mxu0 0.0
    %2687 = vmatpush1.msra.mxu0 0.0
    %2688 = vmatprep.subr.mxu0 0.0
    %2689 = vmatpush1.msra.mxu0 0.0
    %2690 = vmatprep.subr.mxu0 0.0
    %2691 = vmatpush1.msra.mxu0 0.0
    %2692 = vmatprep.subr.mxu0 0.0
    %2693 = vmatpush1.msra.mxu0 0.0
    %2694 = vmatprep.subr.mxu0 0.0
    %2695 = vmatpush1.msra.mxu0 0.0
    %2696 = vmatprep.subr.mxu0 0.0
    %2697 = vmatpush1.msra.mxu0 0.0
    %2698 = vmatprep.subr.mxu0 0.0
    %2699 = vmatpush1.msra.mxu0 0.0
    %2700 = vmatprep.subr.mxu0 0.0
    %2701 = vmatpush1.msra.mxu0 0.0
    %2702 = vmatprep.subr.mxu0 0.0
    %2703 = vmatpush1.msra.mxu0 0.0
    %2704 = vmatprep.subr.mxu0 0.0
    %2705 = vmatpush1.msra.mxu0 0.0
    %2706 = vmatprep.subr.mxu0 0.0
    %2707 = vmatpush1.msra.mxu0 0.0
    %2708 = vmatprep.mubr.f32.mxu0 0.0
    %v2709 = vand.u32 %v2461, 4294901760
    %v2710 = vsub.f32 %v2461, %v2709
    %2711 = vmatmul.mubr.f32.gmra.mrb[0].mxu0 %v2710
    %v2712 = vpop.f32.mrb[0].mxu0
    %v2713 = vadd.f32 %v2631, %v2712
    %v2714 = vpop.f32.mrb[0].mxu0
    %2715 = vmatprep.mubr.f32.mxu0 0.0
    %v2716 = vand.u32 %v2464, 4294901760
    %v2717 = vsub.f32 %v2464, %v2716
    %2718 = vmatmul.mubr.f32.gmra.mrb[0].mxu0 %v2717
    %v2719 = vpop.f32.mrb[0].mxu0
    %v2720 = vadd.f32 %v2637, %v2719
    %v2721 = vpop.f32.mrb[0].mxu0
    %2722 = vdwg.mxu0
    %2723 = vmatprep.subr.mxu0 0.0
    %v2724 = vand.u32 %v2458, 4294901760
    %2725 = vmatpush1.msra.mxu0 %v2724
    %2726 = vmatprep.subr.mxu0 0.0
    %v2727 = vand.u32 %v2459, 4294901760
    %2728 = vmatpush1.msra.mxu0 %v2727
    %2729 = vmatprep.subr.mxu0 0.0
    %2730 = vmatpush1.msra.mxu0 0.0
    %2731 = vmatprep.subr.mxu0 0.0
    %2732 = vmatpush1.msra.mxu0 0.0
    %2733 = vmatprep.subr.mxu0 0.0
    %2734 = vmatpush1.msra.mxu0 0.0
    %2735 = vmatprep.subr.mxu0 0.0
    %2736 = vmatpush1.msra.mxu0 0.0
    %2737 = vmatprep.subr.mxu0 0.0
    %2738 = vmatpush1.msra.mxu0 0.0
    %2739 = vmatprep.subr.mxu0 0.0
    %2740 = vmatpush1.msra.mxu0 0.0
    %2741 = vmatprep.subr.mxu0 0.0
    %2742 = vmatpush1.msra.mxu0 0.0
    %2743 = vmatprep.subr.mxu0 0.0
    %2744 = vmatpush1.msra.mxu0 0.0
    %2745 = vmatprep.subr.mxu0 0.0
    %2746 = vmatpush1.msra.mxu0 0.0
    %2747 = vmatprep.subr.mxu0 0.0
    %2748 = vmatpush1.msra.mxu0 0.0
    %2749 = vmatprep.subr.mxu0 0.0
    %2750 = vmatpush1.msra.mxu0 0.0
    %2751 = vmatprep.subr.mxu0 0.0
    %2752 = vmatpush1.msra.mxu0 0.0
    %2753 = vmatprep.subr.mxu0 0.0
    %2754 = vmatpush1.msra.mxu0 0.0
    %2755 = vmatprep.subr.mxu0 0.0
    %2756 = vmatpush1.msra.mxu0 0.0
    %2757 = vmatprep.subr.mxu0 0.0
    %2758 = vmatpush1.msra.mxu0 0.0
    %2759 = vmatprep.subr.mxu0 0.0
    %2760 = vmatpush1.msra.mxu0 0.0
    %2761 = vmatprep.subr.mxu0 0.0
    %2762 = vmatpush1.msra.mxu0 0.0
    %2763 = vmatprep.subr.mxu0 0.0
    %2764 = vmatpush1.msra.mxu0 0.0
    %2765 = vmatprep.subr.mxu0 0.0
    %2766 = vmatpush1.msra.mxu0 0.0
    %2767 = vmatprep.subr.mxu0 0.0
    %2768 = vmatpush1.msra.mxu0 0.0
    %2769 = vmatprep.subr.mxu0 0.0
    %2770 = vmatpush1.msra.mxu0 0.0
    %2771 = vmatprep.subr.mxu0 0.0
    %2772 = vmatpush1.msra.mxu0 0.0
    %2773 = vmatprep.subr.mxu0 0.0
    %2774 = vmatpush1.msra.mxu0 0.0
    %2775 = vmatprep.subr.mxu0 0.0
    %2776 = vmatpush1.msra.mxu0 0.0
    %2777 = vmatprep.subr.mxu0 0.0
    %2778 = vmatpush1.msra.mxu0 0.0
    %2779 = vmatprep.subr.mxu0 0.0
    %2780 = vmatpush1.msra.mxu0 0.0
    %2781 = vmatprep.subr.mxu0 0.0
    %2782 = vmatpush1.msra.mxu0 0.0
    %2783 = vmatprep.subr.mxu0 0.0
    %2784 = vmatpush1.msra.mxu0 0.0
    %2785 = vmatprep.subr.mxu0 0.0
    %2786 = vmatpush1.msra.mxu0 0.0
    %2787 = vmatprep.subr.mxu0 0.0
    %2788 = vmatpush1.msra.mxu0 0.0
    %2789 = vmatprep.mubr.f32.mxu0 0.0
    %v2790 = vand.u32 %v2461, 4294901760
    %v2791 = vsub.f32 %v2461, %v2790
    %v2792 = vand.u32 %v2791, 4294901760
    %2793 = vmatmul.mubr.f32.gmra.mrb[0].mxu0 %v2792
    %v2794 = vpop.f32.mrb[0].mxu0
    %v2795 = vadd.f32 %v2713, %v2794
    %v2796 = vpop.f32.mrb[0].mxu0
    %2797 = vmatprep.mubr.f32.mxu0 0.0
    %v2798 = vand.u32 %v2464, 4294901760
    %v2799 = vsub.f32 %v2464, %v2798
    %v2800 = vand.u32 %v2799, 4294901760
    %2801 = vmatmul.mubr.f32.gmra.mrb[0].mxu0 %v2800
    %v2802 = vpop.f32.mrb[0].mxu0
    %v2803 = vadd.f32 %v2720, %v2802
    %v2804 = vpop.f32.mrb[0].mxu0
    %2805 = vdwg.mxu0
    %2806 = vmatprep.subr.mxu0 0.0
    %v2807 = vand.u32 %v2458, 4294901760
    %v2808 = vsub.f32 %v2458, %v2807
    %v2809 = vand.u32 %v2808, 4294901760
    %2810 = vmatpush1.msra.mxu0 %v2809
    %2811 = vmatprep.subr.mxu0 0.0
    %v2812 = vand.u32 %v2459, 4294901760
    %v2813 = vsub.f32 %v2459, %v2812
    %v2814 = vand.u32 %v2813, 4294901760
    %2815 = vmatpush1.msra.mxu0 %v2814
    %2816 = vmatprep.subr.mxu0 0.0
    %2817 = vmatpush1.msra.mxu0 0.0
    %2818 = vmatprep.subr.mxu0 0.0
    %2819 = vmatpush1.msra.mxu0 0.0
    %2820 = vmatprep.subr.mxu0 0.0
    %2821 = vmatpush1.msra.mxu0 0.0
    %2822 = vmatprep.subr.mxu0 0.0
    %2823 = vmatpush1.msra.mxu0 0.0
    %2824 = vmatprep.subr.mxu0 0.0
    %2825 = vmatpush1.msra.mxu0 0.0
    %2826 = vmatprep.subr.mxu0 0.0
    %2827 = vmatpush1.msra.mxu0 0.0
    %2828 = vmatprep.subr.mxu0 0.0
    %2829 = vmatpush1.msra.mxu0 0.0
    %2830 = vmatprep.subr.mxu0 0.0
    %2831 = vmatpush1.msra.mxu0 0.0
    %2832 = vmatprep.subr.mxu0 0.0
    %2833 = vmatpush1.msra.mxu0 0.0
    %2834 = vmatprep.subr.mxu0 0.0
    %2835 = vmatpush1.msra.mxu0 0.0
    %2836 = vmatprep.subr.mxu0 0.0
    %2837 = vmatpush1.msra.mxu0 0.0
    %2838 = vmatprep.subr.mxu0 0.0
    %2839 = vmatpush1.msra.mxu0 0.0
    %2840 = vmatprep.subr.mxu0 0.0
    %2841 = vmatpush1.msra.mxu0 0.0
    %2842 = vmatprep.subr.mxu0 0.0
    %2843 = vmatpush1.msra.mxu0 0.0
    %2844 = vmatprep.subr.mxu0 0.0
    %2845 = vmatpush1.msra.mxu0 0.0
    %2846 = vmatprep.subr.mxu0 0.0
    %2847 = vmatpush1.msra.mxu0 0.0
    %2848 = vmatprep.subr.mxu0 0.0
    %2849 = vmatpush1.msra.mxu0 0.0
    %2850 = vmatprep.subr.mxu0 0.0
    %2851 = vmatpush1.msra.mxu0 0.0
    %2852 = vmatprep.subr.mxu0 0.0
    %2853 = vmatpush1.msra.mxu0 0.0
    %2854 = vmatprep.subr.mxu0 0.0
    %2855 = vmatpush1.msra.mxu0 0.0
    %2856 = vmatprep.subr.mxu0 0.0
    %2857 = vmatpush1.msra.mxu0 0.0
    %2858 = vmatprep.subr.mxu0 0.0
    %2859 = vmatpush1.msra.mxu0 0.0
    %2860 = vmatprep.subr.mxu0 0.0
    %2861 = vmatpush1.msra.mxu0 0.0
    %2862 = vmatprep.subr.mxu0 0.0
    %2863 = vmatpush1.msra.mxu0 0.0
    %2864 = vmatprep.subr.mxu0 0.0
    %2865 = vmatpush1.msra.mxu0 0.0
    %2866 = vmatprep.subr.mxu0 0.0
    %2867 = vmatpush1.msra.mxu0 0.0
    %2868 = vmatprep.subr.mxu0 0.0
    %2869 = vmatpush1.msra.mxu0 0.0
    %2870 = vmatprep.subr.mxu0 0.0
    %2871 = vmatpush1.msra.mxu0 0.0
    %2872 = vmatprep.subr.mxu0 0.0
    %2873 = vmatpush1.msra.mxu0 0.0
    %2874 = vmatprep.subr.mxu0 0.0
    %2875 = vmatpush1.msra.mxu0 0.0
    %2876 = vmatprep.mubr.f32.mxu0 0.0
    %v2877 = vand.u32 %v2461, 4294901760
    %2878 = vmatmul.mubr.f32.gmra.mrb[0].mxu0 %v2877
    %v2879 = vpop.f32.mrb[0].mxu0
    %v2880 = vadd.f32 %v2795, %v2879
    %v2881 = vpop.f32.mrb[0].mxu0
    %2882 = vmatprep.mubr.f32.mxu0 0.0
    %v2883 = vand.u32 %v2464, 4294901760
    %2884 = vmatmul.mubr.f32.gmra.mrb[0].mxu0 %v2883
    %v2885 = vpop.f32.mrb[0].mxu0
    %v2886 = vadd.f32 %v2803, %v2885
    %v2887 = vpop.f32.mrb[0].mxu0
    %2888 = vdwg.mxu0
    %2889 = vmatprep.subr.mxu0 0.0
    %v2890 = vand.u32 %v2458, 4294901760
    %2891 = vmatpush1.msra.mxu0 %v2890
    %2892 = vmatprep.subr.mxu0 0.0
    %v2893 = vand.u32 %v2459, 4294901760
    %2894 = vmatpush1.msra.mxu0 %v2893
    %2895 = vmatprep.subr.mxu0 0.0
    %2896 = vmatpush1.msra.mxu0 0.0
    %2897 = vmatprep.subr.mxu0 0.0
    %2898 = vmatpush1.msra.mxu0 0.0
    %2899 = vmatprep.subr.mxu0 0.0
    %2900 = vmatpush1.msra.mxu0 0.0
    %2901 = vmatprep.subr.mxu0 0.0
    %2902 = vmatpush1.msra.mxu0 0.0
    %2903 = vmatprep.subr.mxu0 0.0
    %2904 = vmatpush1.msra.mxu0 0.0
    %2905 = vmatprep.subr.mxu0 0.0
    %2906 = vmatpush1.msra.mxu0 0.0
    %2907 = vmatprep.subr.mxu0 0.0
    %2908 = vmatpush1.msra.mxu0 0.0
    %2909 = vmatprep.subr.mxu0 0.0
    %2910 = vmatpush1.msra.mxu0 0.0
    %2911 = vmatprep.subr.mxu0 0.0
    %2912 = vmatpush1.msra.mxu0 0.0
    %2913 = vmatprep.subr.mxu0 0.0
    %2914 = vmatpush1.msra.mxu0 0.0
    %2915 = vmatprep.subr.mxu0 0.0
    %2916 = vmatpush1.msra.mxu0 0.0
    %2917 = vmatprep.subr.mxu0 0.0
    %2918 = vmatpush1.msra.mxu0 0.0
    %2919 = vmatprep.subr.mxu0 0.0
    %2920 = vmatpush1.msra.mxu0 0.0
    %2921 = vmatprep.subr.mxu0 0.0
    %2922 = vmatpush1.msra.mxu0 0.0
    %2923 = vmatprep.subr.mxu0 0.0
    %2924 = vmatpush1.msra.mxu0 0.0
    %2925 = vmatprep.subr.mxu0 0.0
    %2926 = vmatpush1.msra.mxu0 0.0
    %2927 = vmatprep.subr.mxu0 0.0
    %2928 = vmatpush1.msra.mxu0 0.0
    %2929 = vmatprep.subr.mxu0 0.0
    %2930 = vmatpush1.msra.mxu0 0.0
    %2931 = vmatprep.subr.mxu0 0.0
    %2932 = vmatpush1.msra.mxu0 0.0
    %2933 = vmatprep.subr.mxu0 0.0
    %2934 = vmatpush1.msra.mxu0 0.0
    %2935 = vmatprep.subr.mxu0 0.0
    %2936 = vmatpush1.msra.mxu0 0.0
    %2937 = vmatprep.subr.mxu0 0.0
    %2938 = vmatpush1.msra.mxu0 0.0
    %2939 = vmatprep.subr.mxu0 0.0
    %2940 = vmatpush1.msra.mxu0 0.0
    %2941 = vmatprep.subr.mxu0 0.0
    %2942 = vmatpush1.msra.mxu0 0.0
    %2943 = vmatprep.subr.mxu0 0.0
    %2944 = vmatpush1.msra.mxu0 0.0
    %2945 = vmatprep.subr.mxu0 0.0
    %2946 = vmatpush1.msra.mxu0 0.0
    %2947 = vmatprep.subr.mxu0 0.0
    %2948 = vmatpush1.msra.mxu0 0.0
    %2949 = vmatprep.subr.mxu0 0.0
    %2950 = vmatpush1.msra.mxu0 0.0
    %2951 = vmatprep.subr.mxu0 0.0
    %2952 = vmatpush1.msra.mxu0 0.0
    %2953 = vmatprep.subr.mxu0 0.0
    %2954 = vmatpush1.msra.mxu0 0.0
    %2955 = vmatprep.mubr.f32.mxu0 0.0
    %v2956 = vand.u32 %v2461, 4294901760
    %2957 = vmatmul.mubr.f32.gmra.mrb[0].mxu0 %v2956
    %v2958 = vpop.f32.mrb[0].mxu0
    %v2959 = vadd.f32 %v2880, %v2958
    %v2960 = vpop.f32.mrb[0].mxu0
    %2961 = vmatprep.mubr.f32.mxu0 0.0
    %v2962 = vand.u32 %v2464, 4294901760
    %2963 = vmatmul.mubr.f32.gmra.mrb[0].mxu0 %v2962
    %v2964 = vpop.f32.mrb[0].mxu0
    %v2965 = vadd.f32 %v2886, %v2964
    %v2966 = vpop.f32.mrb[0].mxu0
    %2967 = vdwg.mxu0
    %2968 = vmatprep.subr.mxu0 0.0
    %v2969 = vand.u32 %v620, 4294901760
    %2970 = vmatpush1.msra.mxu0 %v2969
    %2971 = vmatprep.subr.mxu0 0.0
    %v2972 = vand.u32 %v621, 4294901760
    %2973 = vmatpush1.msra.mxu0 %v2972
    %2974 = vmatprep.subr.mxu0 0.0
    %v2975 = vand.u32 %v622, 4294901760
    %2976 = vmatpush1.msra.mxu0 %v2975
    %2977 = vmatprep.subr.mxu0 0.0
    %v2978 = vand.u32 %v623, 4294901760
    %2979 = vmatpush1.msra.mxu0 %v2978
    %2980 = vmatprep.subr.mxu0 0.0
    %2981 = vmatpush1.msra.mxu0 0.0
    %2982 = vmatprep.subr.mxu0 0.0
    %2983 = vmatpush1.msra.mxu0 0.0
    %2984 = vmatprep.subr.mxu0 0.0
    %2985 = vmatpush1.msra.mxu0 0.0
    %2986 = vmatprep.subr.mxu0 0.0
    %2987 = vmatpush1.msra.mxu0 0.0
    %2988 = vmatprep.subr.mxu0 0.0
    %2989 = vmatpush1.msra.mxu0 0.0
    %2990 = vmatprep.subr.mxu0 0.0
    %2991 = vmatpush1.msra.mxu0 0.0
    %2992 = vmatprep.subr.mxu0 0.0
    %2993 = vmatpush1.msra.mxu0 0.0
    %2994 = vmatprep.subr.mxu0 0.0
    %2995 = vmatpush1.msra.mxu0 0.0
    %2996 = vmatprep.subr.mxu0 0.0
    %2997 = vmatpush1.msra.mxu0 0.0
    %2998 = vmatprep.subr.mxu0 0.0
    %2999 = vmatpush1.msra.mxu0 0.0
    %3000 = vmatprep.subr.mxu0 0.0
    %3001 = vmatpush1.msra.mxu0 0.0
    %3002 = vmatprep.subr.mxu0 0.0
    %3003 = vmatpush1.msra.mxu0 0.0
    %3004 = vmatprep.subr.mxu0 0.0
    %3005 = vmatpush1.msra.mxu0 0.0
    %3006 = vmatprep.subr.mxu0 0.0
    %3007 = vmatpush1.msra.mxu0 0.0
    %3008 = vmatprep.subr.mxu0 0.0
    %3009 = vmatpush1.msra.mxu0 0.0
    %3010 = vmatprep.subr.mxu0 0.0
    %3011 = vmatpush1.msra.mxu0 0.0
    %3012 = vmatprep.subr.mxu0 0.0
    %3013 = vmatpush1.msra.mxu0 0.0
    %3014 = vmatprep.subr.mxu0 0.0
    %3015 = vmatpush1.msra.mxu0 0.0
    %3016 = vmatprep.subr.mxu0 0.0
    %3017 = vmatpush1.msra.mxu0 0.0
    %3018 = vmatprep.subr.mxu0 0.0
    %3019 = vmatpush1.msra.mxu0 0.0
    %3020 = vmatprep.subr.mxu0 0.0
    %3021 = vmatpush1.msra.mxu0 0.0
    %3022 = vmatprep.subr.mxu0 0.0
    %3023 = vmatpush1.msra.mxu0 0.0
    %3024 = vmatprep.subr.mxu0 0.0
    %3025 = vmatpush1.msra.mxu0 0.0
    %3026 = vmatprep.subr.mxu0 0.0
    %3027 = vmatpush1.msra.mxu0 0.0
    %3028 = vmatprep.subr.mxu0 0.0
    %3029 = vmatpush1.msra.mxu0 0.0
    %3030 = vmatprep.subr.mxu0 0.0
    %3031 = vmatpush1.msra.mxu0 0.0
    %3032 = vmatprep.subr.mxu0 0.0
    %3033 = vmatpush1.msra.mxu0 0.0
    %3034 = vmatprep.subr.mxu0 0.0
    %3035 = vmatpush1.msra.mxu0 0.0
    %3036 = vmatprep.mubr.f32.mxu0 0.0
    %v3037 = vand.u32 %v87, 4294901760
    %v3038 = vsub.f32 %v87, %v3037
    %v3039 = vand.u32 %v3038, 4294901760
    %v3040 = vsub.f32 %v3038, %v3039
    %v3041 = vand.u32 %v3040, 4294901760
    %3042 = vmatmul.mubr.f32.gmra.mrb[0].mxu0 %v3041
    %v3043 = vpop.f32.mrb[0].mxu0
    %v3044 = vadd.f32 %v2959, %v3043
    %v3045 = vpop.f32.mrb[0].mxu0
    %3046 = vmatprep.mubr.f32.mxu0 0.0
    %v3047 = vand.u32 %v90, 4294901760
    %v3048 = vsub.f32 %v90, %v3047
    %v3049 = vand.u32 %v3048, 4294901760
    %v3050 = vsub.f32 %v3048, %v3049
    %v3051 = vand.u32 %v3050, 4294901760
    %3052 = vmatmul.mubr.f32.gmra.mrb[0].mxu0 %v3051
    %v3053 = vpop.f32.mrb[0].mxu0
    %v3054 = vadd.f32 %v2965, %v3053
    %v3055 = vpop.f32.mrb[0].mxu0
    %3056 = vdwg.mxu0
    %3057 = vmatprep.subr.mxu0 0.0
    %v3058 = vand.u32 %v620, 4294901760
    %v3059 = vsub.f32 %v620, %v3058
    %v3060 = vand.u32 %v3059, 4294901760
    %v3061 = vsub.f32 %v3059, %v3060
    %v3062 = vand.u32 %v3061, 4294901760
    %3063 = vmatpush1.msra.mxu0 %v3062
    %3064 = vmatprep.subr.mxu0 0.0
    %v3065 = vand.u32 %v621, 4294901760
    %v3066 = vsub.f32 %v621, %v3065
    %v3067 = vand.u32 %v3066, 4294901760
    %v3068 = vsub.f32 %v3066, %v3067
    %v3069 = vand.u32 %v3068, 4294901760
    %3070 = vmatpush1.msra.mxu0 %v3069
    %3071 = vmatprep.subr.mxu0 0.0
    %v3072 = vand.u32 %v622, 4294901760
    %v3073 = vsub.f32 %v622, %v3072
    %v3074 = vand.u32 %v3073, 4294901760
    %v3075 = vsub.f32 %v3073, %v3074
    %v3076 = vand.u32 %v3075, 4294901760
    %3077 = vmatpush1.msra.mxu0 %v3076
    %3078 = vmatprep.subr.mxu0 0.0
    %v3079 = vand.u32 %v623, 4294901760
    %v3080 = vsub.f32 %v623, %v3079
    %v3081 = vand.u32 %v3080, 4294901760
    %v3082 = vsub.f32 %v3080, %v3081
    %v3083 = vand.u32 %v3082, 4294901760
    %3084 = vmatpush1.msra.mxu0 %v3083
    %3085 = vmatprep.subr.mxu0 0.0
    %3086 = vmatpush1.msra.mxu0 0.0
    %3087 = vmatprep.subr.mxu0 0.0
    %3088 = vmatpush1.msra.mxu0 0.0
    %3089 = vmatprep.subr.mxu0 0.0
    %3090 = vmatpush1.msra.mxu0 0.0
    %3091 = vmatprep.subr.mxu0 0.0
    %3092 = vmatpush1.msra.mxu0 0.0
    %3093 = vmatprep.subr.mxu0 0.0
    %3094 = vmatpush1.msra.mxu0 0.0
    %3095 = vmatprep.subr.mxu0 0.0
    %3096 = vmatpush1.msra.mxu0 0.0
    %3097 = vmatprep.subr.mxu0 0.0
    %3098 = vmatpush1.msra.mxu0 0.0
    %3099 = vmatprep.subr.mxu0 0.0
    %3100 = vmatpush1.msra.mxu0 0.0
    %3101 = vmatprep.subr.mxu0 0.0
    %3102 = vmatpush1.msra.mxu0 0.0
    %3103 = vmatprep.subr.mxu0 0.0
    %3104 = vmatpush1.msra.mxu0 0.0
    %3105 = vmatprep.subr.mxu0 0.0
    %3106 = vmatpush1.msra.mxu0 0.0
    %3107 = vmatprep.subr.mxu0 0.0
    %3108 = vmatpush1.msra.mxu0 0.0
    %3109 = vmatprep.subr.mxu0 0.0
    %3110 = vmatpush1.msra.mxu0 0.0
    %3111 = vmatprep.subr.mxu0 0.0
    %3112 = vmatpush1.msra.mxu0 0.0
    %3113 = vmatprep.subr.mxu0 0.0
    %3114 = vmatpush1.msra.mxu0 0.0
    %3115 = vmatprep.subr.mxu0 0.0
    %3116 = vmatpush1.msra.mxu0 0.0
    %3117 = vmatprep.subr.mxu0 0.0
    %3118 = vmatpush1.msra.mxu0 0.0
    %3119 = vmatprep.subr.mxu0 0.0
    %3120 = vmatpush1.msra.mxu0 0.0
    %3121 = vmatprep.subr.mxu0 0.0
    %3122 = vmatpush1.msra.mxu0 0.0
    %3123 = vmatprep.subr.mxu0 0.0
    %3124 = vmatpush1.msra.mxu0 0.0
    %3125 = vmatprep.subr.mxu0 0.0
    %3126 = vmatpush1.msra.mxu0 0.0
    %3127 = vmatprep.subr.mxu0 0.0
    %3128 = vmatpush1.msra.mxu0 0.0
    %3129 = vmatprep.subr.mxu0 0.0
    %3130 = vmatpush1.msra.mxu0 0.0
    %3131 = vmatprep.subr.mxu0 0.0
    %3132 = vmatpush1.msra.mxu0 0.0
    %3133 = vmatprep.subr.mxu0 0.0
    %3134 = vmatpush1.msra.mxu0 0.0
    %3135 = vmatprep.subr.mxu0 0.0
    %3136 = vmatpush1.msra.mxu0 0.0
    %3137 = vmatprep.subr.mxu0 0.0
    %3138 = vmatpush1.msra.mxu0 0.0
    %3139 = vmatprep.subr.mxu0 0.0
    %3140 = vmatpush1.msra.mxu0 0.0
    %3141 = vmatprep.mubr.f32.mxu0 0.0
    %v3142 = vand.u32 %v87, 4294901760
    %3143 = vmatmul.mubr.f32.gmra.mrb[0].mxu0 %v3142
    %v3144 = vpop.f32.mrb[0].mxu0
    %v3145 = vadd.f32 %v3044, %v3144
    %v3146 = vpop.f32.mrb[0].mxu0
    %3147 = vmatprep.mubr.f32.mxu0 0.0
    %v3148 = vand.u32 %v90, 4294901760
    %3149 = vmatmul.mubr.f32.gmra.mrb[0].mxu0 %v3148
    %v3150 = vpop.f32.mrb[0].mxu0
    %v3151 = vadd.f32 %v3054, %v3150
    %v3152 = vpop.f32.mrb[0].mxu0
    %3153 = vdwg.mxu0
    %3154 = vmatprep.subr.mxu0 0.0
    %v3155 = vand.u32 %v620, 4294901760
    %v3156 = vsub.f32 %v620, %v3155
    %3157 = vmatpush1.msra.mxu0 %v3156
    %3158 = vmatprep.subr.mxu0 0.0
    %v3159 = vand.u32 %v621, 4294901760
    %v3160 = vsub.f32 %v621, %v3159
    %3161 = vmatpush1.msra.mxu0 %v3160
    %3162 = vmatprep.subr.mxu0 0.0
    %v3163 = vand.u32 %v622, 4294901760
    %v3164 = vsub.f32 %v622, %v3163
    %3165 = vmatpush1.msra.mxu0 %v3164
    %3166 = vmatprep.subr.mxu0 0.0
    %v3167 = vand.u32 %v623, 4294901760
    %v3168 = vsub.f32 %v623, %v3167
    %3169 = vmatpush1.msra.mxu0 %v3168
    %3170 = vmatprep.subr.mxu0 0.0
    %3171 = vmatpush1.msra.mxu0 0.0
    %3172 = vmatprep.subr.mxu0 0.0
    %3173 = vmatpush1.msra.mxu0 0.0
    %3174 = vmatprep.subr.mxu0 0.0
    %3175 = vmatpush1.msra.mxu0 0.0
    %3176 = vmatprep.subr.mxu0 0.0
    %3177 = vmatpush1.msra.mxu0 0.0
    %3178 = vmatprep.subr.mxu0 0.0
    %3179 = vmatpush1.msra.mxu0 0.0
    %3180 = vmatprep.subr.mxu0 0.0
    %3181 = vmatpush1.msra.mxu0 0.0
    %3182 = vmatprep.subr.mxu0 0.0
    %3183 = vmatpush1.msra.mxu0 0.0
    %3184 = vmatprep.subr.mxu0 0.0
    %3185 = vmatpush1.msra.mxu0 0.0
    %3186 = vmatprep.subr.mxu0 0.0
    %3187 = vmatpush1.msra.mxu0 0.0
    %3188 = vmatprep.subr.mxu0 0.0
    %3189 = vmatpush1.msra.mxu0 0.0
    %3190 = vmatprep.subr.mxu0 0.0
    %3191 = vmatpush1.msra.mxu0 0.0
    %3192 = vmatprep.subr.mxu0 0.0
    %3193 = vmatpush1.msra.mxu0 0.0
    %3194 = vmatprep.subr.mxu0 0.0
    %3195 = vmatpush1.msra.mxu0 0.0
    %3196 = vmatprep.subr.mxu0 0.0
    %3197 = vmatpush1.msra.mxu0 0.0
    %3198 = vmatprep.subr.mxu0 0.0
    %3199 = vmatpush1.msra.mxu0 0.0
    %3200 = vmatprep.subr.mxu0 0.0
    %3201 = vmatpush1.msra.mxu0 0.0
    %3202 = vmatprep.subr.mxu0 0.0
    %3203 = vmatpush1.msra.mxu0 0.0
    %3204 = vmatprep.subr.mxu0 0.0
    %3205 = vmatpush1.msra.mxu0 0.0
    %3206 = vmatprep.subr.mxu0 0.0
    %3207 = vmatpush1.msra.mxu0 0.0
    %3208 = vmatprep.subr.mxu0 0.0
    %3209 = vmatpush1.msra.mxu0 0.0
    %3210 = vmatprep.subr.mxu0 0.0
    %3211 = vmatpush1.msra.mxu0 0.0
    %3212 = vmatprep.subr.mxu0 0.0
    %3213 = vmatpush1.msra.mxu0 0.0
    %3214 = vmatprep.subr.mxu0 0.0
    %3215 = vmatpush1.msra.mxu0 0.0
    %3216 = vmatprep.subr.mxu0 0.0
    %3217 = vmatpush1.msra.mxu0 0.0
    %3218 = vmatprep.subr.mxu0 0.0
    %3219 = vmatpush1.msra.mxu0 0.0
    %3220 = vmatprep.subr.mxu0 0.0
    %3221 = vmatpush1.msra.mxu0 0.0
    %3222 = vmatprep.subr.mxu0 0.0
    %3223 = vmatpush1.msra.mxu0 0.0
    %3224 = vmatprep.subr.mxu0 0.0
    %3225 = vmatpush1.msra.mxu0 0.0
    %3226 = vmatprep.mubr.f32.mxu0 0.0
    %v3227 = vand.u32 %v87, 4294901760
    %v3228 = vsub.f32 %v87, %v3227
    %3229 = vmatmul.mubr.f32.gmra.mrb[0].mxu0 %v3228
    %v3230 = vpop.f32.mrb[0].mxu0
    %v3231 = vadd.f32 %v3145, %v3230
    %v3232 = vpop.f32.mrb[0].mxu0
    %3233 = vmatprep.mubr.f32.mxu0 0.0
    %v3234 = vand.u32 %v90, 4294901760
    %v3235 = vsub.f32 %v90, %v3234
    %3236 = vmatmul.mubr.f32.gmra.mrb[0].mxu0 %v3235
    %v3237 = vpop.f32.mrb[0].mxu0
    %v3238 = vadd.f32 %v3151, %v3237
    %v3239 = vpop.f32.mrb[0].mxu0
    %3240 = vdwg.mxu0
    %3241 = vmatprep.subr.mxu0 0.0
    %v3242 = vand.u32 %v620, 4294901760
    %3243 = vmatpush1.msra.mxu0 %v3242
    %3244 = vmatprep.subr.mxu0 0.0
    %v3245 = vand.u32 %v621, 4294901760
    %3246 = vmatpush1.msra.mxu0 %v3245
    %3247 = vmatprep.subr.mxu0 0.0
    %v3248 = vand.u32 %v622, 4294901760
    %3249 = vmatpush1.msra.mxu0 %v3248
    %3250 = vmatprep.subr.mxu0 0.0
    %v3251 = vand.u32 %v623, 4294901760
    %3252 = vmatpush1.msra.mxu0 %v3251
    %3253 = vmatprep.subr.mxu0 0.0
    %3254 = vmatpush1.msra.mxu0 0.0
    %3255 = vmatprep.subr.mxu0 0.0
    %3256 = vmatpush1.msra.mxu0 0.0
    %3257 = vmatprep.subr.mxu0 0.0
    %3258 = vmatpush1.msra.mxu0 0.0
    %3259 = vmatprep.subr.mxu0 0.0
    %3260 = vmatpush1.msra.mxu0 0.0
    %3261 = vmatprep.subr.mxu0 0.0
    %3262 = vmatpush1.msra.mxu0 0.0
    %3263 = vmatprep.subr.mxu0 0.0
    %3264 = vmatpush1.msra.mxu0 0.0
    %3265 = vmatprep.subr.mxu0 0.0
    %3266 = vmatpush1.msra.mxu0 0.0
    %3267 = vmatprep.subr.mxu0 0.0
    %3268 = vmatpush1.msra.mxu0 0.0
    %3269 = vmatprep.subr.mxu0 0.0
    %3270 = vmatpush1.msra.mxu0 0.0
    %3271 = vmatprep.subr.mxu0 0.0
    %3272 = vmatpush1.msra.mxu0 0.0
    %3273 = vmatprep.subr.mxu0 0.0
    %3274 = vmatpush1.msra.mxu0 0.0
    %3275 = vmatprep.subr.mxu0 0.0
    %3276 = vmatpush1.msra.mxu0 0.0
    %3277 = vmatprep.subr.mxu0 0.0
    %3278 = vmatpush1.msra.mxu0 0.0
    %3279 = vmatprep.subr.mxu0 0.0
    %3280 = vmatpush1.msra.mxu0 0.0
    %3281 = vmatprep.subr.mxu0 0.0
    %3282 = vmatpush1.msra.mxu0 0.0
    %3283 = vmatprep.subr.mxu0 0.0
    %3284 = vmatpush1.msra.mxu0 0.0
    %3285 = vmatprep.subr.mxu0 0.0
    %3286 = vmatpush1.msra.mxu0 0.0
    %3287 = vmatprep.subr.mxu0 0.0
    %3288 = vmatpush1.msra.mxu0 0.0
    %3289 = vmatprep.subr.mxu0 0.0
    %3290 = vmatpush1.msra.mxu0 0.0
    %3291 = vmatprep.subr.mxu0 0.0
    %3292 = vmatpush1.msra.mxu0 0.0
    %3293 = vmatprep.subr.mxu0 0.0
    %3294 = vmatpush1.msra.mxu0 0.0
    %3295 = vmatprep.subr.mxu0 0.0
    %3296 = vmatpush1.msra.mxu0 0.0
    %3297 = vmatprep.subr.mxu0 0.0
    %3298 = vmatpush1.msra.mxu0 0.0
    %3299 = vmatprep.subr.mxu0 0.0
    %3300 = vmatpush1.msra.mxu0 0.0
    %3301 = vmatprep.subr.mxu0 0.0
    %3302 = vmatpush1.msra.mxu0 0.0
    %3303 = vmatprep.subr.mxu0 0.0
    %3304 = vmatpush1.msra.mxu0 0.0
    %3305 = vmatprep.subr.mxu0 0.0
    %3306 = vmatpush1.msra.mxu0 0.0
    %3307 = vmatprep.subr.mxu0 0.0
    %3308 = vmatpush1.msra.mxu0 0.0
    %3309 = vmatprep.mubr.f32.mxu0 0.0
    %v3310 = vand.u32 %v87, 4294901760
    %v3311 = vsub.f32 %v87, %v3310
    %v3312 = vand.u32 %v3311, 4294901760
    %3313 = vmatmul.mubr.f32.gmra.mrb[0].mxu0 %v3312
    %v3314 = vpop.f32.mrb[0].mxu0
    %v3315 = vadd.f32 %v3231, %v3314
    %v3316 = vpop.f32.mrb[0].mxu0
    %3317 = vmatprep.mubr.f32.mxu0 0.0
    %v3318 = vand.u32 %v90, 4294901760
    %v3319 = vsub.f32 %v90, %v3318
    %v3320 = vand.u32 %v3319, 4294901760
    %3321 = vmatmul.mubr.f32.gmra.mrb[0].mxu0 %v3320
    %v3322 = vpop.f32.mrb[0].mxu0
    %v3323 = vadd.f32 %v3238, %v3322
    %v3324 = vpop.f32.mrb[0].mxu0
    %3325 = vdwg.mxu0
    %3326 = vmatprep.subr.mxu0 0.0
    %v3327 = vand.u32 %v620, 4294901760
    %v3328 = vsub.f32 %v620, %v3327
    %v3329 = vand.u32 %v3328, 4294901760
    %3330 = vmatpush1.msra.mxu0 %v3329
    %3331 = vmatprep.subr.mxu0 0.0
    %v3332 = vand.u32 %v621, 4294901760
    %v3333 = vsub.f32 %v621, %v3332
    %v3334 = vand.u32 %v3333, 4294901760
    %3335 = vmatpush1.msra.mxu0 %v3334
    %3336 = vmatprep.subr.mxu0 0.0
    %v3337 = vand.u32 %v622, 4294901760
    %v3338 = vsub.f32 %v622, %v3337
    %v3339 = vand.u32 %v3338, 4294901760
    %3340 = vmatpush1.msra.mxu0 %v3339
    %3341 = vmatprep.subr.mxu0 0.0
    %v3342 = vand.u32 %v623, 4294901760
    %v3343 = vsub.f32 %v623, %v3342
    %v3344 = vand.u32 %v3343, 4294901760
    %3345 = vmatpush1.msra.mxu0 %v3344
    %3346 = vmatprep.subr.mxu0 0.0
    %3347 = vmatpush1.msra.mxu0 0.0
    %3348 = vmatprep.subr.mxu0 0.0
    %3349 = vmatpush1.msra.mxu0 0.0
    %3350 = vmatprep.subr.mxu0 0.0
    %3351 = vmatpush1.msra.mxu0 0.0
    %3352 = vmatprep.subr.mxu0 0.0
    %3353 = vmatpush1.msra.mxu0 0.0
    %3354 = vmatprep.subr.mxu0 0.0
    %3355 = vmatpush1.msra.mxu0 0.0
    %3356 = vmatprep.subr.mxu0 0.0
    %3357 = vmatpush1.msra.mxu0 0.0
    %3358 = vmatprep.subr.mxu0 0.0
    %3359 = vmatpush1.msra.mxu0 0.0
    %3360 = vmatprep.subr.mxu0 0.0
    %3361 = vmatpush1.msra.mxu0 0.0
    %3362 = vmatprep.subr.mxu0 0.0
    %3363 = vmatpush1.msra.mxu0 0.0
    %3364 = vmatprep.subr.mxu0 0.0
    %3365 = vmatpush1.msra.mxu0 0.0
    %3366 = vmatprep.subr.mxu0 0.0
    %3367 = vmatpush1.msra.mxu0 0.0
    %3368 = vmatprep.subr.mxu0 0.0
    %3369 = vmatpush1.msra.mxu0 0.0
    %3370 = vmatprep.subr.mxu0 0.0
    %3371 = vmatpush1.msra.mxu0 0.0
    %3372 = vmatprep.subr.mxu0 0.0
    %3373 = vmatpush1.msra.mxu0 0.0
    %3374 = vmatprep.subr.mxu0 0.0
    %3375 = vmatpush1.msra.mxu0 0.0
    %3376 = vmatprep.subr.mxu0 0.0
    %3377 = vmatpush1.msra.mxu0 0.0
    %3378 = vmatprep.subr.mxu0 0.0
    %3379 = vmatpush1.msra.mxu0 0.0
    %3380 = vmatprep.subr.mxu0 0.0
    %3381 = vmatpush1.msra.mxu0 0.0
    %3382 = vmatprep.subr.mxu0 0.0
    %3383 = vmatpush1.msra.mxu0 0.0
    %3384 = vmatprep.subr.mxu0 0.0
    %3385 = vmatpush1.msra.mxu0 0.0
    %3386 = vmatprep.subr.mxu0 0.0
    %3387 = vmatpush1.msra.mxu0 0.0
    %3388 = vmatprep.subr.mxu0 0.0
    %3389 = vmatpush1.msra.mxu0 0.0
    %3390 = vmatprep.subr.mxu0 0.0
    %3391 = vmatpush1.msra.mxu0 0.0
    %3392 = vmatprep.subr.mxu0 0.0
    %3393 = vmatpush1.msra.mxu0 0.0
    %3394 = vmatprep.subr.mxu0 0.0
    %3395 = vmatpush1.msra.mxu0 0.0
    %3396 = vmatprep.subr.mxu0 0.0
    %3397 = vmatpush1.msra.mxu0 0.0
    %3398 = vmatprep.subr.mxu0 0.0
    %3399 = vmatpush1.msra.mxu0 0.0
    %3400 = vmatprep.subr.mxu0 0.0
    %3401 = vmatpush1.msra.mxu0 0.0
    %3402 = vmatprep.mubr.f32.mxu0 0.0
    %v3403 = vand.u32 %v87, 4294901760
    %3404 = vmatmul.mubr.f32.gmra.mrb[0].mxu0 %v3403
    %v3405 = vpop.f32.mrb[0].mxu0
    %v3406 = vadd.f32 %v3315, %v3405
    %v3407 = vpop.f32.mrb[0].mxu0
    %3408 = vmatprep.mubr.f32.mxu0 0.0
    %v3409 = vand.u32 %v90, 4294901760
    %3410 = vmatmul.mubr.f32.gmra.mrb[0].mxu0 %v3409
    %v3411 = vpop.f32.mrb[0].mxu0
    %v3412 = vadd.f32 %v3323, %v3411
    %v3413 = vpop.f32.mrb[0].mxu0
    %3414 = vdwg.mxu0
    %3415 = vmatprep.subr.mxu0 0.0
    %v3416 = vand.u32 %v620, 4294901760
    %3417 = vmatpush1.msra.mxu0 %v3416
    %3418 = vmatprep.subr.mxu0 0.0
    %v3419 = vand.u32 %v621, 4294901760
    %3420 = vmatpush1.msra.mxu0 %v3419
    %3421 = vmatprep.subr.mxu0 0.0
    %v3422 = vand.u32 %v622, 4294901760
    %3423 = vmatpush1.msra.mxu0 %v3422
    %3424 = vmatprep.subr.mxu0 0.0
    %v3425 = vand.u32 %v623, 4294901760
    %3426 = vmatpush1.msra.mxu0 %v3425
    %3427 = vmatprep.subr.mxu0 0.0
    %3428 = vmatpush1.msra.mxu0 0.0
    %3429 = vmatprep.subr.mxu0 0.0
    %3430 = vmatpush1.msra.mxu0 0.0
    %3431 = vmatprep.subr.mxu0 0.0
    %3432 = vmatpush1.msra.mxu0 0.0
    %3433 = vmatprep.subr.mxu0 0.0
    %3434 = vmatpush1.msra.mxu0 0.0
    %3435 = vmatprep.subr.mxu0 0.0
    %3436 = vmatpush1.msra.mxu0 0.0
    %3437 = vmatprep.subr.mxu0 0.0
    %3438 = vmatpush1.msra.mxu0 0.0
    %3439 = vmatprep.subr.mxu0 0.0
    %3440 = vmatpush1.msra.mxu0 0.0
    %3441 = vmatprep.subr.mxu0 0.0
    %3442 = vmatpush1.msra.mxu0 0.0
    %3443 = vmatprep.subr.mxu0 0.0
    %3444 = vmatpush1.msra.mxu0 0.0
    %3445 = vmatprep.subr.mxu0 0.0
    %3446 = vmatpush1.msra.mxu0 0.0
    %3447 = vmatprep.subr.mxu0 0.0
    %3448 = vmatpush1.msra.mxu0 0.0
    %3449 = vmatprep.subr.mxu0 0.0
    %3450 = vmatpush1.msra.mxu0 0.0
    %3451 = vmatprep.subr.mxu0 0.0
    %3452 = vmatpush1.msra.mxu0 0.0
    %3453 = vmatprep.subr.mxu0 0.0
    %3454 = vmatpush1.msra.mxu0 0.0
    %3455 = vmatprep.subr.mxu0 0.0
    %3456 = vmatpush1.msra.mxu0 0.0
    %3457 = vmatprep.subr.mxu0 0.0
    %3458 = vmatpush1.msra.mxu0 0.0
    %3459 = vmatprep.subr.mxu0 0.0
    %3460 = vmatpush1.msra.mxu0 0.0
    %3461 = vmatprep.subr.mxu0 0.0
    %3462 = vmatpush1.msra.mxu0 0.0
    %3463 = vmatprep.subr.mxu0 0.0
    %3464 = vmatpush1.msra.mxu0 0.0
    %3465 = vmatprep.subr.mxu0 0.0
    %3466 = vmatpush1.msra.mxu0 0.0
    %3467 = vmatprep.subr.mxu0 0.0
    %3468 = vmatpush1.msra.mxu0 0.0
    %3469 = vmatprep.subr.mxu0 0.0
    %3470 = vmatpush1.msra.mxu0 0.0
    %3471 = vmatprep.subr.mxu0 0.0
    %3472 = vmatpush1.msra.mxu0 0.0
    %3473 = vmatprep.subr.mxu0 0.0
    %3474 = vmatpush1.msra.mxu0 0.0
    %3475 = vmatprep.subr.mxu0 0.0
    %3476 = vmatpush1.msra.mxu0 0.0
    %3477 = vmatprep.subr.mxu0 0.0
    %3478 = vmatpush1.msra.mxu0 0.0
    %3479 = vmatprep.subr.mxu0 0.0
    %3480 = vmatpush1.msra.mxu0 0.0
    %3481 = vmatprep.subr.mxu0 0.0
    %3482 = vmatpush1.msra.mxu0 0.0
    %3483 = vmatprep.mubr.f32.mxu0 0.0
    %v3484 = vand.u32 %v87, 4294901760
    %3485 = vmatmul.mubr.f32.gmra.mrb[0].mxu0 %v3484
    %v3486 = vpop.f32.mrb[0].mxu0
    %v3487 = vadd.f32 %v3406, %v3486
    %v3488 = vpop.f32.mrb[0].mxu0
    %3489 = vmatprep.mubr.f32.mxu0 0.0
    %v3490 = vand.u32 %v90, 4294901760
    %3491 = vmatmul.mubr.f32.gmra.mrb[0].mxu0 %v3490
    %v3492 = vpop.f32.mrb[0].mxu0
    %v3493 = vadd.f32 %v3412, %v3492
    %v3494 = vpop.f32.mrb[0].mxu0
    %3495 = vdwg.mxu0
    %3496 = vrot.lane.b32.xlu0 %v611, 112
    %v3497 = vpop.permute.xlu0 %3496
    %3498 = vrot.lane.b32.xlu0 %v611, 80
    %v3499 = vpop.permute.xlu0 %3498
    %v3500 = vsel %vm627, %v3497, 0
    %v3502 = vsel %vm627, %v3499, 0
    %3504 = vmatprep.subr.mxu0 0.0
    %v3505 = vand.u32 %v3502, 4294901760
    %3506 = vmatpush1.xpose.msra.mxu0 %v3505
    %3507 = vmatprep.subr.mxu0 0.0
    %3508 = vmatpush1.xpose.msra.mxu0 0.0
    %3509 = vmatprep.subr.mxu0 0.0
    %3510 = vmatpush1.xpose.msra.mxu0 0.0
    %3511 = vmatprep.subr.mxu0 0.0
    %3512 = vmatpush1.xpose.msra.mxu0 0.0
    %3513 = vmatprep.subr.mxu0 0.0
    %3514 = vmatpush1.xpose.msra.mxu0 0.0
    %3515 = vmatprep.subr.mxu0 0.0
    %3516 = vmatpush1.xpose.msra.mxu0 0.0
    %3517 = vmatprep.subr.mxu0 0.0
    %3518 = vmatpush1.xpose.msra.mxu0 0.0
    %3519 = vmatprep.subr.mxu0 0.0
    %3520 = vmatpush1.xpose.msra.mxu0 0.0
    %3521 = vmatprep.subr.mxu0 0.0
    %3522 = vmatpush1.xpose.msra.mxu0 0.0
    %3523 = vmatprep.subr.mxu0 0.0
    %3524 = vmatpush1.xpose.msra.mxu0 0.0
    %3525 = vmatprep.subr.mxu0 0.0
    %3526 = vmatpush1.xpose.msra.mxu0 0.0
    %3527 = vmatprep.subr.mxu0 0.0
    %3528 = vmatpush1.xpose.msra.mxu0 0.0
    %3529 = vmatprep.subr.mxu0 0.0
    %3530 = vmatpush1.xpose.msra.mxu0 0.0
    %3531 = vmatprep.subr.mxu0 0.0
    %3532 = vmatpush1.xpose.msra.mxu0 0.0
    %3533 = vmatprep.subr.mxu0 0.0
    %3534 = vmatpush1.xpose.msra.mxu0 0.0
    %3535 = vmatprep.subr.mxu0 0.0
    %3536 = vmatpush1.xpose.msra.mxu0 0.0
    %3537 = vmatprep.subr.mxu0 0.0
    %3538 = vmatpush1.xpose.msra.mxu0 0.0
    %3539 = vmatprep.subr.mxu0 0.0
    %3540 = vmatpush1.xpose.msra.mxu0 0.0
    %3541 = vmatprep.subr.mxu0 0.0
    %3542 = vmatpush1.xpose.msra.mxu0 0.0
    %3543 = vmatprep.subr.mxu0 0.0
    %3544 = vmatpush1.xpose.msra.mxu0 0.0
    %3545 = vmatprep.subr.mxu0 0.0
    %3546 = vmatpush1.xpose.msra.mxu0 0.0
    %3547 = vmatprep.subr.mxu0 0.0
    %3548 = vmatpush1.xpose.msra.mxu0 0.0
    %3549 = vmatprep.subr.mxu0 0.0
    %3550 = vmatpush1.xpose.msra.mxu0 0.0
    %3551 = vmatprep.subr.mxu0 0.0
    %3552 = vmatpush1.xpose.msra.mxu0 0.0
    %3553 = vmatprep.subr.mxu0 0.0
    %3554 = vmatpush1.xpose.msra.mxu0 0.0
    %3555 = vmatprep.subr.mxu0 0.0
    %3556 = vmatpush1.xpose.msra.mxu0 0.0
    %3557 = vmatprep.subr.mxu0 0.0
    %3558 = vmatpush1.xpose.msra.mxu0 0.0
    %3559 = vmatprep.subr.mxu0 0.0
    %3560 = vmatpush1.xpose.msra.mxu0 0.0
    %3561 = vmatprep.subr.mxu0 0.0
    %3562 = vmatpush1.xpose.msra.mxu0 0.0
    %3563 = vmatprep.subr.mxu0 0.0
    %3564 = vmatpush1.xpose.msra.mxu0 0.0
    %3565 = vmatprep.subr.mxu0 0.0
    %3566 = vmatpush1.xpose.msra.mxu0 0.0
    %3567 = vmatprep.subr.mxu0 0.0
    %3568 = vmatpush1.xpose.msra.mxu0 0.0
    %3569 = vmatprep.mubr.f32.mxu0 0.0
    %v3570 = vand.u32 %v3500, 4294901760
    %v3571 = vsub.f32 %v3500, %v3570
    %v3572 = vand.u32 %v3571, 4294901760
    %v3573 = vsub.f32 %v3571, %v3572
    %v3574 = vand.u32 %v3573, 4294901760
    %3575 = vmatmul.mubr.f32.gmra.mrb[0].mxu0 %v3574
    %v3576 = vpop.f32.mrb[0].mxu0
    %v3577 = vadd.f32 0.0, %v3576
    %v3578 = vpop.f32.mrb[0].mxu0
    %3579 = vdwg.mxu0
    %3580 = vmatprep.subr.mxu0 0.0
    %v3581 = vand.u32 %v3502, 4294901760
    %v3582 = vsub.f32 %v3502, %v3581
    %v3583 = vand.u32 %v3582, 4294901760
    %v3584 = vsub.f32 %v3582, %v3583
    %v3585 = vand.u32 %v3584, 4294901760
    %3586 = vmatpush1.xpose.msra.mxu0 %v3585
    %3587 = vmatprep.subr.mxu0 0.0
    %3588 = vmatpush1.xpose.msra.mxu0 0.0
    %3589 = vmatprep.subr.mxu0 0.0
    %3590 = vmatpush1.xpose.msra.mxu0 0.0
    %3591 = vmatprep.subr.mxu0 0.0
    %3592 = vmatpush1.xpose.msra.mxu0 0.0
    %3593 = vmatprep.subr.mxu0 0.0
    %3594 = vmatpush1.xpose.msra.mxu0 0.0
    %3595 = vmatprep.subr.mxu0 0.0
    %3596 = vmatpush1.xpose.msra.mxu0 0.0
    %3597 = vmatprep.subr.mxu0 0.0
    %3598 = vmatpush1.xpose.msra.mxu0 0.0
    %3599 = vmatprep.subr.mxu0 0.0
    %3600 = vmatpush1.xpose.msra.mxu0 0.0
    %3601 = vmatprep.subr.mxu0 0.0
    %3602 = vmatpush1.xpose.msra.mxu0 0.0
    %3603 = vmatprep.subr.mxu0 0.0
    %3604 = vmatpush1.xpose.msra.mxu0 0.0
    %3605 = vmatprep.subr.mxu0 0.0
    %3606 = vmatpush1.xpose.msra.mxu0 0.0
    %3607 = vmatprep.subr.mxu0 0.0
    %3608 = vmatpush1.xpose.msra.mxu0 0.0
    %3609 = vmatprep.subr.mxu0 0.0
    %3610 = vmatpush1.xpose.msra.mxu0 0.0
    %3611 = vmatprep.subr.mxu0 0.0
    %3612 = vmatpush1.xpose.msra.mxu0 0.0
    %3613 = vmatprep.subr.mxu0 0.0
    %3614 = vmatpush1.xpose.msra.mxu0 0.0
    %3615 = vmatprep.subr.mxu0 0.0
    %3616 = vmatpush1.xpose.msra.mxu0 0.0
    %3617 = vmatprep.subr.mxu0 0.0
    %3618 = vmatpush1.xpose.msra.mxu0 0.0
    %3619 = vmatprep.subr.mxu0 0.0
    %3620 = vmatpush1.xpose.msra.mxu0 0.0
    %3621 = vmatprep.subr.mxu0 0.0
    %3622 = vmatpush1.xpose.msra.mxu0 0.0
    %3623 = vmatprep.subr.mxu0 0.0
    %3624 = vmatpush1.xpose.msra.mxu0 0.0
    %3625 = vmatprep.subr.mxu0 0.0
    %3626 = vmatpush1.xpose.msra.mxu0 0.0
    %3627 = vmatprep.subr.mxu0 0.0
    %3628 = vmatpush1.xpose.msra.mxu0 0.0
    %3629 = vmatprep.subr.mxu0 0.0
    %3630 = vmatpush1.xpose.msra.mxu0 0.0
    %3631 = vmatprep.subr.mxu0 0.0
    %3632 = vmatpush1.xpose.msra.mxu0 0.0
    %3633 = vmatprep.subr.mxu0 0.0
    %3634 = vmatpush1.xpose.msra.mxu0 0.0
    %3635 = vmatprep.subr.mxu0 0.0
    %3636 = vmatpush1.xpose.msra.mxu0 0.0
    %3637 = vmatprep.subr.mxu0 0.0
    %3638 = vmatpush1.xpose.msra.mxu0 0.0
    %3639 = vmatprep.subr.mxu0 0.0
    %3640 = vmatpush1.xpose.msra.mxu0 0.0
    %3641 = vmatprep.subr.mxu0 0.0
    %3642 = vmatpush1.xpose.msra.mxu0 0.0
    %3643 = vmatprep.subr.mxu0 0.0
    %3644 = vmatpush1.xpose.msra.mxu0 0.0
    %3645 = vmatprep.subr.mxu0 0.0
    %3646 = vmatpush1.xpose.msra.mxu0 0.0
    %3647 = vmatprep.subr.mxu0 0.0
    %3648 = vmatpush1.xpose.msra.mxu0 0.0
    %3649 = vmatprep.mubr.f32.mxu0 0.0
    %v3650 = vand.u32 %v3500, 4294901760
    %3651 = vmatmul.mubr.f32.gmra.mrb[0].mxu0 %v3650
    %v3652 = vpop.f32.mrb[0].mxu0
    %v3653 = vadd.f32 %v3577, %v3652
    %v3654 = vpop.f32.mrb[0].mxu0
    %3655 = vdwg.mxu0
    %3656 = vmatprep.subr.mxu0 0.0
    %v3657 = vand.u32 %v3502, 4294901760
    %v3658 = vsub.f32 %v3502, %v3657
    %3659 = vmatpush1.xpose.msra.mxu0 %v3658
    %3660 = vmatprep.subr.mxu0 0.0
    %3661 = vmatpush1.xpose.msra.mxu0 0.0
    %3662 = vmatprep.subr.mxu0 0.0
    %3663 = vmatpush1.xpose.msra.mxu0 0.0
    %3664 = vmatprep.subr.mxu0 0.0
    %3665 = vmatpush1.xpose.msra.mxu0 0.0
    %3666 = vmatprep.subr.mxu0 0.0
    %3667 = vmatpush1.xpose.msra.mxu0 0.0
    %3668 = vmatprep.subr.mxu0 0.0
    %3669 = vmatpush1.xpose.msra.mxu0 0.0
    %3670 = vmatprep.subr.mxu0 0.0
    %3671 = vmatpush1.xpose.msra.mxu0 0.0
    %3672 = vmatprep.subr.mxu0 0.0
    %3673 = vmatpush1.xpose.msra.mxu0 0.0
    %3674 = vmatprep.subr.mxu0 0.0
    %3675 = vmatpush1.xpose.msra.mxu0 0.0
    %3676 = vmatprep.subr.mxu0 0.0
    %3677 = vmatpush1.xpose.msra.mxu0 0.0
    %3678 = vmatprep.subr.mxu0 0.0
    %3679 = vmatpush1.xpose.msra.mxu0 0.0
    %3680 = vmatprep.subr.mxu0 0.0
    %3681 = vmatpush1.xpose.msra.mxu0 0.0
    %3682 = vmatprep.subr.mxu0 0.0
    %3683 = vmatpush1.xpose.msra.mxu0 0.0
    %3684 = vmatprep.subr.mxu0 0.0
    %3685 = vmatpush1.xpose.msra.mxu0 0.0
    %3686 = vmatprep.subr.mxu0 0.0
    %3687 = vmatpush1.xpose.msra.mxu0 0.0
    %3688 = vmatprep.subr.mxu0 0.0
    %3689 = vmatpush1.xpose.msra.mxu0 0.0
    %3690 = vmatprep.subr.mxu0 0.0
    %3691 = vmatpush1.xpose.msra.mxu0 0.0
    %3692 = vmatprep.subr.mxu0 0.0
    %3693 = vmatpush1.xpose.msra.mxu0 0.0
    %3694 = vmatprep.subr.mxu0 0.0
    %3695 = vmatpush1.xpose.msra.mxu0 0.0
    %3696 = vmatprep.subr.mxu0 0.0
    %3697 = vmatpush1.xpose.msra.mxu0 0.0
    %3698 = vmatprep.subr.mxu0 0.0
    %3699 = vmatpush1.xpose.msra.mxu0 0.0
    %3700 = vmatprep.subr.mxu0 0.0
    %3701 = vmatpush1.xpose.msra.mxu0 0.0
    %3702 = vmatprep.subr.mxu0 0.0
    %3703 = vmatpush1.xpose.msra.mxu0 0.0
    %3704 = vmatprep.subr.mxu0 0.0
    %3705 = vmatpush1.xpose.msra.mxu0 0.0
    %3706 = vmatprep.subr.mxu0 0.0
    %3707 = vmatpush1.xpose.msra.mxu0 0.0
    %3708 = vmatprep.subr.mxu0 0.0
    %3709 = vmatpush1.xpose.msra.mxu0 0.0
    %3710 = vmatprep.subr.mxu0 0.0
    %3711 = vmatpush1.xpose.msra.mxu0 0.0
    %3712 = vmatprep.subr.mxu0 0.0
    %3713 = vmatpush1.xpose.msra.mxu0 0.0
    %3714 = vmatprep.subr.mxu0 0.0
    %3715 = vmatpush1.xpose.msra.mxu0 0.0
    %3716 = vmatprep.subr.mxu0 0.0
    %3717 = vmatpush1.xpose.msra.mxu0 0.0
    %3718 = vmatprep.subr.mxu0 0.0
    %3719 = vmatpush1.xpose.msra.mxu0 0.0
    %3720 = vmatprep.subr.mxu0 0.0
    %3721 = vmatpush1.xpose.msra.mxu0 0.0
    %3722 = vmatprep.mubr.f32.mxu0 0.0
    %v3723 = vand.u32 %v3500, 4294901760
    %v3724 = vsub.f32 %v3500, %v3723
    %3725 = vmatmul.mubr.f32.gmra.mrb[0].mxu0 %v3724
    %v3726 = vpop.f32.mrb[0].mxu0
    %v3727 = vadd.f32 %v3653, %v3726
    %v3728 = vpop.f32.mrb[0].mxu0
    %3729 = vdwg.mxu0
    %3730 = vmatprep.subr.mxu0 0.0
    %v3731 = vand.u32 %v3502, 4294901760
    %3732 = vmatpush1.xpose.msra.mxu0 %v3731
    %3733 = vmatprep.subr.mxu0 0.0
    %3734 = vmatpush1.xpose.msra.mxu0 0.0
    %3735 = vmatprep.subr.mxu0 0.0
    %3736 = vmatpush1.xpose.msra.mxu0 0.0
    %3737 = vmatprep.subr.mxu0 0.0
    %3738 = vmatpush1.xpose.msra.mxu0 0.0
    %3739 = vmatprep.subr.mxu0 0.0
    %3740 = vmatpush1.xpose.msra.mxu0 0.0
    %3741 = vmatprep.subr.mxu0 0.0
    %3742 = vmatpush1.xpose.msra.mxu0 0.0
    %3743 = vmatprep.subr.mxu0 0.0
    %3744 = vmatpush1.xpose.msra.mxu0 0.0
    %3745 = vmatprep.subr.mxu0 0.0
    %3746 = vmatpush1.xpose.msra.mxu0 0.0
    %3747 = vmatprep.subr.mxu0 0.0
    %3748 = vmatpush1.xpose.msra.mxu0 0.0
    %3749 = vmatprep.subr.mxu0 0.0
    %3750 = vmatpush1.xpose.msra.mxu0 0.0
    %3751 = vmatprep.subr.mxu0 0.0
    %3752 = vmatpush1.xpose.msra.mxu0 0.0
    %3753 = vmatprep.subr.mxu0 0.0
    %3754 = vmatpush1.xpose.msra.mxu0 0.0
    %3755 = vmatprep.subr.mxu0 0.0
    %3756 = vmatpush1.xpose.msra.mxu0 0.0
    %3757 = vmatprep.subr.mxu0 0.0
    %3758 = vmatpush1.xpose.msra.mxu0 0.0
    %3759 = vmatprep.subr.mxu0 0.0
    %3760 = vmatpush1.xpose.msra.mxu0 0.0
    %3761 = vmatprep.subr.mxu0 0.0
    %3762 = vmatpush1.xpose.msra.mxu0 0.0
    %3763 = vmatprep.subr.mxu0 0.0
    %3764 = vmatpush1.xpose.msra.mxu0 0.0
    %3765 = vmatprep.subr.mxu0 0.0
    %3766 = vmatpush1.xpose.msra.mxu0 0.0
    %3767 = vmatprep.subr.mxu0 0.0
    %3768 = vmatpush1.xpose.msra.mxu0 0.0
    %3769 = vmatprep.subr.mxu0 0.0
    %3770 = vmatpush1.xpose.msra.mxu0 0.0
    %3771 = vmatprep.subr.mxu0 0.0
    %3772 = vmatpush1.xpose.msra.mxu0 0.0
    %3773 = vmatprep.subr.mxu0 0.0
    %3774 = vmatpush1.xpose.msra.mxu0 0.0
    %3775 = vmatprep.subr.mxu0 0.0
    %3776 = vmatpush1.xpose.msra.mxu0 0.0
    %3777 = vmatprep.subr.mxu0 0.0
    %3778 = vmatpush1.xpose.msra.mxu0 0.0
    %3779 = vmatprep.subr.mxu0 0.0
    %3780 = vmatpush1.xpose.msra.mxu0 0.0
    %3781 = vmatprep.subr.mxu0 0.0
    %3782 = vmatpush1.xpose.msra.mxu0 0.0
    %3783 = vmatprep.subr.mxu0 0.0
    %3784 = vmatpush1.xpose.msra.mxu0 0.0
    %3785 = vmatprep.subr.mxu0 0.0
    %3786 = vmatpush1.xpose.msra.mxu0 0.0
    %3787 = vmatprep.subr.mxu0 0.0
    %3788 = vmatpush1.xpose.msra.mxu0 0.0
    %3789 = vmatprep.subr.mxu0 0.0
    %3790 = vmatpush1.xpose.msra.mxu0 0.0
    %3791 = vmatprep.subr.mxu0 0.0
    %3792 = vmatpush1.xpose.msra.mxu0 0.0
    %3793 = vmatprep.subr.mxu0 0.0
    %3794 = vmatpush1.xpose.msra.mxu0 0.0
    %3795 = vmatprep.mubr.f32.mxu0 0.0
    %v3796 = vand.u32 %v3500, 4294901760
    %v3797 = vsub.f32 %v3500, %v3796
    %v3798 = vand.u32 %v3797, 4294901760
    %3799 = vmatmul.mubr.f32.gmra.mrb[0].mxu0 %v3798
    %v3800 = vpop.f32.mrb[0].mxu0
    %v3801 = vadd.f32 %v3727, %v3800
    %v3802 = vpop.f32.mrb[0].mxu0
    %3803 = vdwg.mxu0
    %3804 = vmatprep.subr.mxu0 0.0
    %v3805 = vand.u32 %v3502, 4294901760
    %v3806 = vsub.f32 %v3502, %v3805
    %v3807 = vand.u32 %v3806, 4294901760
    %3808 = vmatpush1.xpose.msra.mxu0 %v3807
    %3809 = vmatprep.subr.mxu0 0.0
    %3810 = vmatpush1.xpose.msra.mxu0 0.0
    %3811 = vmatprep.subr.mxu0 0.0
    %3812 = vmatpush1.xpose.msra.mxu0 0.0
    %3813 = vmatprep.subr.mxu0 0.0
    %3814 = vmatpush1.xpose.msra.mxu0 0.0
    %3815 = vmatprep.subr.mxu0 0.0
    %3816 = vmatpush1.xpose.msra.mxu0 0.0
    %3817 = vmatprep.subr.mxu0 0.0
    %3818 = vmatpush1.xpose.msra.mxu0 0.0
    %3819 = vmatprep.subr.mxu0 0.0
    %3820 = vmatpush1.xpose.msra.mxu0 0.0
    %3821 = vmatprep.subr.mxu0 0.0
    %3822 = vmatpush1.xpose.msra.mxu0 0.0
    %3823 = vmatprep.subr.mxu0 0.0
    %3824 = vmatpush1.xpose.msra.mxu0 0.0
    %3825 = vmatprep.subr.mxu0 0.0
    %3826 = vmatpush1.xpose.msra.mxu0 0.0
    %3827 = vmatprep.subr.mxu0 0.0
    %3828 = vmatpush1.xpose.msra.mxu0 0.0
    %3829 = vmatprep.subr.mxu0 0.0
    %3830 = vmatpush1.xpose.msra.mxu0 0.0
    %3831 = vmatprep.subr.mxu0 0.0
    %3832 = vmatpush1.xpose.msra.mxu0 0.0
    %3833 = vmatprep.subr.mxu0 0.0
    %3834 = vmatpush1.xpose.msra.mxu0 0.0
    %3835 = vmatprep.subr.mxu0 0.0
    %3836 = vmatpush1.xpose.msra.mxu0 0.0
    %3837 = vmatprep.subr.mxu0 0.0
    %3838 = vmatpush1.xpose.msra.mxu0 0.0
    %3839 = vmatprep.subr.mxu0 0.0
    %3840 = vmatpush1.xpose.msra.mxu0 0.0
    %3841 = vmatprep.subr.mxu0 0.0
    %3842 = vmatpush1.xpose.msra.mxu0 0.0
    %3843 = vmatprep.subr.mxu0 0.0
    %3844 = vmatpush1.xpose.msra.mxu0 0.0
    %3845 = vmatprep.subr.mxu0 0.0
    %3846 = vmatpush1.xpose.msra.mxu0 0.0
    %3847 = vmatprep.subr.mxu0 0.0
    %3848 = vmatpush1.xpose.msra.mxu0 0.0
    %3849 = vmatprep.subr.mxu0 0.0
    %3850 = vmatpush1.xpose.msra.mxu0 0.0
    %3851 = vmatprep.subr.mxu0 0.0
    %3852 = vmatpush1.xpose.msra.mxu0 0.0
    %3853 = vmatprep.subr.mxu0 0.0
    %3854 = vmatpush1.xpose.msra.mxu0 0.0
    %3855 = vmatprep.subr.mxu0 0.0
    %3856 = vmatpush1.xpose.msra.mxu0 0.0
    %3857 = vmatprep.subr.mxu0 0.0
    %3858 = vmatpush1.xpose.msra.mxu0 0.0
    %3859 = vmatprep.subr.mxu0 0.0
    %3860 = vmatpush1.xpose.msra.mxu0 0.0
    %3861 = vmatprep.subr.mxu0 0.0
    %3862 = vmatpush1.xpose.msra.mxu0 0.0
    %3863 = vmatprep.subr.mxu0 0.0
    %3864 = vmatpush1.xpose.msra.mxu0 0.0
    %3865 = vmatprep.subr.mxu0 0.0
    %3866 = vmatpush1.xpose.msra.mxu0 0.0
    %3867 = vmatprep.subr.mxu0 0.0
    %3868 = vmatpush1.xpose.msra.mxu0 0.0
    %3869 = vmatprep.subr.mxu0 0.0
    %3870 = vmatpush1.xpose.msra.mxu0 0.0
    %3871 = vmatprep.mubr.f32.mxu0 0.0
    %v3872 = vand.u32 %v3500, 4294901760
    %3873 = vmatmul.mubr.f32.gmra.mrb[0].mxu0 %v3872
    %v3874 = vpop.f32.mrb[0].mxu0
    %v3875 = vadd.f32 %v3801, %v3874
    %v3876 = vpop.f32.mrb[0].mxu0
    %3877 = vdwg.mxu0
    %3878 = vmatprep.subr.mxu0 0.0
    %v3879 = vand.u32 %v3502, 4294901760
    %3880 = vmatpush1.xpose.msra.mxu0 %v3879
    %3881 = vmatprep.subr.mxu0 0.0
    %3882 = vmatpush1.xpose.msra.mxu0 0.0
    %3883 = vmatprep.subr.mxu0 0.0
    %3884 = vmatpush1.xpose.msra.mxu0 0.0
    %3885 = vmatprep.subr.mxu0 0.0
    %3886 = vmatpush1.xpose.msra.mxu0 0.0
    %3887 = vmatprep.subr.mxu0 0.0
    %3888 = vmatpush1.xpose.msra.mxu0 0.0
    %3889 = vmatprep.subr.mxu0 0.0
    %3890 = vmatpush1.xpose.msra.mxu0 0.0
    %3891 = vmatprep.subr.mxu0 0.0
    %3892 = vmatpush1.xpose.msra.mxu0 0.0
    %3893 = vmatprep.subr.mxu0 0.0
    %3894 = vmatpush1.xpose.msra.mxu0 0.0
    %3895 = vmatprep.subr.mxu0 0.0
    %3896 = vmatpush1.xpose.msra.mxu0 0.0
    %3897 = vmatprep.subr.mxu0 0.0
    %3898 = vmatpush1.xpose.msra.mxu0 0.0
    %3899 = vmatprep.subr.mxu0 0.0
    %3900 = vmatpush1.xpose.msra.mxu0 0.0
    %3901 = vmatprep.subr.mxu0 0.0
    %3902 = vmatpush1.xpose.msra.mxu0 0.0
    %3903 = vmatprep.subr.mxu0 0.0
    %3904 = vmatpush1.xpose.msra.mxu0 0.0
    %3905 = vmatprep.subr.mxu0 0.0
    %3906 = vmatpush1.xpose.msra.mxu0 0.0
    %3907 = vmatprep.subr.mxu0 0.0
    %3908 = vmatpush1.xpose.msra.mxu0 0.0
    %3909 = vmatprep.subr.mxu0 0.0
    %3910 = vmatpush1.xpose.msra.mxu0 0.0
    %3911 = vmatprep.subr.mxu0 0.0
    %3912 = vmatpush1.xpose.msra.mxu0 0.0
    %3913 = vmatprep.subr.mxu0 0.0
    %3914 = vmatpush1.xpose.msra.mxu0 0.0
    %3915 = vmatprep.subr.mxu0 0.0
    %3916 = vmatpush1.xpose.msra.mxu0 0.0
    %3917 = vmatprep.subr.mxu0 0.0
    %3918 = vmatpush1.xpose.msra.mxu0 0.0
    %3919 = vmatprep.subr.mxu0 0.0
    %3920 = vmatpush1.xpose.msra.mxu0 0.0
    %3921 = vmatprep.subr.mxu0 0.0
    %3922 = vmatpush1.xpose.msra.mxu0 0.0
    %3923 = vmatprep.subr.mxu0 0.0
    %3924 = vmatpush1.xpose.msra.mxu0 0.0
    %3925 = vmatprep.subr.mxu0 0.0
    %3926 = vmatpush1.xpose.msra.mxu0 0.0
    %3927 = vmatprep.subr.mxu0 0.0
    %3928 = vmatpush1.xpose.msra.mxu0 0.0
    %3929 = vmatprep.subr.mxu0 0.0
    %3930 = vmatpush1.xpose.msra.mxu0 0.0
    %3931 = vmatprep.subr.mxu0 0.0
    %3932 = vmatpush1.xpose.msra.mxu0 0.0
    %3933 = vmatprep.subr.mxu0 0.0
    %3934 = vmatpush1.xpose.msra.mxu0 0.0
    %3935 = vmatprep.subr.mxu0 0.0
    %3936 = vmatpush1.xpose.msra.mxu0 0.0
    %3937 = vmatprep.subr.mxu0 0.0
    %3938 = vmatpush1.xpose.msra.mxu0 0.0
    %3939 = vmatprep.subr.mxu0 0.0
    %3940 = vmatpush1.xpose.msra.mxu0 0.0
    %3941 = vmatprep.subr.mxu0 0.0
    %3942 = vmatpush1.xpose.msra.mxu0 0.0
    %3943 = vmatprep.mubr.f32.mxu0 0.0
    %v3944 = vand.u32 %v3500, 4294901760
    %3945 = vmatmul.mubr.f32.gmra.mrb[0].mxu0 %v3944
    %v3946 = vpop.f32.mrb[0].mxu0
    %v3947 = vadd.f32 %v3875, %v3946
    %v3948 = vpop.f32.mrb[0].mxu0
    %3949 = vdwg.mxu0
    %3950 = vrot.lane.b32.xlu0 %v617, 112
    %v3951 = vpop.permute.xlu0 %3950
    %3952 = vrot.lane.b32.xlu0 %v617, 80
    %v3953 = vpop.permute.xlu0 %3952
    %v3954 = vsel %vm627, %v3951, 0
    %v3956 = vsel %vm627, %v3953, 0
    %3958 = vmatprep.subr.mxu0 0.0
    %v3959 = vand.u32 %v3956, 4294901760
    %3960 = vmatpush1.xpose.msra.mxu0 %v3959
    %3961 = vmatprep.subr.mxu0 0.0
    %3962 = vmatpush1.xpose.msra.mxu0 0.0
    %3963 = vmatprep.subr.mxu0 0.0
    %3964 = vmatpush1.xpose.msra.mxu0 0.0
    %3965 = vmatprep.subr.mxu0 0.0
    %3966 = vmatpush1.xpose.msra.mxu0 0.0
    %3967 = vmatprep.subr.mxu0 0.0
    %3968 = vmatpush1.xpose.msra.mxu0 0.0
    %3969 = vmatprep.subr.mxu0 0.0
    %3970 = vmatpush1.xpose.msra.mxu0 0.0
    %3971 = vmatprep.subr.mxu0 0.0
    %3972 = vmatpush1.xpose.msra.mxu0 0.0
    %3973 = vmatprep.subr.mxu0 0.0
    %3974 = vmatpush1.xpose.msra.mxu0 0.0
    %3975 = vmatprep.subr.mxu0 0.0
    %3976 = vmatpush1.xpose.msra.mxu0 0.0
    %3977 = vmatprep.subr.mxu0 0.0
    %3978 = vmatpush1.xpose.msra.mxu0 0.0
    %3979 = vmatprep.subr.mxu0 0.0
    %3980 = vmatpush1.xpose.msra.mxu0 0.0
    %3981 = vmatprep.subr.mxu0 0.0
    %3982 = vmatpush1.xpose.msra.mxu0 0.0
    %3983 = vmatprep.subr.mxu0 0.0
    %3984 = vmatpush1.xpose.msra.mxu0 0.0
    %3985 = vmatprep.subr.mxu0 0.0
    %3986 = vmatpush1.xpose.msra.mxu0 0.0
    %3987 = vmatprep.subr.mxu0 0.0
    %3988 = vmatpush1.xpose.msra.mxu0 0.0
    %3989 = vmatprep.subr.mxu0 0.0
    %3990 = vmatpush1.xpose.msra.mxu0 0.0
    %3991 = vmatprep.subr.mxu0 0.0
    %3992 = vmatpush1.xpose.msra.mxu0 0.0
    %3993 = vmatprep.subr.mxu0 0.0
    %3994 = vmatpush1.xpose.msra.mxu0 0.0
    %3995 = vmatprep.subr.mxu0 0.0
    %3996 = vmatpush1.xpose.msra.mxu0 0.0
    %3997 = vmatprep.subr.mxu0 0.0
    %3998 = vmatpush1.xpose.msra.mxu0 0.0
    %3999 = vmatprep.subr.mxu0 0.0
    %4000 = vmatpush1.xpose.msra.mxu0 0.0
    %4001 = vmatprep.subr.mxu0 0.0
    %4002 = vmatpush1.xpose.msra.mxu0 0.0
    %4003 = vmatprep.subr.mxu0 0.0
    %4004 = vmatpush1.xpose.msra.mxu0 0.0
    %4005 = vmatprep.subr.mxu0 0.0
    %4006 = vmatpush1.xpose.msra.mxu0 0.0
    %4007 = vmatprep.subr.mxu0 0.0
    %4008 = vmatpush1.xpose.msra.mxu0 0.0
    %4009 = vmatprep.subr.mxu0 0.0
    %4010 = vmatpush1.xpose.msra.mxu0 0.0
    %4011 = vmatprep.subr.mxu0 0.0
    %4012 = vmatpush1.xpose.msra.mxu0 0.0
    %4013 = vmatprep.subr.mxu0 0.0
    %4014 = vmatpush1.xpose.msra.mxu0 0.0
    %4015 = vmatprep.subr.mxu0 0.0
    %4016 = vmatpush1.xpose.msra.mxu0 0.0
    %4017 = vmatprep.subr.mxu0 0.0
    %4018 = vmatpush1.xpose.msra.mxu0 0.0
    %4019 = vmatprep.subr.mxu0 0.0
    %4020 = vmatpush1.xpose.msra.mxu0 0.0
    %4021 = vmatprep.subr.mxu0 0.0
    %4022 = vmatpush1.xpose.msra.mxu0 0.0
    %4023 = vmatprep.mubr.f32.mxu0 0.0
    %v4024 = vand.u32 %v3954, 4294901760
    %v4025 = vsub.f32 %v3954, %v4024
    %v4026 = vand.u32 %v4025, 4294901760
    %v4027 = vsub.f32 %v4025, %v4026
    %v4028 = vand.u32 %v4027, 4294901760
    %4029 = vmatmul.mubr.f32.gmra.mrb[0].mxu0 %v4028
    %v4030 = vpop.f32.mrb[0].mxu0
    %v4031 = vadd.f32 0.0, %v4030
    %v4032 = vpop.f32.mrb[0].mxu0
    %4033 = vdwg.mxu0
    %4034 = vmatprep.subr.mxu0 0.0
    %v4035 = vand.u32 %v3956, 4294901760
    %v4036 = vsub.f32 %v3956, %v4035
    %v4037 = vand.u32 %v4036, 4294901760
    %v4038 = vsub.f32 %v4036, %v4037
    %v4039 = vand.u32 %v4038, 4294901760
    %4040 = vmatpush1.xpose.msra.mxu0 %v4039
    %4041 = vmatprep.subr.mxu0 0.0
    %4042 = vmatpush1.xpose.msra.mxu0 0.0
    %4043 = vmatprep.subr.mxu0 0.0
    %4044 = vmatpush1.xpose.msra.mxu0 0.0
    %4045 = vmatprep.subr.mxu0 0.0
    %4046 = vmatpush1.xpose.msra.mxu0 0.0
    %4047 = vmatprep.subr.mxu0 0.0
    %4048 = vmatpush1.xpose.msra.mxu0 0.0
    %4049 = vmatprep.subr.mxu0 0.0
    %4050 = vmatpush1.xpose.msra.mxu0 0.0
    %4051 = vmatprep.subr.mxu0 0.0
    %4052 = vmatpush1.xpose.msra.mxu0 0.0
    %4053 = vmatprep.subr.mxu0 0.0
    %4054 = vmatpush1.xpose.msra.mxu0 0.0
    %4055 = vmatprep.subr.mxu0 0.0
    %4056 = vmatpush1.xpose.msra.mxu0 0.0
    %4057 = vmatprep.subr.mxu0 0.0
    %4058 = vmatpush1.xpose.msra.mxu0 0.0
    %4059 = vmatprep.subr.mxu0 0.0
    %4060 = vmatpush1.xpose.msra.mxu0 0.0
    %4061 = vmatprep.subr.mxu0 0.0
    %4062 = vmatpush1.xpose.msra.mxu0 0.0
    %4063 = vmatprep.subr.mxu0 0.0
    %4064 = vmatpush1.xpose.msra.mxu0 0.0
    %4065 = vmatprep.subr.mxu0 0.0
    %4066 = vmatpush1.xpose.msra.mxu0 0.0
    %4067 = vmatprep.subr.mxu0 0.0
    %4068 = vmatpush1.xpose.msra.mxu0 0.0
    %4069 = vmatprep.subr.mxu0 0.0
    %4070 = vmatpush1.xpose.msra.mxu0 0.0
    %4071 = vmatprep.subr.mxu0 0.0
    %4072 = vmatpush1.xpose.msra.mxu0 0.0
    %4073 = vmatprep.subr.mxu0 0.0
    %4074 = vmatpush1.xpose.msra.mxu0 0.0
    %4075 = vmatprep.subr.mxu0 0.0
    %4076 = vmatpush1.xpose.msra.mxu0 0.0
    %4077 = vmatprep.subr.mxu0 0.0
    %4078 = vmatpush1.xpose.msra.mxu0 0.0
    %4079 = vmatprep.subr.mxu0 0.0
    %4080 = vmatpush1.xpose.msra.mxu0 0.0
    %4081 = vmatprep.subr.mxu0 0.0
    %4082 = vmatpush1.xpose.msra.mxu0 0.0
    %4083 = vmatprep.subr.mxu0 0.0
    %4084 = vmatpush1.xpose.msra.mxu0 0.0
    %4085 = vmatprep.subr.mxu0 0.0
    %4086 = vmatpush1.xpose.msra.mxu0 0.0
    %4087 = vmatprep.subr.mxu0 0.0
    %4088 = vmatpush1.xpose.msra.mxu0 0.0
    %4089 = vmatprep.subr.mxu0 0.0
    %4090 = vmatpush1.xpose.msra.mxu0 0.0
    %4091 = vmatprep.subr.mxu0 0.0
    %4092 = vmatpush1.xpose.msra.mxu0 0.0
    %4093 = vmatprep.subr.mxu0 0.0
    %4094 = vmatpush1.xpose.msra.mxu0 0.0
    %4095 = vmatprep.subr.mxu0 0.0
    %4096 = vmatpush1.xpose.msra.mxu0 0.0
    %4097 = vmatprep.subr.mxu0 0.0
    %4098 = vmatpush1.xpose.msra.mxu0 0.0
    %4099 = vmatprep.subr.mxu0 0.0
    %4100 = vmatpush1.xpose.msra.mxu0 0.0
    %4101 = vmatprep.subr.mxu0 0.0
    %4102 = vmatpush1.xpose.msra.mxu0 0.0
    %4103 = vmatprep.mubr.f32.mxu0 0.0
    %v4104 = vand.u32 %v3954, 4294901760
    %4105 = vmatmul.mubr.f32.gmra.mrb[0].mxu0 %v4104
    %v4106 = vpop.f32.mrb[0].mxu0
    %v4107 = vadd.f32 %v4031, %v4106
    %v4108 = vpop.f32.mrb[0].mxu0
    %4109 = vdwg.mxu0
    %4110 = vmatprep.subr.mxu0 0.0
    %v4111 = vand.u32 %v3956, 4294901760
    %v4112 = vsub.f32 %v3956, %v4111
    %4113 = vmatpush1.xpose.msra.mxu0 %v4112
    %4114 = vmatprep.subr.mxu0 0.0
    %4115 = vmatpush1.xpose.msra.mxu0 0.0
    %4116 = vmatprep.subr.mxu0 0.0
    %4117 = vmatpush1.xpose.msra.mxu0 0.0
    %4118 = vmatprep.subr.mxu0 0.0
    %4119 = vmatpush1.xpose.msra.mxu0 0.0
    %4120 = vmatprep.subr.mxu0 0.0
    %4121 = vmatpush1.xpose.msra.mxu0 0.0
    %4122 = vmatprep.subr.mxu0 0.0
    %4123 = vmatpush1.xpose.msra.mxu0 0.0
    %4124 = vmatprep.subr.mxu0 0.0
    %4125 = vmatpush1.xpose.msra.mxu0 0.0
    %4126 = vmatprep.subr.mxu0 0.0
    %4127 = vmatpush1.xpose.msra.mxu0 0.0
    %4128 = vmatprep.subr.mxu0 0.0
    %4129 = vmatpush1.xpose.msra.mxu0 0.0
    %4130 = vmatprep.subr.mxu0 0.0
    %4131 = vmatpush1.xpose.msra.mxu0 0.0
    %4132 = vmatprep.subr.mxu0 0.0
    %4133 = vmatpush1.xpose.msra.mxu0 0.0
    %4134 = vmatprep.subr.mxu0 0.0
    %4135 = vmatpush1.xpose.msra.mxu0 0.0
    %4136 = vmatprep.subr.mxu0 0.0
    %4137 = vmatpush1.xpose.msra.mxu0 0.0
    %4138 = vmatprep.subr.mxu0 0.0
    %4139 = vmatpush1.xpose.msra.mxu0 0.0
    %4140 = vmatprep.subr.mxu0 0.0
    %4141 = vmatpush1.xpose.msra.mxu0 0.0
    %4142 = vmatprep.subr.mxu0 0.0
    %4143 = vmatpush1.xpose.msra.mxu0 0.0
    %4144 = vmatprep.subr.mxu0 0.0
    %4145 = vmatpush1.xpose.msra.mxu0 0.0
    %4146 = vmatprep.subr.mxu0 0.0
    %4147 = vmatpush1.xpose.msra.mxu0 0.0
    %4148 = vmatprep.subr.mxu0 0.0
    %4149 = vmatpush1.xpose.msra.mxu0 0.0
    %4150 = vmatprep.subr.mxu0 0.0
    %4151 = vmatpush1.xpose.msra.mxu0 0.0
    %4152 = vmatprep.subr.mxu0 0.0
    %4153 = vmatpush1.xpose.msra.mxu0 0.0
    %4154 = vmatprep.subr.mxu0 0.0
    %4155 = vmatpush1.xpose.msra.mxu0 0.0
    %4156 = vmatprep.subr.mxu0 0.0
    %4157 = vmatpush1.xpose.msra.mxu0 0.0
    %4158 = vmatprep.subr.mxu0 0.0
    %4159 = vmatpush1.xpose.msra.mxu0 0.0
    %4160 = vmatprep.subr.mxu0 0.0
    %4161 = vmatpush1.xpose.msra.mxu0 0.0
    %4162 = vmatprep.subr.mxu0 0.0
    %4163 = vmatpush1.xpose.msra.mxu0 0.0
    %4164 = vmatprep.subr.mxu0 0.0
    %4165 = vmatpush1.xpose.msra.mxu0 0.0
    %4166 = vmatprep.subr.mxu0 0.0
    %4167 = vmatpush1.xpose.msra.mxu0 0.0
    %4168 = vmatprep.subr.mxu0 0.0
    %4169 = vmatpush1.xpose.msra.mxu0 0.0
    %4170 = vmatprep.subr.mxu0 0.0
    %4171 = vmatpush1.xpose.msra.mxu0 0.0
    %4172 = vmatprep.subr.mxu0 0.0
    %4173 = vmatpush1.xpose.msra.mxu0 0.0
    %4174 = vmatprep.subr.mxu0 0.0
    %4175 = vmatpush1.xpose.msra.mxu0 0.0
    %4176 = vmatprep.mubr.f32.mxu0 0.0
    %v4177 = vand.u32 %v3954, 4294901760
    %v4178 = vsub.f32 %v3954, %v4177
    %4179 = vmatmul.mubr.f32.gmra.mrb[0].mxu0 %v4178
    %v4180 = vpop.f32.mrb[0].mxu0
    %v4181 = vadd.f32 %v4107, %v4180
    %v4182 = vpop.f32.mrb[0].mxu0
    %4183 = vdwg.mxu0
    %4184 = vmatprep.subr.mxu0 0.0
    %v4185 = vand.u32 %v3956, 4294901760
    %4186 = vmatpush1.xpose.msra.mxu0 %v4185
    %4187 = vmatprep.subr.mxu0 0.0
    %4188 = vmatpush1.xpose.msra.mxu0 0.0
    %4189 = vmatprep.subr.mxu0 0.0
    %4190 = vmatpush1.xpose.msra.mxu0 0.0
    %4191 = vmatprep.subr.mxu0 0.0
    %4192 = vmatpush1.xpose.msra.mxu0 0.0
    %4193 = vmatprep.subr.mxu0 0.0
    %4194 = vmatpush1.xpose.msra.mxu0 0.0
    %4195 = vmatprep.subr.mxu0 0.0
    %4196 = vmatpush1.xpose.msra.mxu0 0.0
    %4197 = vmatprep.subr.mxu0 0.0
    %4198 = vmatpush1.xpose.msra.mxu0 0.0
    %4199 = vmatprep.subr.mxu0 0.0
    %4200 = vmatpush1.xpose.msra.mxu0 0.0
    %4201 = vmatprep.subr.mxu0 0.0
    %4202 = vmatpush1.xpose.msra.mxu0 0.0
    %4203 = vmatprep.subr.mxu0 0.0
    %4204 = vmatpush1.xpose.msra.mxu0 0.0
    %4205 = vmatprep.subr.mxu0 0.0
    %4206 = vmatpush1.xpose.msra.mxu0 0.0
    %4207 = vmatprep.subr.mxu0 0.0
    %4208 = vmatpush1.xpose.msra.mxu0 0.0
    %4209 = vmatprep.subr.mxu0 0.0
    %4210 = vmatpush1.xpose.msra.mxu0 0.0
    %4211 = vmatprep.subr.mxu0 0.0
    %4212 = vmatpush1.xpose.msra.mxu0 0.0
    %4213 = vmatprep.subr.mxu0 0.0
    %4214 = vmatpush1.xpose.msra.mxu0 0.0
    %4215 = vmatprep.subr.mxu0 0.0
    %4216 = vmatpush1.xpose.msra.mxu0 0.0
    %4217 = vmatprep.subr.mxu0 0.0
    %4218 = vmatpush1.xpose.msra.mxu0 0.0
    %4219 = vmatprep.subr.mxu0 0.0
    %4220 = vmatpush1.xpose.msra.mxu0 0.0
    %4221 = vmatprep.subr.mxu0 0.0
    %4222 = vmatpush1.xpose.msra.mxu0 0.0
    %4223 = vmatprep.subr.mxu0 0.0
    %4224 = vmatpush1.xpose.msra.mxu0 0.0
    %4225 = vmatprep.subr.mxu0 0.0
    %4226 = vmatpush1.xpose.msra.mxu0 0.0
    %4227 = vmatprep.subr.mxu0 0.0
    %4228 = vmatpush1.xpose.msra.mxu0 0.0
    %4229 = vmatprep.subr.mxu0 0.0
    %4230 = vmatpush1.xpose.msra.mxu0 0.0
    %4231 = vmatprep.subr.mxu0 0.0
    %4232 = vmatpush1.xpose.msra.mxu0 0.0
    %4233 = vmatprep.subr.mxu0 0.0
    %4234 = vmatpush1.xpose.msra.mxu0 0.0
    %4235 = vmatprep.subr.mxu0 0.0
    %4236 = vmatpush1.xpose.msra.mxu0 0.0
    %4237 = vmatprep.subr.mxu0 0.0
    %4238 = vmatpush1.xpose.msra.mxu0 0.0
    %4239 = vmatprep.subr.mxu0 0.0
    %4240 = vmatpush1.xpose.msra.mxu0 0.0
    %4241 = vmatprep.subr.mxu0 0.0
    %4242 = vmatpush1.xpose.msra.mxu0 0.0
    %4243 = vmatprep.subr.mxu0 0.0
    %4244 = vmatpush1.xpose.msra.mxu0 0.0
    %4245 = vmatprep.subr.mxu0 0.0
    %4246 = vmatpush1.xpose.msra.mxu0 0.0
    %4247 = vmatprep.subr.mxu0 0.0
    %4248 = vmatpush1.xpose.msra.mxu0 0.0
    %4249 = vmatprep.mubr.f32.mxu0 0.0
    %v4250 = vand.u32 %v3954, 4294901760
    %v4251 = vsub.f32 %v3954, %v4250
    %v4252 = vand.u32 %v4251, 4294901760
    %4253 = vmatmul.mubr.f32.gmra.mrb[0].mxu0 %v4252
    %v4254 = vpop.f32.mrb[0].mxu0
    %v4255 = vadd.f32 %v4181, %v4254
    %v4256 = vpop.f32.mrb[0].mxu0
    %4257 = vdwg.mxu0
    %4258 = vmatprep.subr.mxu0 0.0
    %v4259 = vand.u32 %v3956, 4294901760
    %v4260 = vsub.f32 %v3956, %v4259
    %v4261 = vand.u32 %v4260, 4294901760
    %4262 = vmatpush1.xpose.msra.mxu0 %v4261
    %4263 = vmatprep.subr.mxu0 0.0
    %4264 = vmatpush1.xpose.msra.mxu0 0.0
    %4265 = vmatprep.subr.mxu0 0.0
    %4266 = vmatpush1.xpose.msra.mxu0 0.0
    %4267 = vmatprep.subr.mxu0 0.0
    %4268 = vmatpush1.xpose.msra.mxu0 0.0
    %4269 = vmatprep.subr.mxu0 0.0
    %4270 = vmatpush1.xpose.msra.mxu0 0.0
    %4271 = vmatprep.subr.mxu0 0.0
    %4272 = vmatpush1.xpose.msra.mxu0 0.0
    %4273 = vmatprep.subr.mxu0 0.0
    %4274 = vmatpush1.xpose.msra.mxu0 0.0
    %4275 = vmatprep.subr.mxu0 0.0
    %4276 = vmatpush1.xpose.msra.mxu0 0.0
    %4277 = vmatprep.subr.mxu0 0.0
    %4278 = vmatpush1.xpose.msra.mxu0 0.0
    %4279 = vmatprep.subr.mxu0 0.0
    %4280 = vmatpush1.xpose.msra.mxu0 0.0
    %4281 = vmatprep.subr.mxu0 0.0
    %4282 = vmatpush1.xpose.msra.mxu0 0.0
    %4283 = vmatprep.subr.mxu0 0.0
    %4284 = vmatpush1.xpose.msra.mxu0 0.0
    %4285 = vmatprep.subr.mxu0 0.0
    %4286 = vmatpush1.xpose.msra.mxu0 0.0
    %4287 = vmatprep.subr.mxu0 0.0
    %4288 = vmatpush1.xpose.msra.mxu0 0.0
    %4289 = vmatprep.subr.mxu0 0.0
    %4290 = vmatpush1.xpose.msra.mxu0 0.0
    %4291 = vmatprep.subr.mxu0 0.0
    %4292 = vmatpush1.xpose.msra.mxu0 0.0
    %4293 = vmatprep.subr.mxu0 0.0
    %4294 = vmatpush1.xpose.msra.mxu0 0.0
    %4295 = vmatprep.subr.mxu0 0.0
    %4296 = vmatpush1.xpose.msra.mxu0 0.0
    %4297 = vmatprep.subr.mxu0 0.0
    %4298 = vmatpush1.xpose.msra.mxu0 0.0
    %4299 = vmatprep.subr.mxu0 0.0
    %4300 = vmatpush1.xpose.msra.mxu0 0.0
    %4301 = vmatprep.subr.mxu0 0.0
    %4302 = vmatpush1.xpose.msra.mxu0 0.0
    %4303 = vmatprep.subr.mxu0 0.0
    %4304 = vmatpush1.xpose.msra.mxu0 0.0
    %4305 = vmatprep.subr.mxu0 0.0
    %4306 = vmatpush1.xpose.msra.mxu0 0.0
    %4307 = vmatprep.subr.mxu0 0.0
    %4308 = vmatpush1.xpose.msra.mxu0 0.0
    %4309 = vmatprep.subr.mxu0 0.0
    %4310 = vmatpush1.xpose.msra.mxu0 0.0
    %4311 = vmatprep.subr.mxu0 0.0
    %4312 = vmatpush1.xpose.msra.mxu0 0.0
    %4313 = vmatprep.subr.mxu0 0.0
    %4314 = vmatpush1.xpose.msra.mxu0 0.0
    %4315 = vmatprep.subr.mxu0 0.0
    %4316 = vmatpush1.xpose.msra.mxu0 0.0
    %4317 = vmatprep.subr.mxu0 0.0
    %4318 = vmatpush1.xpose.msra.mxu0 0.0
    %4319 = vmatprep.subr.mxu0 0.0
    %4320 = vmatpush1.xpose.msra.mxu0 0.0
    %4321 = vmatprep.subr.mxu0 0.0
    %4322 = vmatpush1.xpose.msra.mxu0 0.0
    %4323 = vmatprep.subr.mxu0 0.0
    %4324 = vmatpush1.xpose.msra.mxu0 0.0
    %4325 = vmatprep.mubr.f32.mxu0 0.0
    %v4326 = vand.u32 %v3954, 4294901760
    %4327 = vmatmul.mubr.f32.gmra.mrb[0].mxu0 %v4326
    %v4328 = vpop.f32.mrb[0].mxu0
    %v4329 = vadd.f32 %v4255, %v4328
    %v4330 = vpop.f32.mrb[0].mxu0
    %4331 = vdwg.mxu0
    %4332 = vmatprep.subr.mxu0 0.0
    %v4333 = vand.u32 %v3956, 4294901760
    %4334 = vmatpush1.xpose.msra.mxu0 %v4333
    %4335 = vmatprep.subr.mxu0 0.0
    %4336 = vmatpush1.xpose.msra.mxu0 0.0
    %4337 = vmatprep.subr.mxu0 0.0
    %4338 = vmatpush1.xpose.msra.mxu0 0.0
    %4339 = vmatprep.subr.mxu0 0.0
    %4340 = vmatpush1.xpose.msra.mxu0 0.0
    %4341 = vmatprep.subr.mxu0 0.0
    %4342 = vmatpush1.xpose.msra.mxu0 0.0
    %4343 = vmatprep.subr.mxu0 0.0
    %4344 = vmatpush1.xpose.msra.mxu0 0.0
    %4345 = vmatprep.subr.mxu0 0.0
    %4346 = vmatpush1.xpose.msra.mxu0 0.0
    %4347 = vmatprep.subr.mxu0 0.0
    %4348 = vmatpush1.xpose.msra.mxu0 0.0
    %4349 = vmatprep.subr.mxu0 0.0
    %4350 = vmatpush1.xpose.msra.mxu0 0.0
    %4351 = vmatprep.subr.mxu0 0.0
    %4352 = vmatpush1.xpose.msra.mxu0 0.0
    %4353 = vmatprep.subr.mxu0 0.0
    %4354 = vmatpush1.xpose.msra.mxu0 0.0
    %4355 = vmatprep.subr.mxu0 0.0
    %4356 = vmatpush1.xpose.msra.mxu0 0.0
    %4357 = vmatprep.subr.mxu0 0.0
    %4358 = vmatpush1.xpose.msra.mxu0 0.0
    %4359 = vmatprep.subr.mxu0 0.0
    %4360 = vmatpush1.xpose.msra.mxu0 0.0
    %4361 = vmatprep.subr.mxu0 0.0
    %4362 = vmatpush1.xpose.msra.mxu0 0.0
    %4363 = vmatprep.subr.mxu0 0.0
    %4364 = vmatpush1.xpose.msra.mxu0 0.0
    %4365 = vmatprep.subr.mxu0 0.0
    %4366 = vmatpush1.xpose.msra.mxu0 0.0
    %4367 = vmatprep.subr.mxu0 0.0
    %4368 = vmatpush1.xpose.msra.mxu0 0.0
    %4369 = vmatprep.subr.mxu0 0.0
    %4370 = vmatpush1.xpose.msra.mxu0 0.0
    %4371 = vmatprep.subr.mxu0 0.0
    %4372 = vmatpush1.xpose.msra.mxu0 0.0
    %4373 = vmatprep.subr.mxu0 0.0
    %4374 = vmatpush1.xpose.msra.mxu0 0.0
    %4375 = vmatprep.subr.mxu0 0.0
    %4376 = vmatpush1.xpose.msra.mxu0 0.0
    %4377 = vmatprep.subr.mxu0 0.0
    %4378 = vmatpush1.xpose.msra.mxu0 0.0
    %4379 = vmatprep.subr.mxu0 0.0
    %4380 = vmatpush1.xpose.msra.mxu0 0.0
    %4381 = vmatprep.subr.mxu0 0.0
    %4382 = vmatpush1.xpose.msra.mxu0 0.0
    %4383 = vmatprep.subr.mxu0 0.0
    %4384 = vmatpush1.xpose.msra.mxu0 0.0
    %4385 = vmatprep.subr.mxu0 0.0
    %4386 = vmatpush1.xpose.msra.mxu0 0.0
    %4387 = vmatprep.subr.mxu0 0.0
    %4388 = vmatpush1.xpose.msra.mxu0 0.0
    %4389 = vmatprep.subr.mxu0 0.0
    %4390 = vmatpush1.xpose.msra.mxu0 0.0
    %4391 = vmatprep.subr.mxu0 0.0
    %4392 = vmatpush1.xpose.msra.mxu0 0.0
    %4393 = vmatprep.subr.mxu0 0.0
    %4394 = vmatpush1.xpose.msra.mxu0 0.0
    %4395 = vmatprep.subr.mxu0 0.0
    %4396 = vmatpush1.xpose.msra.mxu0 0.0
    %4397 = vmatprep.mubr.f32.mxu0 0.0
    %v4398 = vand.u32 %v3954, 4294901760
    %4399 = vmatmul.mubr.f32.gmra.mrb[0].mxu0 %v4398
    %v4400 = vpop.f32.mrb[0].mxu0
    %v4401 = vadd.f32 %v4329, %v4400
    %v4402 = vpop.f32.mrb[0].mxu0
    %4403 = vdwg.mxu0
    %v4404 = vsel %vm1531, %v3947, -inf
    %4405 = vmax.xlane.f32.xlu0 %v4404
    %v4406 = vpop.xlane.xlu0 %4405
    %v4407 = vsel %vm1531, %v4401, -inf
    %4408 = vmax.xlane.f32.xlu0 %v4407
    %v4409 = vpop.xlane.xlu0 %4408
    %v4410 = vsub.f32 %v3947, %v4406
    %v4411 = vsub.f32 %v4401, %v4409
    %v4412 = vmul.f32 %v4410, 1.442695
    %v4413 = vpow.pop %v4412
    %v4414 = vmul.f32 %v4411, 1.442695
    %v4415 = vpow.pop %v4414
    %v4416 = vsel %vm1531, %v4413, 0.0
    %4417 = vadd.xlane.f32.xlu0 %v4416
    %v4418 = vpop.xlane.xlu0 %4417
    %v4419 = vsel %vm1531, %v4415, 0.0
    %4420 = vadd.xlane.f32.xlu0 %v4419
    %v4421 = vpop.xlane.xlu0 %4420
    %v4422 = vrcp.pop %v4418
    %v4423 = vrcp.pop %v4421
    %v4424 = vmul.f32 %v4413, %v4422
    %v4425 = vmul.f32 %v4415, %v4423
    %4426 = vrot.lane.b32.xlu0 %v611, 48
    %v4427 = vpop.permute.xlu0 %4426
    %v4430 = vsel %vm1531, %v4424, 0
    %4432 = vmatprep.subr.mxu0 0.0
    %v4433 = vand.u32 %v4427, 4294901760
    %4434 = vmatpush1.msra.mxu0 %v4433
    %4435 = vmatprep.subr.mxu0 0.0
    %4436 = vmatpush1.msra.mxu0 0.0
    %4437 = vmatprep.subr.mxu0 0.0
    %4438 = vmatpush1.msra.mxu0 0.0
    %4439 = vmatprep.subr.mxu0 0.0
    %4440 = vmatpush1.msra.mxu0 0.0
    %4441 = vmatprep.subr.mxu0 0.0
    %4442 = vmatpush1.msra.mxu0 0.0
    %4443 = vmatprep.subr.mxu0 0.0
    %4444 = vmatpush1.msra.mxu0 0.0
    %4445 = vmatprep.subr.mxu0 0.0
    %4446 = vmatpush1.msra.mxu0 0.0
    %4447 = vmatprep.subr.mxu0 0.0
    %4448 = vmatpush1.msra.mxu0 0.0
    %4449 = vmatprep.subr.mxu0 0.0
    %4450 = vmatpush1.msra.mxu0 0.0
    %4451 = vmatprep.subr.mxu0 0.0
    %4452 = vmatpush1.msra.mxu0 0.0
    %4453 = vmatprep.subr.mxu0 0.0
    %4454 = vmatpush1.msra.mxu0 0.0
    %4455 = vmatprep.subr.mxu0 0.0
    %4456 = vmatpush1.msra.mxu0 0.0
    %4457 = vmatprep.subr.mxu0 0.0
    %4458 = vmatpush1.msra.mxu0 0.0
    %4459 = vmatprep.subr.mxu0 0.0
    %4460 = vmatpush1.msra.mxu0 0.0
    %4461 = vmatprep.subr.mxu0 0.0
    %4462 = vmatpush1.msra.mxu0 0.0
    %4463 = vmatprep.subr.mxu0 0.0
    %4464 = vmatpush1.msra.mxu0 0.0
    %4465 = vmatprep.subr.mxu0 0.0
    %4466 = vmatpush1.msra.mxu0 0.0
    %4467 = vmatprep.subr.mxu0 0.0
    %4468 = vmatpush1.msra.mxu0 0.0
    %4469 = vmatprep.subr.mxu0 0.0
    %4470 = vmatpush1.msra.mxu0 0.0
    %4471 = vmatprep.subr.mxu0 0.0
    %4472 = vmatpush1.msra.mxu0 0.0
    %4473 = vmatprep.subr.mxu0 0.0
    %4474 = vmatpush1.msra.mxu0 0.0
    %4475 = vmatprep.subr.mxu0 0.0
    %4476 = vmatpush1.msra.mxu0 0.0
    %4477 = vmatprep.subr.mxu0 0.0
    %4478 = vmatpush1.msra.mxu0 0.0
    %4479 = vmatprep.subr.mxu0 0.0
    %4480 = vmatpush1.msra.mxu0 0.0
    %4481 = vmatprep.subr.mxu0 0.0
    %4482 = vmatpush1.msra.mxu0 0.0
    %4483 = vmatprep.subr.mxu0 0.0
    %4484 = vmatpush1.msra.mxu0 0.0
    %4485 = vmatprep.subr.mxu0 0.0
    %4486 = vmatpush1.msra.mxu0 0.0
    %4487 = vmatprep.subr.mxu0 0.0
    %4488 = vmatpush1.msra.mxu0 0.0
    %4489 = vmatprep.subr.mxu0 0.0
    %4490 = vmatpush1.msra.mxu0 0.0
    %4491 = vmatprep.subr.mxu0 0.0
    %4492 = vmatpush1.msra.mxu0 0.0
    %4493 = vmatprep.subr.mxu0 0.0
    %4494 = vmatpush1.msra.mxu0 0.0
    %4495 = vmatprep.subr.mxu0 0.0
    %4496 = vmatpush1.msra.mxu0 0.0
    %4497 = vmatprep.mubr.f32.mxu0 0.0
    %v4498 = vand.u32 %v4430, 4294901760
    %v4499 = vsub.f32 %v4430, %v4498
    %v4500 = vand.u32 %v4499, 4294901760
    %v4501 = vsub.f32 %v4499, %v4500
    %v4502 = vand.u32 %v4501, 4294901760
    %4503 = vmatmul.mubr.f32.gmra.mrb[0].mxu0 %v4502
    %v4504 = vpop.f32.mrb[0].mxu0
    %v4505 = vadd.f32 0.0, %v4504
    %v4506 = vpop.f32.mrb[0].mxu0
    %4507 = vdwg.mxu0
    %4508 = vmatprep.subr.mxu0 0.0
    %v4509 = vand.u32 %v4427, 4294901760
    %v4510 = vsub.f32 %v4427, %v4509
    %v4511 = vand.u32 %v4510, 4294901760
    %v4512 = vsub.f32 %v4510, %v4511
    %v4513 = vand.u32 %v4512, 4294901760
    %4514 = vmatpush1.msra.mxu0 %v4513
    %4515 = vmatprep.subr.mxu0 0.0
    %4516 = vmatpush1.msra.mxu0 0.0
    %4517 = vmatprep.subr.mxu0 0.0
    %4518 = vmatpush1.msra.mxu0 0.0
    %4519 = vmatprep.subr.mxu0 0.0
    %4520 = vmatpush1.msra.mxu0 0.0
    %4521 = vmatprep.subr.mxu0 0.0
    %4522 = vmatpush1.msra.mxu0 0.0
    %4523 = vmatprep.subr.mxu0 0.0
    %4524 = vmatpush1.msra.mxu0 0.0
    %4525 = vmatprep.subr.mxu0 0.0
    %4526 = vmatpush1.msra.mxu0 0.0
    %4527 = vmatprep.subr.mxu0 0.0
    %4528 = vmatpush1.msra.mxu0 0.0
    %4529 = vmatprep.subr.mxu0 0.0
    %4530 = vmatpush1.msra.mxu0 0.0
    %4531 = vmatprep.subr.mxu0 0.0
    %4532 = vmatpush1.msra.mxu0 0.0
    %4533 = vmatprep.subr.mxu0 0.0
    %4534 = vmatpush1.msra.mxu0 0.0
    %4535 = vmatprep.subr.mxu0 0.0
    %4536 = vmatpush1.msra.mxu0 0.0
    %4537 = vmatprep.subr.mxu0 0.0
    %4538 = vmatpush1.msra.mxu0 0.0
    %4539 = vmatprep.subr.mxu0 0.0
    %4540 = vmatpush1.msra.mxu0 0.0
    %4541 = vmatprep.subr.mxu0 0.0
    %4542 = vmatpush1.msra.mxu0 0.0
    %4543 = vmatprep.subr.mxu0 0.0
    %4544 = vmatpush1.msra.mxu0 0.0
    %4545 = vmatprep.subr.mxu0 0.0
    %4546 = vmatpush1.msra.mxu0 0.0
    %4547 = vmatprep.subr.mxu0 0.0
    %4548 = vmatpush1.msra.mxu0 0.0
    %4549 = vmatprep.subr.mxu0 0.0
    %4550 = vmatpush1.msra.mxu0 0.0
    %4551 = vmatprep.subr.mxu0 0.0
    %4552 = vmatpush1.msra.mxu0 0.0
    %4553 = vmatprep.subr.mxu0 0.0
    %4554 = vmatpush1.msra.mxu0 0.0
    %4555 = vmatprep.subr.mxu0 0.0
    %4556 = vmatpush1.msra.mxu0 0.0
    %4557 = vmatprep.subr.mxu0 0.0
    %4558 = vmatpush1.msra.mxu0 0.0
    %4559 = vmatprep.subr.mxu0 0.0
    %4560 = vmatpush1.msra.mxu0 0.0
    %4561 = vmatprep.subr.mxu0 0.0
    %4562 = vmatpush1.msra.mxu0 0.0
    %4563 = vmatprep.subr.mxu0 0.0
    %4564 = vmatpush1.msra.mxu0 0.0
    %4565 = vmatprep.subr.mxu0 0.0
    %4566 = vmatpush1.msra.mxu0 0.0
    %4567 = vmatprep.subr.mxu0 0.0
    %4568 = vmatpush1.msra.mxu0 0.0
    %4569 = vmatprep.subr.mxu0 0.0
    %4570 = vmatpush1.msra.mxu0 0.0
    %4571 = vmatprep.subr.mxu0 0.0
    %4572 = vmatpush1.msra.mxu0 0.0
    %4573 = vmatprep.subr.mxu0 0.0
    %4574 = vmatpush1.msra.mxu0 0.0
    %4575 = vmatprep.subr.mxu0 0.0
    %4576 = vmatpush1.msra.mxu0 0.0
    %4577 = vmatprep.mubr.f32.mxu0 0.0
    %v4578 = vand.u32 %v4430, 4294901760
    %4579 = vmatmul.mubr.f32.gmra.mrb[0].mxu0 %v4578
    %v4580 = vpop.f32.mrb[0].mxu0
    %v4581 = vadd.f32 %v4505, %v4580
    %v4582 = vpop.f32.mrb[0].mxu0
    %4583 = vdwg.mxu0
    %4584 = vmatprep.subr.mxu0 0.0
    %v4585 = vand.u32 %v4427, 4294901760
    %v4586 = vsub.f32 %v4427, %v4585
    %4587 = vmatpush1.msra.mxu0 %v4586
    %4588 = vmatprep.subr.mxu0 0.0
    %4589 = vmatpush1.msra.mxu0 0.0
    %4590 = vmatprep.subr.mxu0 0.0
    %4591 = vmatpush1.msra.mxu0 0.0
    %4592 = vmatprep.subr.mxu0 0.0
    %4593 = vmatpush1.msra.mxu0 0.0
    %4594 = vmatprep.subr.mxu0 0.0
    %4595 = vmatpush1.msra.mxu0 0.0
    %4596 = vmatprep.subr.mxu0 0.0
    %4597 = vmatpush1.msra.mxu0 0.0
    %4598 = vmatprep.subr.mxu0 0.0
    %4599 = vmatpush1.msra.mxu0 0.0
    %4600 = vmatprep.subr.mxu0 0.0
    %4601 = vmatpush1.msra.mxu0 0.0
    %4602 = vmatprep.subr.mxu0 0.0
    %4603 = vmatpush1.msra.mxu0 0.0
    %4604 = vmatprep.subr.mxu0 0.0
    %4605 = vmatpush1.msra.mxu0 0.0
    %4606 = vmatprep.subr.mxu0 0.0
    %4607 = vmatpush1.msra.mxu0 0.0
    %4608 = vmatprep.subr.mxu0 0.0
    %4609 = vmatpush1.msra.mxu0 0.0
    %4610 = vmatprep.subr.mxu0 0.0
    %4611 = vmatpush1.msra.mxu0 0.0
    %4612 = vmatprep.subr.mxu0 0.0
    %4613 = vmatpush1.msra.mxu0 0.0
    %4614 = vmatprep.subr.mxu0 0.0
    %4615 = vmatpush1.msra.mxu0 0.0
    %4616 = vmatprep.subr.mxu0 0.0
    %4617 = vmatpush1.msra.mxu0 0.0
    %4618 = vmatprep.subr.mxu0 0.0
    %4619 = vmatpush1.msra.mxu0 0.0
    %4620 = vmatprep.subr.mxu0 0.0
    %4621 = vmatpush1.msra.mxu0 0.0
    %4622 = vmatprep.subr.mxu0 0.0
    %4623 = vmatpush1.msra.mxu0 0.0
    %4624 = vmatprep.subr.mxu0 0.0
    %4625 = vmatpush1.msra.mxu0 0.0
    %4626 = vmatprep.subr.mxu0 0.0
    %4627 = vmatpush1.msra.mxu0 0.0
    %4628 = vmatprep.subr.mxu0 0.0
    %4629 = vmatpush1.msra.mxu0 0.0
    %4630 = vmatprep.subr.mxu0 0.0
    %4631 = vmatpush1.msra.mxu0 0.0
    %4632 = vmatprep.subr.mxu0 0.0
    %4633 = vmatpush1.msra.mxu0 0.0
    %4634 = vmatprep.subr.mxu0 0.0
    %4635 = vmatpush1.msra.mxu0 0.0
    %4636 = vmatprep.subr.mxu0 0.0
    %4637 = vmatpush1.msra.mxu0 0.0
    %4638 = vmatprep.subr.mxu0 0.0
    %4639 = vmatpush1.msra.mxu0 0.0
    %4640 = vmatprep.subr.mxu0 0.0
    %4641 = vmatpush1.msra.mxu0 0.0
    %4642 = vmatprep.subr.mxu0 0.0
    %4643 = vmatpush1.msra.mxu0 0.0
    %4644 = vmatprep.subr.mxu0 0.0
    %4645 = vmatpush1.msra.mxu0 0.0
    %4646 = vmatprep.subr.mxu0 0.0
    %4647 = vmatpush1.msra.mxu0 0.0
    %4648 = vmatprep.subr.mxu0 0.0
    %4649 = vmatpush1.msra.mxu0 0.0
    %4650 = vmatprep.mubr.f32.mxu0 0.0
    %v4651 = vand.u32 %v4430, 4294901760
    %v4652 = vsub.f32 %v4430, %v4651
    %4653 = vmatmul.mubr.f32.gmra.mrb[0].mxu0 %v4652
    %v4654 = vpop.f32.mrb[0].mxu0
    %v4655 = vadd.f32 %v4581, %v4654
    %v4656 = vpop.f32.mrb[0].mxu0
    %4657 = vdwg.mxu0
    %4658 = vmatprep.subr.mxu0 0.0
    %v4659 = vand.u32 %v4427, 4294901760
    %4660 = vmatpush1.msra.mxu0 %v4659
    %4661 = vmatprep.subr.mxu0 0.0
    %4662 = vmatpush1.msra.mxu0 0.0
    %4663 = vmatprep.subr.mxu0 0.0
    %4664 = vmatpush1.msra.mxu0 0.0
    %4665 = vmatprep.subr.mxu0 0.0
    %4666 = vmatpush1.msra.mxu0 0.0
    %4667 = vmatprep.subr.mxu0 0.0
    %4668 = vmatpush1.msra.mxu0 0.0
    %4669 = vmatprep.subr.mxu0 0.0
    %4670 = vmatpush1.msra.mxu0 0.0
    %4671 = vmatprep.subr.mxu0 0.0
    %4672 = vmatpush1.msra.mxu0 0.0
    %4673 = vmatprep.subr.mxu0 0.0
    %4674 = vmatpush1.msra.mxu0 0.0
    %4675 = vmatprep.subr.mxu0 0.0
    %4676 = vmatpush1.msra.mxu0 0.0
    %4677 = vmatprep.subr.mxu0 0.0
    %4678 = vmatpush1.msra.mxu0 0.0
    %4679 = vmatprep.subr.mxu0 0.0
    %4680 = vmatpush1.msra.mxu0 0.0
    %4681 = vmatprep.subr.mxu0 0.0
    %4682 = vmatpush1.msra.mxu0 0.0
    %4683 = vmatprep.subr.mxu0 0.0
    %4684 = vmatpush1.msra.mxu0 0.0
    %4685 = vmatprep.subr.mxu0 0.0
    %4686 = vmatpush1.msra.mxu0 0.0
    %4687 = vmatprep.subr.mxu0 0.0
    %4688 = vmatpush1.msra.mxu0 0.0
    %4689 = vmatprep.subr.mxu0 0.0
    %4690 = vmatpush1.msra.mxu0 0.0
    %4691 = vmatprep.subr.mxu0 0.0
    %4692 = vmatpush1.msra.mxu0 0.0
    %4693 = vmatprep.subr.mxu0 0.0
    %4694 = vmatpush1.msra.mxu0 0.0
    %4695 = vmatprep.subr.mxu0 0.0
    %4696 = vmatpush1.msra.mxu0 0.0
    %4697 = vmatprep.subr.mxu0 0.0
    %4698 = vmatpush1.msra.mxu0 0.0
    %4699 = vmatprep.subr.mxu0 0.0
    %4700 = vmatpush1.msra.mxu0 0.0
    %4701 = vmatprep.subr.mxu0 0.0
    %4702 = vmatpush1.msra.mxu0 0.0
    %4703 = vmatprep.subr.mxu0 0.0
    %4704 = vmatpush1.msra.mxu0 0.0
    %4705 = vmatprep.subr.mxu0 0.0
    %4706 = vmatpush1.msra.mxu0 0.0
    %4707 = vmatprep.subr.mxu0 0.0
    %4708 = vmatpush1.msra.mxu0 0.0
    %4709 = vmatprep.subr.mxu0 0.0
    %4710 = vmatpush1.msra.mxu0 0.0
    %4711 = vmatprep.subr.mxu0 0.0
    %4712 = vmatpush1.msra.mxu0 0.0
    %4713 = vmatprep.subr.mxu0 0.0
    %4714 = vmatpush1.msra.mxu0 0.0
    %4715 = vmatprep.subr.mxu0 0.0
    %4716 = vmatpush1.msra.mxu0 0.0
    %4717 = vmatprep.subr.mxu0 0.0
    %4718 = vmatpush1.msra.mxu0 0.0
    %4719 = vmatprep.subr.mxu0 0.0
    %4720 = vmatpush1.msra.mxu0 0.0
    %4721 = vmatprep.subr.mxu0 0.0
    %4722 = vmatpush1.msra.mxu0 0.0
    %4723 = vmatprep.mubr.f32.mxu0 0.0
    %v4724 = vand.u32 %v4430, 4294901760
    %v4725 = vsub.f32 %v4430, %v4724
    %v4726 = vand.u32 %v4725, 4294901760
    %4727 = vmatmul.mubr.f32.gmra.mrb[0].mxu0 %v4726
    %v4728 = vpop.f32.mrb[0].mxu0
    %v4729 = vadd.f32 %v4655, %v4728
    %v4730 = vpop.f32.mrb[0].mxu0
    %4731 = vdwg.mxu0
    %4732 = vmatprep.subr.mxu0 0.0
    %v4733 = vand.u32 %v4427, 4294901760
    %v4734 = vsub.f32 %v4427, %v4733
    %v4735 = vand.u32 %v4734, 4294901760
    %4736 = vmatpush1.msra.mxu0 %v4735
    %4737 = vmatprep.subr.mxu0 0.0
    %4738 = vmatpush1.msra.mxu0 0.0
    %4739 = vmatprep.subr.mxu0 0.0
    %4740 = vmatpush1.msra.mxu0 0.0
    %4741 = vmatprep.subr.mxu0 0.0
    %4742 = vmatpush1.msra.mxu0 0.0
    %4743 = vmatprep.subr.mxu0 0.0
    %4744 = vmatpush1.msra.mxu0 0.0
    %4745 = vmatprep.subr.mxu0 0.0
    %4746 = vmatpush1.msra.mxu0 0.0
    %4747 = vmatprep.subr.mxu0 0.0
    %4748 = vmatpush1.msra.mxu0 0.0
    %4749 = vmatprep.subr.mxu0 0.0
    %4750 = vmatpush1.msra.mxu0 0.0
    %4751 = vmatprep.subr.mxu0 0.0
    %4752 = vmatpush1.msra.mxu0 0.0
    %4753 = vmatprep.subr.mxu0 0.0
    %4754 = vmatpush1.msra.mxu0 0.0
    %4755 = vmatprep.subr.mxu0 0.0
    %4756 = vmatpush1.msra.mxu0 0.0
    %4757 = vmatprep.subr.mxu0 0.0
    %4758 = vmatpush1.msra.mxu0 0.0
    %4759 = vmatprep.subr.mxu0 0.0
    %4760 = vmatpush1.msra.mxu0 0.0
    %4761 = vmatprep.subr.mxu0 0.0
    %4762 = vmatpush1.msra.mxu0 0.0
    %4763 = vmatprep.subr.mxu0 0.0
    %4764 = vmatpush1.msra.mxu0 0.0
    %4765 = vmatprep.subr.mxu0 0.0
    %4766 = vmatpush1.msra.mxu0 0.0
    %4767 = vmatprep.subr.mxu0 0.0
    %4768 = vmatpush1.msra.mxu0 0.0
    %4769 = vmatprep.subr.mxu0 0.0
    %4770 = vmatpush1.msra.mxu0 0.0
    %4771 = vmatprep.subr.mxu0 0.0
    %4772 = vmatpush1.msra.mxu0 0.0
    %4773 = vmatprep.subr.mxu0 0.0
    %4774 = vmatpush1.msra.mxu0 0.0
    %4775 = vmatprep.subr.mxu0 0.0
    %4776 = vmatpush1.msra.mxu0 0.0
    %4777 = vmatprep.subr.mxu0 0.0
    %4778 = vmatpush1.msra.mxu0 0.0
    %4779 = vmatprep.subr.mxu0 0.0
    %4780 = vmatpush1.msra.mxu0 0.0
    %4781 = vmatprep.subr.mxu0 0.0
    %4782 = vmatpush1.msra.mxu0 0.0
    %4783 = vmatprep.subr.mxu0 0.0
    %4784 = vmatpush1.msra.mxu0 0.0
    %4785 = vmatprep.subr.mxu0 0.0
    %4786 = vmatpush1.msra.mxu0 0.0
    %4787 = vmatprep.subr.mxu0 0.0
    %4788 = vmatpush1.msra.mxu0 0.0
    %4789 = vmatprep.subr.mxu0 0.0
    %4790 = vmatpush1.msra.mxu0 0.0
    %4791 = vmatprep.subr.mxu0 0.0
    %4792 = vmatpush1.msra.mxu0 0.0
    %4793 = vmatprep.subr.mxu0 0.0
    %4794 = vmatpush1.msra.mxu0 0.0
    %4795 = vmatprep.subr.mxu0 0.0
    %4796 = vmatpush1.msra.mxu0 0.0
    %4797 = vmatprep.subr.mxu0 0.0
    %4798 = vmatpush1.msra.mxu0 0.0
    %4799 = vmatprep.mubr.f32.mxu0 0.0
    %v4800 = vand.u32 %v4430, 4294901760
    %4801 = vmatmul.mubr.f32.gmra.mrb[0].mxu0 %v4800
    %v4802 = vpop.f32.mrb[0].mxu0
    %v4803 = vadd.f32 %v4729, %v4802
    %v4804 = vpop.f32.mrb[0].mxu0
    %4805 = vdwg.mxu0
    %4806 = vmatprep.subr.mxu0 0.0
    %v4807 = vand.u32 %v4427, 4294901760
    %4808 = vmatpush1.msra.mxu0 %v4807
    %4809 = vmatprep.subr.mxu0 0.0
    %4810 = vmatpush1.msra.mxu0 0.0
    %4811 = vmatprep.subr.mxu0 0.0
    %4812 = vmatpush1.msra.mxu0 0.0
    %4813 = vmatprep.subr.mxu0 0.0
    %4814 = vmatpush1.msra.mxu0 0.0
    %4815 = vmatprep.subr.mxu0 0.0
    %4816 = vmatpush1.msra.mxu0 0.0
    %4817 = vmatprep.subr.mxu0 0.0
    %4818 = vmatpush1.msra.mxu0 0.0
    %4819 = vmatprep.subr.mxu0 0.0
    %4820 = vmatpush1.msra.mxu0 0.0
    %4821 = vmatprep.subr.mxu0 0.0
    %4822 = vmatpush1.msra.mxu0 0.0
    %4823 = vmatprep.subr.mxu0 0.0
    %4824 = vmatpush1.msra.mxu0 0.0
    %4825 = vmatprep.subr.mxu0 0.0
    %4826 = vmatpush1.msra.mxu0 0.0
    %4827 = vmatprep.subr.mxu0 0.0
    %4828 = vmatpush1.msra.mxu0 0.0
    %4829 = vmatprep.subr.mxu0 0.0
    %4830 = vmatpush1.msra.mxu0 0.0
    %4831 = vmatprep.subr.mxu0 0.0
    %4832 = vmatpush1.msra.mxu0 0.0
    %4833 = vmatprep.subr.mxu0 0.0
    %4834 = vmatpush1.msra.mxu0 0.0
    %4835 = vmatprep.subr.mxu0 0.0
    %4836 = vmatpush1.msra.mxu0 0.0
    %4837 = vmatprep.subr.mxu0 0.0
    %4838 = vmatpush1.msra.mxu0 0.0
    %4839 = vmatprep.subr.mxu0 0.0
    %4840 = vmatpush1.msra.mxu0 0.0
    %4841 = vmatprep.subr.mxu0 0.0
    %4842 = vmatpush1.msra.mxu0 0.0
    %4843 = vmatprep.subr.mxu0 0.0
    %4844 = vmatpush1.msra.mxu0 0.0
    %4845 = vmatprep.subr.mxu0 0.0
    %4846 = vmatpush1.msra.mxu0 0.0
    %4847 = vmatprep.subr.mxu0 0.0
    %4848 = vmatpush1.msra.mxu0 0.0
    %4849 = vmatprep.subr.mxu0 0.0
    %4850 = vmatpush1.msra.mxu0 0.0
    %4851 = vmatprep.subr.mxu0 0.0
    %4852 = vmatpush1.msra.mxu0 0.0
    %4853 = vmatprep.subr.mxu0 0.0
    %4854 = vmatpush1.msra.mxu0 0.0
    %4855 = vmatprep.subr.mxu0 0.0
    %4856 = vmatpush1.msra.mxu0 0.0
    %4857 = vmatprep.subr.mxu0 0.0
    %4858 = vmatpush1.msra.mxu0 0.0
    %4859 = vmatprep.subr.mxu0 0.0
    %4860 = vmatpush1.msra.mxu0 0.0
    %4861 = vmatprep.subr.mxu0 0.0
    %4862 = vmatpush1.msra.mxu0 0.0
    %4863 = vmatprep.subr.mxu0 0.0
    %4864 = vmatpush1.msra.mxu0 0.0
    %4865 = vmatprep.subr.mxu0 0.0
    %4866 = vmatpush1.msra.mxu0 0.0
    %4867 = vmatprep.subr.mxu0 0.0
    %4868 = vmatpush1.msra.mxu0 0.0
    %4869 = vmatprep.subr.mxu0 0.0
    %4870 = vmatpush1.msra.mxu0 0.0
    %4871 = vmatprep.mubr.f32.mxu0 0.0
    %v4872 = vand.u32 %v4430, 4294901760
    %4873 = vmatmul.mubr.f32.gmra.mrb[0].mxu0 %v4872
    %v4874 = vpop.f32.mrb[0].mxu0
    %v4875 = vadd.f32 %v4803, %v4874
    %v4876 = vpop.f32.mrb[0].mxu0
    %4877 = vdwg.mxu0
    %4878 = vrot.lane.b32.xlu0 %v617, 48
    %v4879 = vpop.permute.xlu0 %4878
    %v4882 = vsel %vm1531, %v4425, 0
    %4884 = vmatprep.subr.mxu0 0.0
    %v4885 = vand.u32 %v4879, 4294901760
    %4886 = vmatpush1.msra.mxu0 %v4885
    %4887 = vmatprep.subr.mxu0 0.0
    %4888 = vmatpush1.msra.mxu0 0.0
    %4889 = vmatprep.subr.mxu0 0.0
    %4890 = vmatpush1.msra.mxu0 0.0
    %4891 = vmatprep.subr.mxu0 0.0
    %4892 = vmatpush1.msra.mxu0 0.0
    %4893 = vmatprep.subr.mxu0 0.0
    %4894 = vmatpush1.msra.mxu0 0.0
    %4895 = vmatprep.subr.mxu0 0.0
    %4896 = vmatpush1.msra.mxu0 0.0
    %4897 = vmatprep.subr.mxu0 0.0
    %4898 = vmatpush1.msra.mxu0 0.0
    %4899 = vmatprep.subr.mxu0 0.0
    %4900 = vmatpush1.msra.mxu0 0.0
    %4901 = vmatprep.subr.mxu0 0.0
    %4902 = vmatpush1.msra.mxu0 0.0
    %4903 = vmatprep.subr.mxu0 0.0
    %4904 = vmatpush1.msra.mxu0 0.0
    %4905 = vmatprep.subr.mxu0 0.0
    %4906 = vmatpush1.msra.mxu0 0.0
    %4907 = vmatprep.subr.mxu0 0.0
    %4908 = vmatpush1.msra.mxu0 0.0
    %4909 = vmatprep.subr.mxu0 0.0
    %4910 = vmatpush1.msra.mxu0 0.0
    %4911 = vmatprep.subr.mxu0 0.0
    %4912 = vmatpush1.msra.mxu0 0.0
    %4913 = vmatprep.subr.mxu0 0.0
    %4914 = vmatpush1.msra.mxu0 0.0
    %4915 = vmatprep.subr.mxu0 0.0
    %4916 = vmatpush1.msra.mxu0 0.0
    %4917 = vmatprep.subr.mxu0 0.0
    %4918 = vmatpush1.msra.mxu0 0.0
    %4919 = vmatprep.subr.mxu0 0.0
    %4920 = vmatpush1.msra.mxu0 0.0
    %4921 = vmatprep.subr.mxu0 0.0
    %4922 = vmatpush1.msra.mxu0 0.0
    %4923 = vmatprep.subr.mxu0 0.0
    %4924 = vmatpush1.msra.mxu0 0.0
    %4925 = vmatprep.subr.mxu0 0.0
    %4926 = vmatpush1.msra.mxu0 0.0
    %4927 = vmatprep.subr.mxu0 0.0
    %4928 = vmatpush1.msra.mxu0 0.0
    %4929 = vmatprep.subr.mxu0 0.0
    %4930 = vmatpush1.msra.mxu0 0.0
    %4931 = vmatprep.subr.mxu0 0.0
    %4932 = vmatpush1.msra.mxu0 0.0
    %4933 = vmatprep.subr.mxu0 0.0
    %4934 = vmatpush1.msra.mxu0 0.0
    %4935 = vmatprep.subr.mxu0 0.0
    %4936 = vmatpush1.msra.mxu0 0.0
    %4937 = vmatprep.subr.mxu0 0.0
    %4938 = vmatpush1.msra.mxu0 0.0
    %4939 = vmatprep.subr.mxu0 0.0
    %4940 = vmatpush1.msra.mxu0 0.0
    %4941 = vmatprep.subr.mxu0 0.0
    %4942 = vmatpush1.msra.mxu0 0.0
    %4943 = vmatprep.subr.mxu0 0.0
    %4944 = vmatpush1.msra.mxu0 0.0
    %4945 = vmatprep.subr.mxu0 0.0
    %4946 = vmatpush1.msra.mxu0 0.0
    %4947 = vmatprep.subr.mxu0 0.0
    %4948 = vmatpush1.msra.mxu0 0.0
    %4949 = vmatprep.mubr.f32.mxu0 0.0
    %v4950 = vand.u32 %v4882, 4294901760
    %v4951 = vsub.f32 %v4882, %v4950
    %v4952 = vand.u32 %v4951, 4294901760
    %v4953 = vsub.f32 %v4951, %v4952
    %v4954 = vand.u32 %v4953, 4294901760
    %4955 = vmatmul.mubr.f32.gmra.mrb[0].mxu0 %v4954
    %v4956 = vpop.f32.mrb[0].mxu0
    %v4957 = vadd.f32 0.0, %v4956
    %v4958 = vpop.f32.mrb[0].mxu0
    %4959 = vdwg.mxu0
    %4960 = vmatprep.subr.mxu0 0.0
    %v4961 = vand.u32 %v4879, 4294901760
    %v4962 = vsub.f32 %v4879, %v4961
    %v4963 = vand.u32 %v4962, 4294901760
    %v4964 = vsub.f32 %v4962, %v4963
    %v4965 = vand.u32 %v4964, 4294901760
    %4966 = vmatpush1.msra.mxu0 %v4965
    %4967 = vmatprep.subr.mxu0 0.0
    %4968 = vmatpush1.msra.mxu0 0.0
    %4969 = vmatprep.subr.mxu0 0.0
    %4970 = vmatpush1.msra.mxu0 0.0
    %4971 = vmatprep.subr.mxu0 0.0
    %4972 = vmatpush1.msra.mxu0 0.0
    %4973 = vmatprep.subr.mxu0 0.0
    %4974 = vmatpush1.msra.mxu0 0.0
    %4975 = vmatprep.subr.mxu0 0.0
    %4976 = vmatpush1.msra.mxu0 0.0
    %4977 = vmatprep.subr.mxu0 0.0
    %4978 = vmatpush1.msra.mxu0 0.0
    %4979 = vmatprep.subr.mxu0 0.0
    %4980 = vmatpush1.msra.mxu0 0.0
    %4981 = vmatprep.subr.mxu0 0.0
    %4982 = vmatpush1.msra.mxu0 0.0
    %4983 = vmatprep.subr.mxu0 0.0
    %4984 = vmatpush1.msra.mxu0 0.0
    %4985 = vmatprep.subr.mxu0 0.0
    %4986 = vmatpush1.msra.mxu0 0.0
    %4987 = vmatprep.subr.mxu0 0.0
    %4988 = vmatpush1.msra.mxu0 0.0
    %4989 = vmatprep.subr.mxu0 0.0
    %4990 = vmatpush1.msra.mxu0 0.0
    %4991 = vmatprep.subr.mxu0 0.0
    %4992 = vmatpush1.msra.mxu0 0.0
    %4993 = vmatprep.subr.mxu0 0.0
    %4994 = vmatpush1.msra.mxu0 0.0
    %4995 = vmatprep.subr.mxu0 0.0
    %4996 = vmatpush1.msra.mxu0 0.0
    %4997 = vmatprep.subr.mxu0 0.0
    %4998 = vmatpush1.msra.mxu0 0.0
    %4999 = vmatprep.subr.mxu0 0.0
    %5000 = vmatpush1.msra.mxu0 0.0
    %5001 = vmatprep.subr.mxu0 0.0
    %5002 = vmatpush1.msra.mxu0 0.0
    %5003 = vmatprep.subr.mxu0 0.0
    %5004 = vmatpush1.msra.mxu0 0.0
    %5005 = vmatprep.subr.mxu0 0.0
    %5006 = vmatpush1.msra.mxu0 0.0
    %5007 = vmatprep.subr.mxu0 0.0
    %5008 = vmatpush1.msra.mxu0 0.0
    %5009 = vmatprep.subr.mxu0 0.0
    %5010 = vmatpush1.msra.mxu0 0.0
    %5011 = vmatprep.subr.mxu0 0.0
    %5012 = vmatpush1.msra.mxu0 0.0
    %5013 = vmatprep.subr.mxu0 0.0
    %5014 = vmatpush1.msra.mxu0 0.0
    %5015 = vmatprep.subr.mxu0 0.0
    %5016 = vmatpush1.msra.mxu0 0.0
    %5017 = vmatprep.subr.mxu0 0.0
    %5018 = vmatpush1.msra.mxu0 0.0
    %5019 = vmatprep.subr.mxu0 0.0
    %5020 = vmatpush1.msra.mxu0 0.0
    %5021 = vmatprep.subr.mxu0 0.0
    %5022 = vmatpush1.msra.mxu0 0.0
    %5023 = vmatprep.subr.mxu0 0.0
    %5024 = vmatpush1.msra.mxu0 0.0
    %5025 = vmatprep.subr.mxu0 0.0
    %5026 = vmatpush1.msra.mxu0 0.0
    %5027 = vmatprep.subr.mxu0 0.0
    %5028 = vmatpush1.msra.mxu0 0.0
    %5029 = vmatprep.mubr.f32.mxu0 0.0
    %v5030 = vand.u32 %v4882, 4294901760
    %5031 = vmatmul.mubr.f32.gmra.mrb[0].mxu0 %v5030
    %v5032 = vpop.f32.mrb[0].mxu0
    %v5033 = vadd.f32 %v4957, %v5032
    %v5034 = vpop.f32.mrb[0].mxu0
    %5035 = vdwg.mxu0
    %5036 = vmatprep.subr.mxu0 0.0
    %v5037 = vand.u32 %v4879, 4294901760
    %v5038 = vsub.f32 %v4879, %v5037
    %5039 = vmatpush1.msra.mxu0 %v5038
    %5040 = vmatprep.subr.mxu0 0.0
    %5041 = vmatpush1.msra.mxu0 0.0
    %5042 = vmatprep.subr.mxu0 0.0
    %5043 = vmatpush1.msra.mxu0 0.0
    %5044 = vmatprep.subr.mxu0 0.0
    %5045 = vmatpush1.msra.mxu0 0.0
    %5046 = vmatprep.subr.mxu0 0.0
    %5047 = vmatpush1.msra.mxu0 0.0
    %5048 = vmatprep.subr.mxu0 0.0
    %5049 = vmatpush1.msra.mxu0 0.0
    %5050 = vmatprep.subr.mxu0 0.0
    %5051 = vmatpush1.msra.mxu0 0.0
    %5052 = vmatprep.subr.mxu0 0.0
    %5053 = vmatpush1.msra.mxu0 0.0
    %5054 = vmatprep.subr.mxu0 0.0
    %5055 = vmatpush1.msra.mxu0 0.0
    %5056 = vmatprep.subr.mxu0 0.0
    %5057 = vmatpush1.msra.mxu0 0.0
    %5058 = vmatprep.subr.mxu0 0.0
    %5059 = vmatpush1.msra.mxu0 0.0
    %5060 = vmatprep.subr.mxu0 0.0
    %5061 = vmatpush1.msra.mxu0 0.0
    %5062 = vmatprep.subr.mxu0 0.0
    %5063 = vmatpush1.msra.mxu0 0.0
    %5064 = vmatprep.subr.mxu0 0.0
    %5065 = vmatpush1.msra.mxu0 0.0
    %5066 = vmatprep.subr.mxu0 0.0
    %5067 = vmatpush1.msra.mxu0 0.0
    %5068 = vmatprep.subr.mxu0 0.0
    %5069 = vmatpush1.msra.mxu0 0.0
    %5070 = vmatprep.subr.mxu0 0.0
    %5071 = vmatpush1.msra.mxu0 0.0
    %5072 = vmatprep.subr.mxu0 0.0
    %5073 = vmatpush1.msra.mxu0 0.0
    %5074 = vmatprep.subr.mxu0 0.0
    %5075 = vmatpush1.msra.mxu0 0.0
    %5076 = vmatprep.subr.mxu0 0.0
    %5077 = vmatpush1.msra.mxu0 0.0
    %5078 = vmatprep.subr.mxu0 0.0
    %5079 = vmatpush1.msra.mxu0 0.0
    %5080 = vmatprep.subr.mxu0 0.0
    %5081 = vmatpush1.msra.mxu0 0.0
    %5082 = vmatprep.subr.mxu0 0.0
    %5083 = vmatpush1.msra.mxu0 0.0
    %5084 = vmatprep.subr.mxu0 0.0
    %5085 = vmatpush1.msra.mxu0 0.0
    %5086 = vmatprep.subr.mxu0 0.0
    %5087 = vmatpush1.msra.mxu0 0.0
    %5088 = vmatprep.subr.mxu0 0.0
    %5089 = vmatpush1.msra.mxu0 0.0
    %5090 = vmatprep.subr.mxu0 0.0
    %5091 = vmatpush1.msra.mxu0 0.0
    %5092 = vmatprep.subr.mxu0 0.0
    %5093 = vmatpush1.msra.mxu0 0.0
    %5094 = vmatprep.subr.mxu0 0.0
    %5095 = vmatpush1.msra.mxu0 0.0
    %5096 = vmatprep.subr.mxu0 0.0
    %5097 = vmatpush1.msra.mxu0 0.0
    %5098 = vmatprep.subr.mxu0 0.0
    %5099 = vmatpush1.msra.mxu0 0.0
    %5100 = vmatprep.subr.mxu0 0.0
    %5101 = vmatpush1.msra.mxu0 0.0
    %5102 = vmatprep.mubr.f32.mxu0 0.0
    %v5103 = vand.u32 %v4882, 4294901760
    %v5104 = vsub.f32 %v4882, %v5103
    %5105 = vmatmul.mubr.f32.gmra.mrb[0].mxu0 %v5104
    %v5106 = vpop.f32.mrb[0].mxu0
    %v5107 = vadd.f32 %v5033, %v5106
    %v5108 = vpop.f32.mrb[0].mxu0
    %5109 = vdwg.mxu0
    %5110 = vmatprep.subr.mxu0 0.0
    %v5111 = vand.u32 %v4879, 4294901760
    %5112 = vmatpush1.msra.mxu0 %v5111
    %5113 = vmatprep.subr.mxu0 0.0
    %5114 = vmatpush1.msra.mxu0 0.0
    %5115 = vmatprep.subr.mxu0 0.0
    %5116 = vmatpush1.msra.mxu0 0.0
    %5117 = vmatprep.subr.mxu0 0.0
    %5118 = vmatpush1.msra.mxu0 0.0
    %5119 = vmatprep.subr.mxu0 0.0
    %5120 = vmatpush1.msra.mxu0 0.0
    %5121 = vmatprep.subr.mxu0 0.0
    %5122 = vmatpush1.msra.mxu0 0.0
    %5123 = vmatprep.subr.mxu0 0.0
    %5124 = vmatpush1.msra.mxu0 0.0
    %5125 = vmatprep.subr.mxu0 0.0
    %5126 = vmatpush1.msra.mxu0 0.0
    %5127 = vmatprep.subr.mxu0 0.0
    %5128 = vmatpush1.msra.mxu0 0.0
    %5129 = vmatprep.subr.mxu0 0.0
    %5130 = vmatpush1.msra.mxu0 0.0
    %5131 = vmatprep.subr.mxu0 0.0
    %5132 = vmatpush1.msra.mxu0 0.0
    %5133 = vmatprep.subr.mxu0 0.0
    %5134 = vmatpush1.msra.mxu0 0.0
    %5135 = vmatprep.subr.mxu0 0.0
    %5136 = vmatpush1.msra.mxu0 0.0
    %5137 = vmatprep.subr.mxu0 0.0
    %5138 = vmatpush1.msra.mxu0 0.0
    %5139 = vmatprep.subr.mxu0 0.0
    %5140 = vmatpush1.msra.mxu0 0.0
    %5141 = vmatprep.subr.mxu0 0.0
    %5142 = vmatpush1.msra.mxu0 0.0
    %5143 = vmatprep.subr.mxu0 0.0
    %5144 = vmatpush1.msra.mxu0 0.0
    %5145 = vmatprep.subr.mxu0 0.0
    %5146 = vmatpush1.msra.mxu0 0.0
    %5147 = vmatprep.subr.mxu0 0.0
    %5148 = vmatpush1.msra.mxu0 0.0
    %5149 = vmatprep.subr.mxu0 0.0
    %5150 = vmatpush1.msra.mxu0 0.0
    %5151 = vmatprep.subr.mxu0 0.0
    %5152 = vmatpush1.msra.mxu0 0.0
    %5153 = vmatprep.subr.mxu0 0.0
    %5154 = vmatpush1.msra.mxu0 0.0
    %5155 = vmatprep.subr.mxu0 0.0
    %5156 = vmatpush1.msra.mxu0 0.0
    %5157 = vmatprep.subr.mxu0 0.0
    %5158 = vmatpush1.msra.mxu0 0.0
    %5159 = vmatprep.subr.mxu0 0.0
    %5160 = vmatpush1.msra.mxu0 0.0
    %5161 = vmatprep.subr.mxu0 0.0
    %5162 = vmatpush1.msra.mxu0 0.0
    %5163 = vmatprep.subr.mxu0 0.0
    %5164 = vmatpush1.msra.mxu0 0.0
    %5165 = vmatprep.subr.mxu0 0.0
    %5166 = vmatpush1.msra.mxu0 0.0
    %5167 = vmatprep.subr.mxu0 0.0
    %5168 = vmatpush1.msra.mxu0 0.0
    %5169 = vmatprep.subr.mxu0 0.0
    %5170 = vmatpush1.msra.mxu0 0.0
    %5171 = vmatprep.subr.mxu0 0.0
    %5172 = vmatpush1.msra.mxu0 0.0
    %5173 = vmatprep.subr.mxu0 0.0
    %5174 = vmatpush1.msra.mxu0 0.0
    %5175 = vmatprep.mubr.f32.mxu0 0.0
    %v5176 = vand.u32 %v4882, 4294901760
    %v5177 = vsub.f32 %v4882, %v5176
    %v5178 = vand.u32 %v5177, 4294901760
    %5179 = vmatmul.mubr.f32.gmra.mrb[0].mxu0 %v5178
    %v5180 = vpop.f32.mrb[0].mxu0
    %v5181 = vadd.f32 %v5107, %v5180
    %v5182 = vpop.f32.mrb[0].mxu0
    %5183 = vdwg.mxu0
    %5184 = vmatprep.subr.mxu0 0.0
    %v5185 = vand.u32 %v4879, 4294901760
    %v5186 = vsub.f32 %v4879, %v5185
    %v5187 = vand.u32 %v5186, 4294901760
    %5188 = vmatpush1.msra.mxu0 %v5187
    %5189 = vmatprep.subr.mxu0 0.0
    %5190 = vmatpush1.msra.mxu0 0.0
    %5191 = vmatprep.subr.mxu0 0.0
    %5192 = vmatpush1.msra.mxu0 0.0
    %5193 = vmatprep.subr.mxu0 0.0
    %5194 = vmatpush1.msra.mxu0 0.0
    %5195 = vmatprep.subr.mxu0 0.0
    %5196 = vmatpush1.msra.mxu0 0.0
    %5197 = vmatprep.subr.mxu0 0.0
    %5198 = vmatpush1.msra.mxu0 0.0
    %5199 = vmatprep.subr.mxu0 0.0
    %5200 = vmatpush1.msra.mxu0 0.0
    %5201 = vmatprep.subr.mxu0 0.0
    %5202 = vmatpush1.msra.mxu0 0.0
    %5203 = vmatprep.subr.mxu0 0.0
    %5204 = vmatpush1.msra.mxu0 0.0
    %5205 = vmatprep.subr.mxu0 0.0
    %5206 = vmatpush1.msra.mxu0 0.0
    %5207 = vmatprep.subr.mxu0 0.0
    %5208 = vmatpush1.msra.mxu0 0.0
    %5209 = vmatprep.subr.mxu0 0.0
    %5210 = vmatpush1.msra.mxu0 0.0
    %5211 = vmatprep.subr.mxu0 0.0
    %5212 = vmatpush1.msra.mxu0 0.0
    %5213 = vmatprep.subr.mxu0 0.0
    %5214 = vmatpush1.msra.mxu0 0.0
    %5215 = vmatprep.subr.mxu0 0.0
    %5216 = vmatpush1.msra.mxu0 0.0
    %5217 = vmatprep.subr.mxu0 0.0
    %5218 = vmatpush1.msra.mxu0 0.0
    %5219 = vmatprep.subr.mxu0 0.0
    %5220 = vmatpush1.msra.mxu0 0.0
    %5221 = vmatprep.subr.mxu0 0.0
    %5222 = vmatpush1.msra.mxu0 0.0
    %5223 = vmatprep.subr.mxu0 0.0
    %5224 = vmatpush1.msra.mxu0 0.0
    %5225 = vmatprep.subr.mxu0 0.0
    %5226 = vmatpush1.msra.mxu0 0.0
    %5227 = vmatprep.subr.mxu0 0.0
    %5228 = vmatpush1.msra.mxu0 0.0
    %5229 = vmatprep.subr.mxu0 0.0
    %5230 = vmatpush1.msra.mxu0 0.0
    %5231 = vmatprep.subr.mxu0 0.0
    %5232 = vmatpush1.msra.mxu0 0.0
    %5233 = vmatprep.subr.mxu0 0.0
    %5234 = vmatpush1.msra.mxu0 0.0
    %5235 = vmatprep.subr.mxu0 0.0
    %5236 = vmatpush1.msra.mxu0 0.0
    %5237 = vmatprep.subr.mxu0 0.0
    %5238 = vmatpush1.msra.mxu0 0.0
    %5239 = vmatprep.subr.mxu0 0.0
    %5240 = vmatpush1.msra.mxu0 0.0
    %5241 = vmatprep.subr.mxu0 0.0
    %5242 = vmatpush1.msra.mxu0 0.0
    %5243 = vmatprep.subr.mxu0 0.0
    %5244 = vmatpush1.msra.mxu0 0.0
    %5245 = vmatprep.subr.mxu0 0.0
    %5246 = vmatpush1.msra.mxu0 0.0
    %5247 = vmatprep.subr.mxu0 0.0
    %5248 = vmatpush1.msra.mxu0 0.0
    %5249 = vmatprep.subr.mxu0 0.0
    %5250 = vmatpush1.msra.mxu0 0.0
    %5251 = vmatprep.mubr.f32.mxu0 0.0
    %v5252 = vand.u32 %v4882, 4294901760
    %5253 = vmatmul.mubr.f32.gmra.mrb[0].mxu0 %v5252
    %v5254 = vpop.f32.mrb[0].mxu0
    %v5255 = vadd.f32 %v5181, %v5254
    %v5256 = vpop.f32.mrb[0].mxu0
    %5257 = vdwg.mxu0
    %5258 = vmatprep.subr.mxu0 0.0
    %v5259 = vand.u32 %v4879, 4294901760
    %5260 = vmatpush1.msra.mxu0 %v5259
    %5261 = vmatprep.subr.mxu0 0.0
    %5262 = vmatpush1.msra.mxu0 0.0
    %5263 = vmatprep.subr.mxu0 0.0
    %5264 = vmatpush1.msra.mxu0 0.0
    %5265 = vmatprep.subr.mxu0 0.0
    %5266 = vmatpush1.msra.mxu0 0.0
    %5267 = vmatprep.subr.mxu0 0.0
    %5268 = vmatpush1.msra.mxu0 0.0
    %5269 = vmatprep.subr.mxu0 0.0
    %5270 = vmatpush1.msra.mxu0 0.0
    %5271 = vmatprep.subr.mxu0 0.0
    %5272 = vmatpush1.msra.mxu0 0.0
    %5273 = vmatprep.subr.mxu0 0.0
    %5274 = vmatpush1.msra.mxu0 0.0
    %5275 = vmatprep.subr.mxu0 0.0
    %5276 = vmatpush1.msra.mxu0 0.0
    %5277 = vmatprep.subr.mxu0 0.0
    %5278 = vmatpush1.msra.mxu0 0.0
    %5279 = vmatprep.subr.mxu0 0.0
    %5280 = vmatpush1.msra.mxu0 0.0
    %5281 = vmatprep.subr.mxu0 0.0
    %5282 = vmatpush1.msra.mxu0 0.0
    %5283 = vmatprep.subr.mxu0 0.0
    %5284 = vmatpush1.msra.mxu0 0.0
    %5285 = vmatprep.subr.mxu0 0.0
    %5286 = vmatpush1.msra.mxu0 0.0
    %5287 = vmatprep.subr.mxu0 0.0
    %5288 = vmatpush1.msra.mxu0 0.0
    %5289 = vmatprep.subr.mxu0 0.0
    %5290 = vmatpush1.msra.mxu0 0.0
    %5291 = vmatprep.subr.mxu0 0.0
    %5292 = vmatpush1.msra.mxu0 0.0
    %5293 = vmatprep.subr.mxu0 0.0
    %5294 = vmatpush1.msra.mxu0 0.0
    %5295 = vmatprep.subr.mxu0 0.0
    %5296 = vmatpush1.msra.mxu0 0.0
    %5297 = vmatprep.subr.mxu0 0.0
    %5298 = vmatpush1.msra.mxu0 0.0
    %5299 = vmatprep.subr.mxu0 0.0
    %5300 = vmatpush1.msra.mxu0 0.0
    %5301 = vmatprep.subr.mxu0 0.0
    %5302 = vmatpush1.msra.mxu0 0.0
    %5303 = vmatprep.subr.mxu0 0.0
    %5304 = vmatpush1.msra.mxu0 0.0
    %5305 = vmatprep.subr.mxu0 0.0
    %5306 = vmatpush1.msra.mxu0 0.0
    %5307 = vmatprep.subr.mxu0 0.0
    %5308 = vmatpush1.msra.mxu0 0.0
    %5309 = vmatprep.subr.mxu0 0.0
    %5310 = vmatpush1.msra.mxu0 0.0
    %5311 = vmatprep.subr.mxu0 0.0
    %5312 = vmatpush1.msra.mxu0 0.0
    %5313 = vmatprep.subr.mxu0 0.0
    %5314 = vmatpush1.msra.mxu0 0.0
    %5315 = vmatprep.subr.mxu0 0.0
    %5316 = vmatpush1.msra.mxu0 0.0
    %5317 = vmatprep.subr.mxu0 0.0
    %5318 = vmatpush1.msra.mxu0 0.0
    %5319 = vmatprep.subr.mxu0 0.0
    %5320 = vmatpush1.msra.mxu0 0.0
    %5321 = vmatprep.subr.mxu0 0.0
    %5322 = vmatpush1.msra.mxu0 0.0
    %5323 = vmatprep.mubr.f32.mxu0 0.0
    %v5324 = vand.u32 %v4882, 4294901760
    %5325 = vmatmul.mubr.f32.gmra.mrb[0].mxu0 %v5324
    %v5326 = vpop.f32.mrb[0].mxu0
    %v5327 = vadd.f32 %v5255, %v5326
    %v5328 = vpop.f32.mrb[0].mxu0
    %5329 = vdwg.mxu0
    %s5330 = scalar_lea.vmem [#allocation8], 16
    %v5331 = vld [vmem:[%s5330] sm:$0xff]
    %v5332 = vld [vmem:[%s5330 + $0x8] sm:$0xff]
    %v5334 = vsel %vm627, %v4875, 0
    %v5337 = vsel %vm627, %v5327, 0
    %5339 = vmatprep.subr.mxu0 0.0
    %v5340 = vand.u32 %v5331, 4294901760
    %5341 = vmatpush1.msra.mxu0 %v5340
    %5342 = vmatprep.subr.mxu0 0.0
    %v5343 = vand.u32 %v5332, 4294901760
    %5344 = vmatpush1.msra.mxu0 %v5343
    %5345 = vmatprep.subr.mxu0 0.0
    %5346 = vmatpush1.msra.mxu0 0.0
    %5347 = vmatprep.subr.mxu0 0.0
    %5348 = vmatpush1.msra.mxu0 0.0
    %5349 = vmatprep.subr.mxu0 0.0
    %5350 = vmatpush1.msra.mxu0 0.0
    %5351 = vmatprep.subr.mxu0 0.0
    %5352 = vmatpush1.msra.mxu0 0.0
    %5353 = vmatprep.subr.mxu0 0.0
    %5354 = vmatpush1.msra.mxu0 0.0
    %5355 = vmatprep.subr.mxu0 0.0
    %5356 = vmatpush1.msra.mxu0 0.0
    %5357 = vmatprep.subr.mxu0 0.0
    %5358 = vmatpush1.msra.mxu0 0.0
    %5359 = vmatprep.subr.mxu0 0.0
    %5360 = vmatpush1.msra.mxu0 0.0
    %5361 = vmatprep.subr.mxu0 0.0
    %5362 = vmatpush1.msra.mxu0 0.0
    %5363 = vmatprep.subr.mxu0 0.0
    %5364 = vmatpush1.msra.mxu0 0.0
    %5365 = vmatprep.subr.mxu0 0.0
    %5366 = vmatpush1.msra.mxu0 0.0
    %5367 = vmatprep.subr.mxu0 0.0
    %5368 = vmatpush1.msra.mxu0 0.0
    %5369 = vmatprep.subr.mxu0 0.0
    %5370 = vmatpush1.msra.mxu0 0.0
    %5371 = vmatprep.subr.mxu0 0.0
    %5372 = vmatpush1.msra.mxu0 0.0
    %5373 = vmatprep.subr.mxu0 0.0
    %5374 = vmatpush1.msra.mxu0 0.0
    %5375 = vmatprep.subr.mxu0 0.0
    %5376 = vmatpush1.msra.mxu0 0.0
    %5377 = vmatprep.subr.mxu0 0.0
    %5378 = vmatpush1.msra.mxu0 0.0
    %5379 = vmatprep.subr.mxu0 0.0
    %5380 = vmatpush1.msra.mxu0 0.0
    %5381 = vmatprep.subr.mxu0 0.0
    %5382 = vmatpush1.msra.mxu0 0.0
    %5383 = vmatprep.subr.mxu0 0.0
    %5384 = vmatpush1.msra.mxu0 0.0
    %5385 = vmatprep.subr.mxu0 0.0
    %5386 = vmatpush1.msra.mxu0 0.0
    %5387 = vmatprep.subr.mxu0 0.0
    %5388 = vmatpush1.msra.mxu0 0.0
    %5389 = vmatprep.subr.mxu0 0.0
    %5390 = vmatpush1.msra.mxu0 0.0
    %5391 = vmatprep.subr.mxu0 0.0
    %5392 = vmatpush1.msra.mxu0 0.0
    %5393 = vmatprep.subr.mxu0 0.0
    %5394 = vmatpush1.msra.mxu0 0.0
    %5395 = vmatprep.subr.mxu0 0.0
    %5396 = vmatpush1.msra.mxu0 0.0
    %5397 = vmatprep.subr.mxu0 0.0
    %5398 = vmatpush1.msra.mxu0 0.0
    %5399 = vmatprep.subr.mxu0 0.0
    %5400 = vmatpush1.msra.mxu0 0.0
    %5401 = vmatprep.subr.mxu0 0.0
    %5402 = vmatpush1.msra.mxu0 0.0
    %5403 = vmatprep.subr.mxu0 0.0
    %5404 = vmatpush1.msra.mxu0 0.0
    %5405 = vmatprep.mubr.f32.mxu0 0.0
    %v5406 = vand.u32 %v5334, 4294901760
    %v5407 = vsub.f32 %v5334, %v5406
    %v5408 = vand.u32 %v5407, 4294901760
    %v5409 = vsub.f32 %v5407, %v5408
    %v5410 = vand.u32 %v5409, 4294901760
    %5411 = vmatmul.mubr.f32.gmra.mrb[0].mxu0 %v5410
    %v5412 = vpop.f32.mrb[0].mxu0
    %v5413 = vadd.f32 0.0, %v5412
    %v5414 = vpop.f32.mrb[0].mxu0
    %5415 = vmatprep.mubr.f32.mxu0 0.0
    %v5416 = vand.u32 %v5337, 4294901760
    %v5417 = vsub.f32 %v5337, %v5416
    %v5418 = vand.u32 %v5417, 4294901760
    %v5419 = vsub.f32 %v5417, %v5418
    %v5420 = vand.u32 %v5419, 4294901760
    %5421 = vmatmul.mubr.f32.gmra.mrb[0].mxu0 %v5420
    %v5422 = vpop.f32.mrb[0].mxu0
    %v5423 = vadd.f32 0.0, %v5422
    %v5424 = vpop.f32.mrb[0].mxu0
    %5425 = vdwg.mxu0
    %5426 = vmatprep.subr.mxu0 0.0
    %v5427 = vand.u32 %v5331, 4294901760
    %v5428 = vsub.f32 %v5331, %v5427
    %v5429 = vand.u32 %v5428, 4294901760
    %v5430 = vsub.f32 %v5428, %v5429
    %v5431 = vand.u32 %v5430, 4294901760
    %5432 = vmatpush1.msra.mxu0 %v5431
    %5433 = vmatprep.subr.mxu0 0.0
    %v5434 = vand.u32 %v5332, 4294901760
    %v5435 = vsub.f32 %v5332, %v5434
    %v5436 = vand.u32 %v5435, 4294901760
    %v5437 = vsub.f32 %v5435, %v5436
    %v5438 = vand.u32 %v5437, 4294901760
    %5439 = vmatpush1.msra.mxu0 %v5438
    %5440 = vmatprep.subr.mxu0 0.0
    %5441 = vmatpush1.msra.mxu0 0.0
    %5442 = vmatprep.subr.mxu0 0.0
    %5443 = vmatpush1.msra.mxu0 0.0
    %5444 = vmatprep.subr.mxu0 0.0
    %5445 = vmatpush1.msra.mxu0 0.0
    %5446 = vmatprep.subr.mxu0 0.0
    %5447 = vmatpush1.msra.mxu0 0.0
    %5448 = vmatprep.subr.mxu0 0.0
    %5449 = vmatpush1.msra.mxu0 0.0
    %5450 = vmatprep.subr.mxu0 0.0
    %5451 = vmatpush1.msra.mxu0 0.0
    %5452 = vmatprep.subr.mxu0 0.0
    %5453 = vmatpush1.msra.mxu0 0.0
    %5454 = vmatprep.subr.mxu0 0.0
    %5455 = vmatpush1.msra.mxu0 0.0
    %5456 = vmatprep.subr.mxu0 0.0
    %5457 = vmatpush1.msra.mxu0 0.0
    %5458 = vmatprep.subr.mxu0 0.0
    %5459 = vmatpush1.msra.mxu0 0.0
    %5460 = vmatprep.subr.mxu0 0.0
    %5461 = vmatpush1.msra.mxu0 0.0
    %5462 = vmatprep.subr.mxu0 0.0
    %5463 = vmatpush1.msra.mxu0 0.0
    %5464 = vmatprep.subr.mxu0 0.0
    %5465 = vmatpush1.msra.mxu0 0.0
    %5466 = vmatprep.subr.mxu0 0.0
    %5467 = vmatpush1.msra.mxu0 0.0
    %5468 = vmatprep.subr.mxu0 0.0
    %5469 = vmatpush1.msra.mxu0 0.0
    %5470 = vmatprep.subr.mxu0 0.0
    %5471 = vmatpush1.msra.mxu0 0.0
    %5472 = vmatprep.subr.mxu0 0.0
    %5473 = vmatpush1.msra.mxu0 0.0
    %5474 = vmatprep.subr.mxu0 0.0
    %5475 = vmatpush1.msra.mxu0 0.0
    %5476 = vmatprep.subr.mxu0 0.0
    %5477 = vmatpush1.msra.mxu0 0.0
    %5478 = vmatprep.subr.mxu0 0.0
    %5479 = vmatpush1.msra.mxu0 0.0
    %5480 = vmatprep.subr.mxu0 0.0
    %5481 = vmatpush1.msra.mxu0 0.0
    %5482 = vmatprep.subr.mxu0 0.0
    %5483 = vmatpush1.msra.mxu0 0.0
    %5484 = vmatprep.subr.mxu0 0.0
    %5485 = vmatpush1.msra.mxu0 0.0
    %5486 = vmatprep.subr.mxu0 0.0
    %5487 = vmatpush1.msra.mxu0 0.0
    %5488 = vmatprep.subr.mxu0 0.0
    %5489 = vmatpush1.msra.mxu0 0.0
    %5490 = vmatprep.subr.mxu0 0.0
    %5491 = vmatpush1.msra.mxu0 0.0
    %5492 = vmatprep.subr.mxu0 0.0
    %5493 = vmatpush1.msra.mxu0 0.0
    %5494 = vmatprep.subr.mxu0 0.0
    %5495 = vmatpush1.msra.mxu0 0.0
    %5496 = vmatprep.subr.mxu0 0.0
    %5497 = vmatpush1.msra.mxu0 0.0
    %5498 = vmatprep.subr.mxu0 0.0
    %5499 = vmatpush1.msra.mxu0 0.0
    %5500 = vmatprep.mubr.f32.mxu0 0.0
    %v5501 = vand.u32 %v5334, 4294901760
    %5502 = vmatmul.mubr.f32.gmra.mrb[0].mxu0 %v5501
    %v5503 = vpop.f32.mrb[0].mxu0
    %v5504 = vadd.f32 %v5413, %v5503
    %v5505 = vpop.f32.mrb[0].mxu0
    %5506 = vmatprep.mubr.f32.mxu0 0.0
    %v5507 = vand.u32 %v5337, 4294901760
    %5508 = vmatmul.mubr.f32.gmra.mrb[0].mxu0 %v5507
    %v5509 = vpop.f32.mrb[0].mxu0
    %v5510 = vadd.f32 %v5423, %v5509
    %v5511 = vpop.f32.mrb[0].mxu0
    %5512 = vdwg.mxu0
    %5513 = vmatprep.subr.mxu0 0.0
    %v5514 = vand.u32 %v5331, 4294901760
    %v5515 = vsub.f32 %v5331, %v5514
    %5516 = vmatpush1.msra.mxu0 %v5515
    %5517 = vmatprep.subr.mxu0 0.0
    %v5518 = vand.u32 %v5332, 4294901760
    %v5519 = vsub.f32 %v5332, %v5518
    %5520 = vmatpush1.msra.mxu0 %v5519
    %5521 = vmatprep.subr.mxu0 0.0
    %5522 = vmatpush1.msra.mxu0 0.0
    %5523 = vmatprep.subr.mxu0 0.0
    %5524 = vmatpush1.msra.mxu0 0.0
    %5525 = vmatprep.subr.mxu0 0.0
    %5526 = vmatpush1.msra.mxu0 0.0
    %5527 = vmatprep.subr.mxu0 0.0
    %5528 = vmatpush1.msra.mxu0 0.0
    %5529 = vmatprep.subr.mxu0 0.0
    %5530 = vmatpush1.msra.mxu0 0.0
    %5531 = vmatprep.subr.mxu0 0.0
    %5532 = vmatpush1.msra.mxu0 0.0
    %5533 = vmatprep.subr.mxu0 0.0
    %5534 = vmatpush1.msra.mxu0 0.0
    %5535 = vmatprep.subr.mxu0 0.0
    %5536 = vmatpush1.msra.mxu0 0.0
    %5537 = vmatprep.subr.mxu0 0.0
    %5538 = vmatpush1.msra.mxu0 0.0
    %5539 = vmatprep.subr.mxu0 0.0
    %5540 = vmatpush1.msra.mxu0 0.0
    %5541 = vmatprep.subr.mxu0 0.0
    %5542 = vmatpush1.msra.mxu0 0.0
    %5543 = vmatprep.subr.mxu0 0.0
    %5544 = vmatpush1.msra.mxu0 0.0
    %5545 = vmatprep.subr.mxu0 0.0
    %5546 = vmatpush1.msra.mxu0 0.0
    %5547 = vmatprep.subr.mxu0 0.0
    %5548 = vmatpush1.msra.mxu0 0.0
    %5549 = vmatprep.subr.mxu0 0.0
    %5550 = vmatpush1.msra.mxu0 0.0
    %5551 = vmatprep.subr.mxu0 0.0
    %5552 = vmatpush1.msra.mxu0 0.0
    %5553 = vmatprep.subr.mxu0 0.0
    %5554 = vmatpush1.msra.mxu0 0.0
    %5555 = vmatprep.subr.mxu0 0.0
    %5556 = vmatpush1.msra.mxu0 0.0
    %5557 = vmatprep.subr.mxu0 0.0
    %5558 = vmatpush1.msra.mxu0 0.0
    %5559 = vmatprep.subr.mxu0 0.0
    %5560 = vmatpush1.msra.mxu0 0.0
    %5561 = vmatprep.subr.mxu0 0.0
    %5562 = vmatpush1.msra.mxu0 0.0
    %5563 = vmatprep.subr.mxu0 0.0
    %5564 = vmatpush1.msra.mxu0 0.0
    %5565 = vmatprep.subr.mxu0 0.0
    %5566 = vmatpush1.msra.mxu0 0.0
    %5567 = vmatprep.subr.mxu0 0.0
    %5568 = vmatpush1.msra.mxu0 0.0
    %5569 = vmatprep.subr.mxu0 0.0
    %5570 = vmatpush1.msra.mxu0 0.0
    %5571 = vmatprep.subr.mxu0 0.0
    %5572 = vmatpush1.msra.mxu0 0.0
    %5573 = vmatprep.subr.mxu0 0.0
    %5574 = vmatpush1.msra.mxu0 0.0
    %5575 = vmatprep.subr.mxu0 0.0
    %5576 = vmatpush1.msra.mxu0 0.0
    %5577 = vmatprep.subr.mxu0 0.0
    %5578 = vmatpush1.msra.mxu0 0.0
    %5579 = vmatprep.subr.mxu0 0.0
    %5580 = vmatpush1.msra.mxu0 0.0
    %5581 = vmatprep.mubr.f32.mxu0 0.0
    %v5582 = vand.u32 %v5334, 4294901760
    %v5583 = vsub.f32 %v5334, %v5582
    %5584 = vmatmul.mubr.f32.gmra.mrb[0].mxu0 %v5583
    %v5585 = vpop.f32.mrb[0].mxu0
    %v5586 = vadd.f32 %v5504, %v5585
    %v5587 = vpop.f32.mrb[0].mxu0
    %5588 = vmatprep.mubr.f32.mxu0 0.0
    %v5589 = vand.u32 %v5337, 4294901760
    %v5590 = vsub.f32 %v5337, %v5589
    %5591 = vmatmul.mubr.f32.gmra.mrb[0].mxu0 %v5590
    %v5592 = vpop.f32.mrb[0].mxu0
    %v5593 = vadd.f32 %v5510, %v5592
    %v5594 = vpop.f32.mrb[0].mxu0
    %5595 = vdwg.mxu0
    %5596 = vmatprep.subr.mxu0 0.0
    %v5597 = vand.u32 %v5331, 4294901760
    %5598 = vmatpush1.msra.mxu0 %v5597
    %5599 = vmatprep.subr.mxu0 0.0
    %v5600 = vand.u32 %v5332, 4294901760
    %5601 = vmatpush1.msra.mxu0 %v5600
    %5602 = vmatprep.subr.mxu0 0.0
    %5603 = vmatpush1.msra.mxu0 0.0
    %5604 = vmatprep.subr.mxu0 0.0
    %5605 = vmatpush1.msra.mxu0 0.0
    %5606 = vmatprep.subr.mxu0 0.0
    %5607 = vmatpush1.msra.mxu0 0.0
    %5608 = vmatprep.subr.mxu0 0.0
    %5609 = vmatpush1.msra.mxu0 0.0
    %5610 = vmatprep.subr.mxu0 0.0
    %5611 = vmatpush1.msra.mxu0 0.0
    %5612 = vmatprep.subr.mxu0 0.0
    %5613 = vmatpush1.msra.mxu0 0.0
    %5614 = vmatprep.subr.mxu0 0.0
    %5615 = vmatpush1.msra.mxu0 0.0
    %5616 = vmatprep.subr.mxu0 0.0
    %5617 = vmatpush1.msra.mxu0 0.0
    %5618 = vmatprep.subr.mxu0 0.0
    %5619 = vmatpush1.msra.mxu0 0.0
    %5620 = vmatprep.subr.mxu0 0.0
    %5621 = vmatpush1.msra.mxu0 0.0
    %5622 = vmatprep.subr.mxu0 0.0
    %5623 = vmatpush1.msra.mxu0 0.0
    %5624 = vmatprep.subr.mxu0 0.0
    %5625 = vmatpush1.msra.mxu0 0.0
    %5626 = vmatprep.subr.mxu0 0.0
    %5627 = vmatpush1.msra.mxu0 0.0
    %5628 = vmatprep.subr.mxu0 0.0
    %5629 = vmatpush1.msra.mxu0 0.0
    %5630 = vmatprep.subr.mxu0 0.0
    %5631 = vmatpush1.msra.mxu0 0.0
    %5632 = vmatprep.subr.mxu0 0.0
    %5633 = vmatpush1.msra.mxu0 0.0
    %5634 = vmatprep.subr.mxu0 0.0
    %5635 = vmatpush1.msra.mxu0 0.0
    %5636 = vmatprep.subr.mxu0 0.0
    %5637 = vmatpush1.msra.mxu0 0.0
    %5638 = vmatprep.subr.mxu0 0.0
    %5639 = vmatpush1.msra.mxu0 0.0
    %5640 = vmatprep.subr.mxu0 0.0
    %5641 = vmatpush1.msra.mxu0 0.0
    %5642 = vmatprep.subr.mxu0 0.0
    %5643 = vmatpush1.msra.mxu0 0.0
    %5644 = vmatprep.subr.mxu0 0.0
    %5645 = vmatpush1.msra.mxu0 0.0
    %5646 = vmatprep.subr.mxu0 0.0
    %5647 = vmatpush1.msra.mxu0 0.0
    %5648 = vmatprep.subr.mxu0 0.0
    %5649 = vmatpush1.msra.mxu0 0.0
    %5650 = vmatprep.subr.mxu0 0.0
    %5651 = vmatpush1.msra.mxu0 0.0
    %5652 = vmatprep.subr.mxu0 0.0
    %5653 = vmatpush1.msra.mxu0 0.0
    %5654 = vmatprep.subr.mxu0 0.0
    %5655 = vmatpush1.msra.mxu0 0.0
    %5656 = vmatprep.subr.mxu0 0.0
    %5657 = vmatpush1.msra.mxu0 0.0
    %5658 = vmatprep.subr.mxu0 0.0
    %5659 = vmatpush1.msra.mxu0 0.0
    %5660 = vmatprep.subr.mxu0 0.0
    %5661 = vmatpush1.msra.mxu0 0.0
    %5662 = vmatprep.mubr.f32.mxu0 0.0
    %v5663 = vand.u32 %v5334, 4294901760
    %v5664 = vsub.f32 %v5334, %v5663
    %v5665 = vand.u32 %v5664, 4294901760
    %5666 = vmatmul.mubr.f32.gmra.mrb[0].mxu0 %v5665
    %v5667 = vpop.f32.mrb[0].mxu0
    %v5668 = vadd.f32 %v5586, %v5667
    %v5669 = vpop.f32.mrb[0].mxu0
    %5670 = vmatprep.mubr.f32.mxu0 0.0
    %v5671 = vand.u32 %v5337, 4294901760
    %v5672 = vsub.f32 %v5337, %v5671
    %v5673 = vand.u32 %v5672, 4294901760
    %5674 = vmatmul.mubr.f32.gmra.mrb[0].mxu0 %v5673
    %v5675 = vpop.f32.mrb[0].mxu0
    %v5676 = vadd.f32 %v5593, %v5675
    %v5677 = vpop.f32.mrb[0].mxu0
    %5678 = vdwg.mxu0
    %5679 = vmatprep.subr.mxu0 0.0
    %v5680 = vand.u32 %v5331, 4294901760
    %v5681 = vsub.f32 %v5331, %v5680
    %v5682 = vand.u32 %v5681, 4294901760
    %5683 = vmatpush1.msra.mxu0 %v5682
    %5684 = vmatprep.subr.mxu0 0.0
    %v5685 = vand.u32 %v5332, 4294901760
    %v5686 = vsub.f32 %v5332, %v5685
    %v5687 = vand.u32 %v5686, 4294901760
    %5688 = vmatpush1.msra.mxu0 %v5687
    %5689 = vmatprep.subr.mxu0 0.0
    %5690 = vmatpush1.msra.mxu0 0.0
    %5691 = vmatprep.subr.mxu0 0.0
    %5692 = vmatpush1.msra.mxu0 0.0
    %5693 = vmatprep.subr.mxu0 0.0
    %5694 = vmatpush1.msra.mxu0 0.0
    %5695 = vmatprep.subr.mxu0 0.0
    %5696 = vmatpush1.msra.mxu0 0.0
    %5697 = vmatprep.subr.mxu0 0.0
    %5698 = vmatpush1.msra.mxu0 0.0
    %5699 = vmatprep.subr.mxu0 0.0
    %5700 = vmatpush1.msra.mxu0 0.0
    %5701 = vmatprep.subr.mxu0 0.0
    %5702 = vmatpush1.msra.mxu0 0.0
    %5703 = vmatprep.subr.mxu0 0.0
    %5704 = vmatpush1.msra.mxu0 0.0
    %5705 = vmatprep.subr.mxu0 0.0
    %5706 = vmatpush1.msra.mxu0 0.0
    %5707 = vmatprep.subr.mxu0 0.0
    %5708 = vmatpush1.msra.mxu0 0.0
    %5709 = vmatprep.subr.mxu0 0.0
    %5710 = vmatpush1.msra.mxu0 0.0
    %5711 = vmatprep.subr.mxu0 0.0
    %5712 = vmatpush1.msra.mxu0 0.0
    %5713 = vmatprep.subr.mxu0 0.0
    %5714 = vmatpush1.msra.mxu0 0.0
    %5715 = vmatprep.subr.mxu0 0.0
    %5716 = vmatpush1.msra.mxu0 0.0
    %5717 = vmatprep.subr.mxu0 0.0
    %5718 = vmatpush1.msra.mxu0 0.0
    %5719 = vmatprep.subr.mxu0 0.0
    %5720 = vmatpush1.msra.mxu0 0.0
    %5721 = vmatprep.subr.mxu0 0.0
    %5722 = vmatpush1.msra.mxu0 0.0
    %5723 = vmatprep.subr.mxu0 0.0
    %5724 = vmatpush1.msra.mxu0 0.0
    %5725 = vmatprep.subr.mxu0 0.0
    %5726 = vmatpush1.msra.mxu0 0.0
    %5727 = vmatprep.subr.mxu0 0.0
    %5728 = vmatpush1.msra.mxu0 0.0
    %5729 = vmatprep.subr.mxu0 0.0
    %5730 = vmatpush1.msra.mxu0 0.0
    %5731 = vmatprep.subr.mxu0 0.0
    %5732 = vmatpush1.msra.mxu0 0.0
    %5733 = vmatprep.subr.mxu0 0.0
    %5734 = vmatpush1.msra.mxu0 0.0
    %5735 = vmatprep.subr.mxu0 0.0
    %5736 = vmatpush1.msra.mxu0 0.0
    %5737 = vmatprep.subr.mxu0 0.0
    %5738 = vmatpush1.msra.mxu0 0.0
    %5739 = vmatprep.subr.mxu0 0.0
    %5740 = vmatpush1.msra.mxu0 0.0
    %5741 = vmatprep.subr.mxu0 0.0
    %5742 = vmatpush1.msra.mxu0 0.0
    %5743 = vmatprep.subr.mxu0 0.0
    %5744 = vmatpush1.msra.mxu0 0.0
    %5745 = vmatprep.subr.mxu0 0.0
    %5746 = vmatpush1.msra.mxu0 0.0
    %5747 = vmatprep.subr.mxu0 0.0
    %5748 = vmatpush1.msra.mxu0 0.0
    %5749 = vmatprep.mubr.f32.mxu0 0.0
    %v5750 = vand.u32 %v5334, 4294901760
    %5751 = vmatmul.mubr.f32.gmra.mrb[0].mxu0 %v5750
    %v5752 = vpop.f32.mrb[0].mxu0
    %v5753 = vadd.f32 %v5668, %v5752
    %v5754 = vpop.f32.mrb[0].mxu0
    %5755 = vmatprep.mubr.f32.mxu0 0.0
    %v5756 = vand.u32 %v5337, 4294901760
    %5757 = vmatmul.mubr.f32.gmra.mrb[0].mxu0 %v5756
    %v5758 = vpop.f32.mrb[0].mxu0
    %v5759 = vadd.f32 %v5676, %v5758
    %v5760 = vpop.f32.mrb[0].mxu0
    %5761 = vdwg.mxu0
    %5762 = vmatprep.subr.mxu0 0.0
    %v5763 = vand.u32 %v5331, 4294901760
    %5764 = vmatpush1.msra.mxu0 %v5763
    %5765 = vmatprep.subr.mxu0 0.0
    %v5766 = vand.u32 %v5332, 4294901760
    %5767 = vmatpush1.msra.mxu0 %v5766
    %5768 = vmatprep.subr.mxu0 0.0
    %5769 = vmatpush1.msra.mxu0 0.0
    %5770 = vmatprep.subr.mxu0 0.0
    %5771 = vmatpush1.msra.mxu0 0.0
    %5772 = vmatprep.subr.mxu0 0.0
    %5773 = vmatpush1.msra.mxu0 0.0
    %5774 = vmatprep.subr.mxu0 0.0
    %5775 = vmatpush1.msra.mxu0 0.0
    %5776 = vmatprep.subr.mxu0 0.0
    %5777 = vmatpush1.msra.mxu0 0.0
    %5778 = vmatprep.subr.mxu0 0.0
    %5779 = vmatpush1.msra.mxu0 0.0
    %5780 = vmatprep.subr.mxu0 0.0
    %5781 = vmatpush1.msra.mxu0 0.0
    %5782 = vmatprep.subr.mxu0 0.0
    %5783 = vmatpush1.msra.mxu0 0.0
    %5784 = vmatprep.subr.mxu0 0.0
    %5785 = vmatpush1.msra.mxu0 0.0
    %5786 = vmatprep.subr.mxu0 0.0
    %5787 = vmatpush1.msra.mxu0 0.0
    %5788 = vmatprep.subr.mxu0 0.0
    %5789 = vmatpush1.msra.mxu0 0.0
    %5790 = vmatprep.subr.mxu0 0.0
    %5791 = vmatpush1.msra.mxu0 0.0
    %5792 = vmatprep.subr.mxu0 0.0
    %5793 = vmatpush1.msra.mxu0 0.0
    %5794 = vmatprep.subr.mxu0 0.0
    %5795 = vmatpush1.msra.mxu0 0.0
    %5796 = vmatprep.subr.mxu0 0.0
    %5797 = vmatpush1.msra.mxu0 0.0
    %5798 = vmatprep.subr.mxu0 0.0
    %5799 = vmatpush1.msra.mxu0 0.0
    %5800 = vmatprep.subr.mxu0 0.0
    %5801 = vmatpush1.msra.mxu0 0.0
    %5802 = vmatprep.subr.mxu0 0.0
    %5803 = vmatpush1.msra.mxu0 0.0
    %5804 = vmatprep.subr.mxu0 0.0
    %5805 = vmatpush1.msra.mxu0 0.0
    %5806 = vmatprep.subr.mxu0 0.0
    %5807 = vmatpush1.msra.mxu0 0.0
    %5808 = vmatprep.subr.mxu0 0.0
    %5809 = vmatpush1.msra.mxu0 0.0
    %5810 = vmatprep.subr.mxu0 0.0
    %5811 = vmatpush1.msra.mxu0 0.0
    %5812 = vmatprep.subr.mxu0 0.0
    %5813 = vmatpush1.msra.mxu0 0.0
    %5814 = vmatprep.subr.mxu0 0.0
    %5815 = vmatpush1.msra.mxu0 0.0
    %5816 = vmatprep.subr.mxu0 0.0
    %5817 = vmatpush1.msra.mxu0 0.0
    %5818 = vmatprep.subr.mxu0 0.0
    %5819 = vmatpush1.msra.mxu0 0.0
    %5820 = vmatprep.subr.mxu0 0.0
    %5821 = vmatpush1.msra.mxu0 0.0
    %5822 = vmatprep.subr.mxu0 0.0
    %5823 = vmatpush1.msra.mxu0 0.0
    %5824 = vmatprep.subr.mxu0 0.0
    %5825 = vmatpush1.msra.mxu0 0.0
    %5826 = vmatprep.subr.mxu0 0.0
    %5827 = vmatpush1.msra.mxu0 0.0
    %5828 = vmatprep.mubr.f32.mxu0 0.0
    %v5829 = vand.u32 %v5334, 4294901760
    %5830 = vmatmul.mubr.f32.gmra.mrb[0].mxu0 %v5829
    %v5831 = vpop.f32.mrb[0].mxu0
    %v5832 = vadd.f32 %v5753, %v5831
    %v5833 = vpop.f32.mrb[0].mxu0
    %5834 = vmatprep.mubr.f32.mxu0 0.0
    %v5835 = vand.u32 %v5337, 4294901760
    %5836 = vmatmul.mubr.f32.gmra.mrb[0].mxu0 %v5835
    %v5837 = vpop.f32.mrb[0].mxu0
    %v5838 = vadd.f32 %v5759, %v5837
    %v5839 = vpop.f32.mrb[0].mxu0
    %5840 = vdwg.mxu0
    %v5841 = vadd.f32 %v3487, %v5832
    %v5842 = vadd.f32 %v3493, %v5838
    %v5843 = vsel %vm85, %v5841, 0.0
    %5844 = vadd.xlane.f32.xlu0 %v5843
    %v5845 = vpop.xlane.xlu0 %5844
    %v5846 = vsel %vm85, %v5842, 0.0
    %5847 = vadd.xlane.f32.xlu0 %v5846
    %v5848 = vpop.xlane.xlu0 %5847
    %v5849 = vrcp.pop 32.0
    %v5850 = vmul.f32 %v5845, %v5849
    %v5851 = vmul.f32 %v5848, %v5849
    %v5852 = vsub.f32 %v5841, %v5850
    %v5853 = vsub.f32 %v5842, %v5851
    %v5854 = vmul.f32 %v5852, %v5852
    %v5855 = vmul.f32 %v5853, %v5853
    %v5856 = vsel %vm85, %v5854, 0.0
    %5857 = vadd.xlane.f32.xlu0 %v5856
    %v5858 = vpop.xlane.xlu0 %5857
    %v5859 = vsel %vm85, %v5855, 0.0
    %5860 = vadd.xlane.f32.xlu0 %v5859
    %v5861 = vpop.xlane.xlu0 %5860
    %v5862 = vmul.f32 %v5858, %v5849
    %v5863 = vmul.f32 %v5861, %v5849
    %v5864 = vadd.f32 %v5862, 1e-06
    %v5865 = vadd.f32 %v5863, 1e-06
    %v5866 = vrsqrt.pop %v5864
    %v5867 = vrsqrt.pop %v5865
    %v5868 = vmul.f32 %v5852, %v5866
    %v5869 = vmul.f32 %v5853, %v5867
    %v5870 = vld [vmem:[%s4] sm:$0x1]
    %v5872 = vlaneseq
    %v5873 = vshrl.u32 %v5872, 7
    %v5874 = vsub.s32 0, %v5873
    %v5875 = vrot.slane %v5870, %v5874
    %v5877 = vmul.f32 %v5868, %v5875
    %v5878 = vmul.f32 %v5869, %v5875
    %v5879 = vld [vmem:[%s5] sm:$0x1]
    %v5881 = vlaneseq
    %v5882 = vshrl.u32 %v5881, 7
    %v5883 = vsub.s32 0, %v5882
    %v5884 = vrot.slane %v5879, %v5883
    %v5886 = vadd.f32 %v5877, %v5884
    %v5887 = vadd.f32 %v5878, %v5884
    %5888 = vst.msk [vmem:[#allocation10] sm:$0xff] %vm85, %v5886
    %5889 = vst.msk [vmem:[#allocation10 + $0x8] sm:$0xff] %vm85, %v5887
    // Predicated region
    $region42: #{tpu_custom_call.1} parent=1 // pred_check
      _
    $region43: #{tpu_custom_call.1} parent=1 // pred_check_branch
      %5891 = sbr.rel (0) target = $region45
    $region44: #{tpu_custom_call.1} parent=1 // pred_region
      %s5893 = ssub.s32 256, 256
      %5894 = vsyncadd [#allocation4], %s5893
      %s5895 = sshll.u32 [#allocation10], 4
      %s5896 = int_to_ptr.vmem [resolvable:$true] %s5895
      %5901 = dma.vmem_to_hbm [thread:$0]  %s5896, 256, %s6, [#allocation4], 128, 128, 8
    $region45: #{tpu_custom_call.1} parent=1 // pred_fallthru
      _
    // Predicated region
    $region46: #{tpu_custom_call.1} parent=1 // pred_check
      _
    $region47: #{tpu_custom_call.1} parent=1 // pred_check_branch
      %5903 = sbr.rel (0) target = $region49
    $region48: #{tpu_custom_call.1} parent=1 // pred_region
      %5904 = dma.done [#allocation4], 256
    $region49: #{tpu_custom_call.1} parent=1 // pred_fallthru
      _
    %5905 = vsyncpa [#allocation3], 1
    %5906 = vsyncpa [#allocation6], 1
    %5907 = vsyncpa [#allocation9], 1
    %5908 = vsyncpa [#allocation4], 1

</llo_original>
